<compile_context>
chip_gen: v6e
topology: v6e:2x2x1
jax: 0.10.0
libtpu: 0.0.40
codegen_flags: <defaults>
</compile_context>

<pallas_src>
import jax
import jax.numpy as jnp
from jax.experimental import pallas as pl
from jax.experimental.pallas import tpu as pltpu

INPUT_DIM = 207
HIDDEN_DIM = 69
OUTPUT_DIM = 20670
NEG_SLOPE = 0.01

N_TILES = 2                      # one tile per TensorCore on v7x, sequential elsewhere
TN = 10368                       # 81 * 128 lanes per tile (lane-dense stores)
OUT_PAD = N_TILES * TN           # 20736 >= 20670
assert TN % 128 == 0 and OUT_PAD >= OUTPUT_DIM


def _posedirs_kernel(x_ref, w1_ref, b1_ref, w2_ref, b2_ref, o_ref):
    # Layer 1 (207 -> 69) in f32 + LeakyReLU.  Tiny (B x 207 @ 207 x 69), so it
    # is simply recomputed for each of the 2 output tiles.
    h = jnp.dot(x_ref[...], w1_ref[...], preferred_element_type=jnp.float32)
    h = h + b1_ref[...]
    h = jnp.where(h > 0, h, NEG_SLOPE * h)
    # TODO(synk): Dropout(0.4) is identity in eval mode; training-mode masking
    # would use pltpu.prng_seed + pltpu.prng_random_bits here.
    h = h.astype(jnp.bfloat16)

    # Layer 2 tile: (B, 69) bf16 @ (69, TN) bf16 -> f32 accumulate, + f32 bias.
    o_ref[...] = (
        jnp.dot(h, w2_ref[...], preferred_element_type=jnp.float32) + b2_ref[...]
    ).astype(o_ref.dtype)


def prepare_params(w1, b1, w2, b2):
    """One-time (model-load) parameter prep: pad W2/b2 to the lane-aligned
    OUT_PAD width and store W2 in bf16 so the kernel streams half the bytes."""
    pad = OUT_PAD - OUTPUT_DIM
    w2_p = jnp.pad(w2, ((0, 0), (0, pad))).astype(jnp.bfloat16)
    b2_2d = jnp.pad(b2, ((0, pad),)).astype(jnp.float32).reshape(1, OUT_PAD)
    b1_2d = b1.astype(jnp.float32).reshape(1, HIDDEN_DIM)
    return w1.astype(jnp.float32), b1_2d, w2_p, b2_2d


def neural_posedirs_forward(x, w1, b1_2d, w2_p, b2_2d):
    """x: (B, 207) f32. Remaining args come from prepare_params()."""
    B = x.shape[0]
    B_pad = ((B + 7) // 8) * 8
    if B_pad != B:
        x = jnp.pad(x, ((0, B_pad - B), (0, 0)))

    tile_map = lambda i: (0, i)

    cost = pl.CostEstimate(
        flops=2 * B_pad * INPUT_DIM * HIDDEN_DIM + 2 * B_pad * HIDDEN_DIM * OUT_PAD,
        transcendentals=0,
        bytes_accessed=(
            HIDDEN_DIM * OUT_PAD * 2          # W2 (bf16) -- dominant stream
            + OUT_PAD * 4                     # b2
            + B_pad * OUT_PAD * 4             # output
            + B_pad * INPUT_DIM * 4           # x
            + INPUT_DIM * HIDDEN_DIM * 4      # W1
        ),
    )

    out_padded = pl.pallas_call(
        _posedirs_kernel,
        out_shape=jax.ShapeDtypeStruct((B_pad, OUT_PAD), jnp.float32),
        grid_spec=pltpu.PrefetchScalarGridSpec(
            num_scalar_prefetch=0,
            grid=(N_TILES,),
            in_specs=[
                pl.BlockSpec((B_pad, INPUT_DIM), lambda i: (0, 0)),          # x (full)
                pl.BlockSpec((INPUT_DIM, HIDDEN_DIM), lambda i: (0, 0)),     # W1 (full)
                pl.BlockSpec((1, HIDDEN_DIM), lambda i: (0, 0)),             # b1 (full)
                pl.BlockSpec((HIDDEN_DIM, TN), tile_map),                    # W2 tile (bf16)
                pl.BlockSpec((1, TN), tile_map),                             # b2 tile
            ],
            out_specs=pl.BlockSpec((B_pad, TN), tile_map),
        ),
        compiler_params=pltpu.CompilerParams(
            dimension_semantics=("parallel",),
        ),
        cost_estimate=cost,
    )(x, w1, b1_2d, w2_p, b2_2d)

    # Callers that can consume the lane-padded (B_pad, 20736) buffer should
    # skip this slice (saves an extra ~660 KB read+write per call).
    return out_padded[:B, :OUTPUT_DIM]


def _reference_forward(x, w1, b1, w2, b2):
    h = x @ w1 + b1
    h = jnp.where(h > 0, h, NEG_SLOPE * h)
    # Matches kernel numerics: bf16 operands, f32 accumulation.
    return jnp.dot(h.astype(jnp.bfloat16), w2.astype(jnp.bfloat16),
                   preferred_element_type=jnp.float32) + b2


if __name__ == "__main__":
    key = jax.random.PRNGKey(0)
    kx, kw1, kb1, kw2, kb2 = jax.random.split(key, 5)

    B = 8  # small batch; for best HBM-roofline utilization callers should batch up
    x = jax.random.normal(kx, (B, INPUT_DIM), dtype=jnp.float32)

    # Deterministic parameter init (uniform, roughly matching nn.Linear scale).
    lim1 = 1.0 / (INPUT_DIM ** 0.5)
    lim2 = 1.0 / (HIDDEN_DIM ** 0.5)
    w1 = jax.random.uniform(kw1, (INPUT_DIM, HIDDEN_DIM), jnp.float32, -lim1, lim1)
    b1 = jax.random.uniform(kb1, (HIDDEN_DIM,), jnp.float32, -lim1, lim1)
    w2 = jax.random.uniform(kw2, (HIDDEN_DIM, OUTPUT_DIM), jnp.float32, -lim2, lim2)
    b2 = jax.random.uniform(kb2, (OUTPUT_DIM,), jnp.float32, -lim2, lim2)

    # One-time model-load prep (padding + bf16 cast) hoisted out of the forward.
    params = prepare_params(w1, b1, w2, b2)
    params = jax.tree_util.tree_map(jax.block_until_ready, params)

    fwd = jax.jit(neural_posedirs_forward)
    out = jax.block_until_ready(fwd(x, *params))

    ref = _reference_forward(x, w1, b1, w2, b2)
    assert out.shape == (B, OUTPUT_DIM), out.shape
    max_err = float(jnp.max(jnp.abs(out - ref)))
    assert jnp.allclose(out, ref, atol=2e-2, rtol=2e-2), f"mismatch vs ref, max_err={max_err}"

    print("KERNEL_OK")
</pallas_src>

<mosaic_0001>
module attributes {stable_mosaic.version = 11 : i64} {
  func.func @_posedirs_kernel(%arg0: i32, %arg1: memref<8x207xf32, #tpu.memory_space<vmem>>, %arg2: memref<207x69xf32, #tpu.memory_space<vmem>>, %arg3: memref<1x69xf32, #tpu.memory_space<vmem>>, %arg4: memref<69x10368xbf16, #tpu.memory_space<vmem>>, %arg5: memref<1x10368xf32, #tpu.memory_space<vmem>>, %arg6: memref<8x10368xf32, #tpu.memory_space<vmem>>) attributes {dimension_semantics = [#tpu.dimension_semantics<parallel>], iteration_bounds = array<i64: 2>, scalar_prefetch = 0 : i64, scratch_operands = 0 : i64, tpu.core_type = #tpu.core_type<tc>, window_params = [{pipeline_mode = #tpu.pipeline_mode<synchronous>, transform_indices = @transform_0, window_bounds = array<i64: 8, 207>}, {pipeline_mode = #tpu.pipeline_mode<synchronous>, transform_indices = @transform_1, window_bounds = array<i64: 207, 69>}, {pipeline_mode = #tpu.pipeline_mode<synchronous>, transform_indices = @transform_2, window_bounds = array<i64: 1, 69>}, {transform_indices = @transform_3, window_bounds = array<i64: 69, 10368>}, {transform_indices = @transform_4, window_bounds = array<i64: 1, 10368>}, {transform_indices = @transform_5, window_bounds = array<i64: 8, 10368>}]} {
    %c0 = arith.constant 0 : index
    %c0_0 = arith.constant 0 : index
    %0 = vector.load %arg1[%c0, %c0_0] : memref<8x207xf32, #tpu.memory_space<vmem>>, vector<8x207xf32>
    %c0_1 = arith.constant 0 : index
    %c0_2 = arith.constant 0 : index
    %1 = vector.load %arg2[%c0_1, %c0_2] : memref<207x69xf32, #tpu.memory_space<vmem>>, vector<207x69xf32>
    %cst = arith.constant dense<0.000000e+00> : vector<8x69xf32>
    %2 = tpu.matmul %0, %1, %cst {dimension_numbers = #tpu.dot_dimension_numbers<[1], [0], [0], [1], [0, 0, 1, 1], [], []>} : vector<8x207xf32>, vector<207x69xf32>, vector<8x69xf32> -> vector<8x69xf32>
    %c0_3 = arith.constant 0 : index
    %c0_4 = arith.constant 0 : index
    %3 = vector.load %arg3[%c0_3, %c0_4] : memref<1x69xf32, #tpu.memory_space<vmem>>, vector<1x69xf32>
    %4 = vector.broadcast %3 : vector<1x69xf32> to vector<8x69xf32>
    %5 = arith.addf %2, %4 : vector<8x69xf32>
    %cst_5 = arith.constant 0.000000e+00 : f32
    %6 = vector.broadcast %cst_5 : f32 to vector<8x69xf32>
    %7 = arith.cmpf ogt, %5, %6 : vector<8x69xf32>
    %cst_6 = arith.constant 0.00999999977 : f32
    %8 = vector.broadcast %cst_6 : f32 to vector<8x69xf32>
    %9 = arith.mulf %8, %5 : vector<8x69xf32>
    %10 = arith.select %7, %5, %9 : vector<8x69xi1>, vector<8x69xf32>
    %11 = arith.truncf %10 : vector<8x69xf32> to vector<8x69xbf16>
    %c0_7 = arith.constant 0 : index
    %c0_8 = arith.constant 0 : index
    %12 = vector.load %arg4[%c0_7, %c0_8] : memref<69x10368xbf16, #tpu.memory_space<vmem>>, vector<69x10368xbf16>
    %cst_9 = arith.constant dense<0.000000e+00> : vector<8x10368xf32>
    %13 = tpu.matmul %11, %12, %cst_9 {dimension_numbers = #tpu.dot_dimension_numbers<[1], [0], [0], [1], [0, 0, 1, 1], [], []>} : vector<8x69xbf16>, vector<69x10368xbf16>, vector<8x10368xf32> -> vector<8x10368xf32>
    %c0_10 = arith.constant 0 : index
    %c0_11 = arith.constant 0 : index
    %14 = vector.load %arg5[%c0_10, %c0_11] : memref<1x10368xf32, #tpu.memory_space<vmem>>, vector<1x10368xf32>
    %15 = vector.broadcast %14 : vector<1x10368xf32> to vector<8x10368xf32>
    %16 = arith.addf %13, %15 : vector<8x10368xf32>
    %c0_12 = arith.constant 0 : index
    %c0_13 = arith.constant 0 : index
    %17 = vector.load %arg6[%c0_12, %c0_13] : memref<8x10368xf32, #tpu.memory_space<vmem>>, vector<8x10368xf32>
    tpu.vector_store %arg6[%c0_12, %c0_13], %16 {strides = array<i32>} : memref<8x10368xf32, #tpu.memory_space<vmem>>, vector<8x10368xf32>,
    return
  }
  func.func @transform_0(%arg0: i32) -> (i32, i32) {
    %c0_i32 = arith.constant 0 : i32
    %c0_i32_0 = arith.constant 0 : i32
    %c0_i32_1 = arith.constant 0 : i32
    return %c0_i32, %c0_i32_0 : i32, i32
  }
  func.func @transform_1(%arg0: i32) -> (i32, i32) {
    %c0_i32 = arith.constant 0 : i32
    %c0_i32_0 = arith.constant 0 : i32
    %c0_i32_1 = arith.constant 0 : i32
    return %c0_i32, %c0_i32_0 : i32, i32
  }
  func.func @transform_2(%arg0: i32) -> (i32, i32) {
    %c0_i32 = arith.constant 0 : i32
    %c0_i32_0 = arith.constant 0 : i32
    %c0_i32_1 = arith.constant 0 : i32
    return %c0_i32, %c0_i32_0 : i32, i32
  }
  func.func @transform_3(%arg0: i32) -> (i32, i32) {
    %c0_i32 = arith.constant 0 : i32
    %c0_i32_0 = arith.constant 0 : i32
    return %c0_i32, %arg0 : i32, i32
  }
  func.func @transform_4(%arg0: i32) -> (i32, i32) {
    %c0_i32 = arith.constant 0 : i32
    %c0_i32_0 = arith.constant 0 : i32
    return %c0_i32, %arg0 : i32, i32
  }
  func.func @transform_5(%arg0: i32) -> (i32, i32) {
    %c0_i32 = arith.constant 0 : i32
    %c0_i32_0 = arith.constant 0 : i32
    return %c0_i32, %arg0 : i32, i32
  }
}

</mosaic_0001>

<llo_original>
// kernel: neural_posedirs_forward.1
$region0: #{neural_posedirs_forward.1}
  #allocation0 [shape = 'u32[]', space=smem, size = 0x4, offset = 0x4, fixed_abs, tag = 'smem constant byte address 0x4 - core index']
  #allocation1 [shape = 'u32[144,128]{1,0:T(1,128)}', space=vmem, size = 0x12000, scoped, tag = 'internal scratch']
  %s0 = inlined_call_operand.hbm [shape: f32[8,207], index: 0, kind: input, shape index: {}]
  %s1 = inlined_call_operand.vmem [shape: f32[207,69], index: 1, kind: input, shape index: {}]
  %s2 = inlined_call_operand.hbm [shape: f32[1,69], index: 2, kind: input, shape index: {}]
  %s3 = inlined_call_operand.hbm [shape: bf16[69,20736], index: 3, kind: input, shape index: {}]
  %s4 = inlined_call_operand.hbm [shape: f32[1,20736], index: 4, kind: input, shape index: {}]
  %s5 = inlined_call_operand.hbm [shape: f32[8,20736], index: 5, kind: output, shape index: {}]
  %s6 = sld [smem:[#allocation0]]
  $region69: #{neural_posedirs_forward.1} parent=0
    _
  %s8 = ssub.s32 1, %s6
  %s9 = scalar_select 0, %s8, %s6
  $region1: #{neural_posedirs_forward.1} parent=0
    #allocation2 [shape = 'u8[8192]{0}', space=vmem, size = 0x2000, scoped, tag = 'input window, operand 0, single buffered']
    #allocation3 [shape = 's32[2]{0}', space=sflag, size = 0x8, scoped, tag = 'scoped memory for neural_posedirs_forward.1']
    #allocation4 [shape = 's32[2]{0}', space=sflag, size = 0x8, scoped, tag = 'scoped memory for neural_posedirs_forward.1']
    #allocation5 [shape = 'u8[512]{0}', space=vmem, size = 0x400, scoped, tag = 'input window, operand 2, single buffered']
    #allocation6 [shape = 's32[1]{0}', space=sflag, size = 0x4, scoped, tag = 'scoped memory for neural_posedirs_forward.1']
    #allocation7 [shape = 'u8[2985984]{0}', space=vmem, size = 0x2d9000, scoped, tag = 'input window, operand 3']
    #allocation8 [shape = 'u8[82944]{0}', space=vmem, size = 0x14400, scoped, tag = 'input window, operand 4']
    #allocation9 [shape = 'u8[663552]{0}', space=vmem, size = 0xa2000, scoped, tag = 'output window, operand 0']
    %10 = vsyncpa [#allocation3], 0
    %11 = vsyncpa [#allocation6], 0
    %12 = vsyncpa [#allocation4], 0
    %s13 = scalar_lea.sflag [#allocation4], 1
    %14 = vsyncpa %s13, 0
    loop: start=0, step=1, limit=4
    $region2: #{neural_posedirs_forward.1} parent=1 // loop_pre_header
      _
    $region3: #{neural_posedirs_forward.1} parent=1 // loop_header
      %s16 = sphi 0, %s20
      %p17 = scmp.ge.s32.totalorder %s16, 4
      %s24 = sphi 0, %s24
      %s26 = sphi 0, %s24
      %s27 = sphi 0, %s26
      %s41 = sphi 0, %s27
      %s45 = sphi 0, %s45
      %s47 = sphi 0, %s45
      %s48 = sphi 0, %s47
      %s62 = sphi 0, %s48
      %s66 = sphi 0, %s66
      %s68 = sphi 0, %s66
      %s69 = sphi 0, %s68
      %s83 = sphi 0, %s69
      %s89 = sphi 0, %s91
      %s92 = sphi 0, %s89
      %s93 = sphi 0, %s92
      %s109 = sphi 0, %s93
      %s115 = sphi 0, %s117
      %s118 = sphi 0, %s115
      %s119 = sphi 0, %s118
      %s135 = sphi 0, %s119
      %s141 = sphi 0, %s143
      %s144 = sphi 0, %s141
      %s145 = sphi 0, %s144
      %s161 = sphi 0, %s145
    $region4: #{neural_posedirs_forward.1} parent=1 // loop_header_branch
      %19 = sbr.rel (%p17) target = $region8
    $region5: #{neural_posedirs_forward.1} parent=1 // loop_body
      %s21 = ssub.s32 %s16, 1
      %s22 = ssub.s32 %s16, 2
      %s23 = sadd.s32 %s16, 1
      %s25 = sadd.s32 %s24, 1
      %p28 = scmp.eq.s32.totalorder %s16, 1
      %p29 = scmp.ne.s32.totalorder %s24, %s26
      %p30 = scmp.eq.s32.totalorder %s16, 0
      %p31 = por %p29, %p30
      %p32 = scmp.ne.s32.totalorder %s24, %s26
      %p33 = scmp.eq.s32.totalorder %s21, 1
      %p34 = por %p32, %p33
      %p35 = scmp.ne.s32.totalorder %s26, %s27
      %p36 = scmp.eq.s32.totalorder %s21, 0
      %p37 = por %p35, %p36
      %p38 = scmp.ne.s32.totalorder %s26, %s27
      %p39 = scmp.eq.s32.totalorder %s22, 1
      %p40 = por %p38, %p39
      %p42 = scmp.ne.s32.totalorder %s27, %s41
      %p43 = scmp.eq.s32.totalorder %s22, 0
      %p44 = por %p42, %p43
      %s46 = sadd.s32 %s45, 1
      %p49 = scmp.eq.s32.totalorder %s16, 1
      %p50 = scmp.ne.s32.totalorder %s45, %s47
      %p51 = scmp.eq.s32.totalorder %s16, 0
      %p52 = por %p50, %p51
      %p53 = scmp.ne.s32.totalorder %s45, %s47
      %p54 = scmp.eq.s32.totalorder %s21, 1
      %p55 = por %p53, %p54
      %p56 = scmp.ne.s32.totalorder %s47, %s48
      %p57 = scmp.eq.s32.totalorder %s21, 0
      %p58 = por %p56, %p57
      %p59 = scmp.ne.s32.totalorder %s47, %s48
      %p60 = scmp.eq.s32.totalorder %s22, 1
      %p61 = por %p59, %p60
      %p63 = scmp.ne.s32.totalorder %s48, %s62
      %p64 = scmp.eq.s32.totalorder %s22, 0
      %p65 = por %p63, %p64
      %s67 = sadd.s32 %s66, 1
      %p70 = scmp.eq.s32.totalorder %s16, 1
      %p71 = scmp.ne.s32.totalorder %s66, %s68
      %p72 = scmp.eq.s32.totalorder %s16, 0
      %p73 = por %p71, %p72
      %p74 = scmp.ne.s32.totalorder %s66, %s68
      %p75 = scmp.eq.s32.totalorder %s21, 1
      %p76 = por %p74, %p75
      %p77 = scmp.ne.s32.totalorder %s68, %s69
      %p78 = scmp.eq.s32.totalorder %s21, 0
      %p79 = por %p77, %p78
      %p80 = scmp.ne.s32.totalorder %s68, %s69
      %p81 = scmp.eq.s32.totalorder %s22, 1
      %p82 = por %p80, %p81
      %p84 = scmp.ne.s32.totalorder %s69, %s83
      %p85 = scmp.eq.s32.totalorder %s22, 0
      %p86 = por %p84, %p85
      %s87 = ssub.s32 %s16, %s23
      %p88 = scmp.eq.s32.totalorder %s87, 0
      %s90 = sadd.s32 %s89, 1
      %s91 = scalar_select %p88, %s89, %s90
      %p94 = pneg %p88
      %p95 = scmp.eq.s32.totalorder %s16, 1
      %p96 = por %p94, %p95
      %p97 = scmp.ne.s32.totalorder %s89, %s92
      %p98 = scmp.eq.s32.totalorder %s16, 0
      %p99 = por %p97, %p98
      %p100 = scmp.ne.s32.totalorder %s89, %s92
      %p101 = scmp.eq.s32.totalorder %s21, 1
      %p102 = por %p100, %p101
      %p103 = scmp.ne.s32.totalorder %s92, %s93
      %p104 = scmp.eq.s32.totalorder %s21, 0
      %p105 = por %p103, %p104
      %p106 = scmp.ne.s32.totalorder %s92, %s93
      %p107 = scmp.eq.s32.totalorder %s22, 1
      %p108 = por %p106, %p107
      %p110 = scmp.ne.s32.totalorder %s93, %s109
      %p111 = scmp.eq.s32.totalorder %s22, 0
      %p112 = por %p110, %p111
      %s113 = ssub.s32 %s16, %s23
      %p114 = scmp.eq.s32.totalorder %s113, 0
      %s116 = sadd.s32 %s115, 1
      %s117 = scalar_select %p114, %s115, %s116
      %p120 = pneg %p114
      %p121 = scmp.eq.s32.totalorder %s16, 1
      %p122 = por %p120, %p121
      %p123 = scmp.ne.s32.totalorder %s115, %s118
      %p124 = scmp.eq.s32.totalorder %s16, 0
      %p125 = por %p123, %p124
      %p126 = scmp.ne.s32.totalorder %s115, %s118
      %p127 = scmp.eq.s32.totalorder %s21, 1
      %p128 = por %p126, %p127
      %p129 = scmp.ne.s32.totalorder %s118, %s119
      %p130 = scmp.eq.s32.totalorder %s21, 0
      %p131 = por %p129, %p130
      %p132 = scmp.ne.s32.totalorder %s118, %s119
      %p133 = scmp.eq.s32.totalorder %s22, 1
      %p134 = por %p132, %p133
      %p136 = scmp.ne.s32.totalorder %s119, %s135
      %p137 = scmp.eq.s32.totalorder %s22, 0
      %p138 = por %p136, %p137
      %s139 = ssub.s32 %s16, %s23
      %p140 = scmp.eq.s32.totalorder %s139, 0
      %s142 = sadd.s32 %s141, 1
      %s143 = scalar_select %p140, %s141, %s142
      %p146 = pneg %p140
      %p147 = scmp.eq.s32.totalorder %s16, 1
      %p148 = por %p146, %p147
      %p149 = scmp.ne.s32.totalorder %s141, %s144
      %p150 = scmp.eq.s32.totalorder %s16, 0
      %p151 = por %p149, %p150
      %p152 = scmp.ne.s32.totalorder %s141, %s144
      %p153 = scmp.eq.s32.totalorder %s21, 1
      %p154 = por %p152, %p153
      %p155 = scmp.ne.s32.totalorder %s144, %s145
      %p156 = scmp.eq.s32.totalorder %s21, 0
      %p157 = por %p155, %p156
      %p158 = scmp.ne.s32.totalorder %s144, %s145
      %p159 = scmp.eq.s32.totalorder %s22, 1
      %p160 = por %p158, %p159
      %p162 = scmp.ne.s32.totalorder %s145, %s161
      %p163 = scmp.eq.s32.totalorder %s22, 0
      %p164 = por %p162, %p163
      %p165 = scmp.le.s32.totalorder 1, %s16
      %p166 = scmp.lt.s32.totalorder %s16, 3
      %p167 = pnand %p165, %p166
      %p168 = pneg %p167
      // Predicated region
      $region9: #{neural_posedirs_forward.1} parent=5 // pred_check
        _
      $region10: #{neural_posedirs_forward.1} parent=5 // pred_check_branch
        %170 = sbr.rel (%p167) target = $region12
      $region11: #{neural_posedirs_forward.1} parent=5 // pred_region
        %s171 = ssub.s32 %s16, 1
        // Predicated region
        $region13: #{neural_posedirs_forward.1} parent=11 // pred_check
          %p172 = pneg %p37
        $region14: #{neural_posedirs_forward.1} parent=11 // pred_check_branch
          %174 = sbr.rel (%p172) target = $region16
        $region15: #{neural_posedirs_forward.1} parent=11 // pred_region
          %s176 = ssub.s32 256, 256
          %177 = vsyncadd [#allocation3], %s176
          %s179 = sshll.u32 [#allocation2], 4
          %s180 = int_to_ptr.vmem [resolvable:$true] %s179
          %182 = dma.hbm_to_vmem [thread:$0]  %s0, 256, %s180, [#allocation3]
        $region16: #{neural_posedirs_forward.1} parent=11 // pred_fallthru
          _
        // Predicated region
        $region17: #{neural_posedirs_forward.1} parent=11 // pred_check
          %p183 = pneg %p58
        $region18: #{neural_posedirs_forward.1} parent=11 // pred_check_branch
          %185 = sbr.rel (%p183) target = $region20
        $region19: #{neural_posedirs_forward.1} parent=11 // pred_region
          _
        $region20: #{neural_posedirs_forward.1} parent=11 // pred_fallthru
          _
        // Predicated region
        $region21: #{neural_posedirs_forward.1} parent=11 // pred_check
          %p186 = pneg %p79
        $region22: #{neural_posedirs_forward.1} parent=11 // pred_check_branch
          %188 = sbr.rel (%p186) target = $region24
        $region23: #{neural_posedirs_forward.1} parent=11 // pred_region
          %s190 = ssub.s32 16, 16
          %191 = vsyncadd [#allocation6], %s190
          %s193 = sshll.u32 [#allocation5], 4
          %s194 = int_to_ptr.vmem [resolvable:$true] %s193
          %196 = dma.hbm_to_vmem [thread:$0]  %s2, 16, %s194, [#allocation6]
        $region24: #{neural_posedirs_forward.1} parent=11 // pred_fallthru
          _
      $region12: #{neural_posedirs_forward.1} parent=5 // pred_fallthru
        _
      %p197 = scmp.lt.s32.totalorder %s16, 2
      // Predicated region
      $region25: #{neural_posedirs_forward.1} parent=5 // pred_check
        %p198 = pneg %p197
      $region26: #{neural_posedirs_forward.1} parent=5 // pred_check_branch
        %200 = sbr.rel (%p198) target = $region28
      $region27: #{neural_posedirs_forward.1} parent=5 // pred_region
        // Predicated region
        $region29: #{neural_posedirs_forward.1} parent=27 // pred_check
          %p201 = pneg %p99
        $region30: #{neural_posedirs_forward.1} parent=27 // pred_check_branch
          %203 = sbr.rel (%p201) target = $region32
        $region31: #{neural_posedirs_forward.1} parent=27 // pred_region
          %s204 = sand.u32 %s16, 1
          %s205 = scalar_lea.sflag [#allocation3], %s204
          %s206 = sand.u32 %s89, 1
          %s207 = smul.addr %s206, 2916
          %s208 = scalar_lea.vmem [#allocation7], %s207
          %s209 = smul.u32 81, %s16
          %s211 = ssub.s32 46656, 46656
          %212 = vsyncadd %s205, %s211
          %s213 = smul.addr %s209, 64
          %s214 = scalar_lea.hbm %s3, %s213
          %s215 = sshll.u32 %s208, 4
          %s216 = int_to_ptr.vmem [resolvable:$true] %s215
          %221 = dma.hbm_to_vmem [thread:$0]  %s214, 46656, %s216, %s205, 10368, 5184, 324
        $region32: #{neural_posedirs_forward.1} parent=27 // pred_fallthru
          _
        // Predicated region
        $region33: #{neural_posedirs_forward.1} parent=27 // pred_check
          %p222 = pneg %p125
        $region34: #{neural_posedirs_forward.1} parent=27 // pred_check_branch
          %224 = sbr.rel (%p222) target = $region36
        $region35: #{neural_posedirs_forward.1} parent=27 // pred_region
          %s225 = sand.u32 %s16, 1
          %s226 = scalar_lea.sflag [#allocation3], %s225
          %s227 = sand.u32 %s115, 1
          %s228 = smul.addr %s227, 81
          %s229 = scalar_lea.vmem [#allocation8], %s228
          %s230 = smul.u32 81, %s16
          %s232 = ssub.s32 1296, 1296
          %233 = vsyncadd %s226, %s232
          %s234 = smul.addr %s230, 16
          %s235 = scalar_lea.hbm %s4, %s234
          %s237 = sshll.u32 %s229, 4
          %s238 = int_to_ptr.vmem [resolvable:$true] %s237
          %240 = dma.hbm_to_vmem [thread:$0]  %s235, 1296, %s238, %s226
        $region36: #{neural_posedirs_forward.1} parent=27 // pred_fallthru
          _
      $region28: #{neural_posedirs_forward.1} parent=5 // pred_fallthru
        _
      %p241 = scmp.le.s32.totalorder 1, %s16
      %p242 = scmp.lt.s32.totalorder %s16, 3
      %p243 = pnand %p241, %p242
      %p244 = pneg %p243
      // Predicated region
      $region37: #{neural_posedirs_forward.1} parent=5 // pred_check
        _
      $region38: #{neural_posedirs_forward.1} parent=5 // pred_check_branch
        %246 = sbr.rel (%p243) target = $region40
      $region39: #{neural_posedirs_forward.1} parent=5 // pred_region
        %s247 = ssub.s32 %s16, 1
        // Predicated region
        $region41: #{neural_posedirs_forward.1} parent=39 // pred_check
          %p248 = pneg %p37
        $region42: #{neural_posedirs_forward.1} parent=39 // pred_check_branch
          %250 = sbr.rel (%p248) target = $region44
        $region43: #{neural_posedirs_forward.1} parent=39 // pred_region
          %251 = dma.done [#allocation3], 256
        $region44: #{neural_posedirs_forward.1} parent=39 // pred_fallthru
          _
        // Predicated region
        $region45: #{neural_posedirs_forward.1} parent=39 // pred_check
          %p252 = pneg %p79
        $region46: #{neural_posedirs_forward.1} parent=39 // pred_check_branch
          %254 = sbr.rel (%p252) target = $region48
        $region47: #{neural_posedirs_forward.1} parent=39 // pred_region
          %255 = dma.done [#allocation6], 16
        $region48: #{neural_posedirs_forward.1} parent=39 // pred_fallthru
          _
        %s256 = sand.u32 %s21, 1
        %s257 = scalar_lea.sflag [#allocation3], %s256
        %s258 = sand.u32 %s92, 1
        %s259 = smul.addr %s258, 2916
        %s260 = scalar_lea.vmem [#allocation7], %s259
        // Predicated region
        $region49: #{neural_posedirs_forward.1} parent=39 // pred_check
          %p261 = pneg %p105
        $region50: #{neural_posedirs_forward.1} parent=39 // pred_check_branch
          %263 = sbr.rel (%p261) target = $region52
        $region51: #{neural_posedirs_forward.1} parent=39 // pred_region
          %264 = dma.done %s257, 46656
        $region52: #{neural_posedirs_forward.1} parent=39 // pred_fallthru
          _
        %s265 = sand.u32 %s21, 1
        %s266 = scalar_lea.sflag [#allocation3], %s265
        %s267 = sand.u32 %s118, 1
        %s268 = smul.addr %s267, 81
        %s269 = scalar_lea.vmem [#allocation8], %s268
        // Predicated region
        $region53: #{neural_posedirs_forward.1} parent=39 // pred_check
          %p270 = pneg %p131
        $region54: #{neural_posedirs_forward.1} parent=39 // pred_check_branch
          %272 = sbr.rel (%p270) target = $region56
        $region55: #{neural_posedirs_forward.1} parent=39 // pred_region
          %273 = dma.done %s266, 1296
        $region56: #{neural_posedirs_forward.1} parent=39 // pred_fallthru
          _
        %p274 = pneg %p37
        %p275 = pneg %p34
        %p276 = pneg %p58
        %p277 = pneg %p55
        %p278 = pneg %p79
        %p279 = pneg %p76
        %s280 = sand.u32 %s21, 1
        %s281 = scalar_lea.sflag [#allocation3], %s280
        %s282 = sand.u32 %s92, 1
        %s283 = smul.addr %s282, 2916
        %s284 = scalar_lea.vmem [#allocation7], %s283
        %p285 = pneg %p105
        %p286 = pneg %p102
        %s287 = sand.u32 %s21, 1
        %s288 = scalar_lea.sflag [#allocation3], %s287
        %s289 = sand.u32 %s118, 1
        %s290 = smul.addr %s289, 81
        %s291 = scalar_lea.vmem [#allocation8], %s290
        %p292 = pneg %p131
        %p293 = pneg %p128
        %p294 = pneg %p157
        %p295 = pneg %p154
        %s296 = sand.u32 %s144, 1
        %s297 = scalar_lea.sflag [#allocation4], %s296
        %s298 = sand.u32 %s144, 1
        %s299 = smul.addr %s298, 648
        %s300 = scalar_lea.vmem [#allocation9], %s299
        %s301 = smul.u32 81, %s21
        %s302 = smul.u32 81, %s21
        %s303 = smul.u32 81, %s21
        %v305 = vld [vmem:[#allocation2] sm:$0xff]
        %v306 = vld [vmem:[#allocation2 + $0x8] sm:$0xff]
        %v307 = vld [vmem:[%s1] sm:$0xff]
        %v308 = vld [vmem:[%s1 + $0x8] sm:$0xff]
        %v309 = vld [vmem:[%s1 + $0x10] sm:$0xff]
        %v310 = vld [vmem:[%s1 + $0x18] sm:$0xff]
        %v311 = vld [vmem:[%s1 + $0x20] sm:$0xff]
        %v312 = vld [vmem:[%s1 + $0x28] sm:$0xff]
        %v313 = vld [vmem:[%s1 + $0x30] sm:$0xff]
        %v314 = vld [vmem:[%s1 + $0x38] sm:$0xff]
        %v315 = vld [vmem:[%s1 + $0x40] sm:$0xff]
        %v316 = vld [vmem:[%s1 + $0x48] sm:$0xff]
        %v317 = vld [vmem:[%s1 + $0x50] sm:$0xff]
        %v318 = vld [vmem:[%s1 + $0x58] sm:$0xff]
        %v319 = vld [vmem:[%s1 + $0x60] sm:$0xff]
        %v320 = vld [vmem:[%s1 + $0x68] sm:$0xff]
        %v321 = vld [vmem:[%s1 + $0x70] sm:$0xff]
        %v322 = vld [vmem:[%s1 + $0x78] sm:$0xff]
        %v323 = vld [vmem:[%s1 + $0x80] sm:$0xff]
        %v324 = vld [vmem:[%s1 + $0x88] sm:$0xff]
        %v325 = vld [vmem:[%s1 + $0x90] sm:$0xff]
        %v326 = vld [vmem:[%s1 + $0x98] sm:$0xff]
        %v327 = vld [vmem:[%s1 + $0xa0] sm:$0xff]
        %v328 = vld [vmem:[%s1 + $0xa8] sm:$0xff]
        %v329 = vld [vmem:[%s1 + $0xb0] sm:$0xff]
        %v330 = vld [vmem:[%s1 + $0xb8] sm:$0xff]
        %v331 = vld [vmem:[%s1 + $0xc0] sm:$0xff]
        %v332 = vld [vmem:[%s1 + $0xc8] sm:$0x7f]
        %v333 = vld [vmem:[#allocation5] sm:$0x1]
        %v335 = vlaneseq
        %v336 = vshrl.u32 %v335, 7
        %v337 = vsub.s32 0, %v336
        %v338 = vrot.slane %v333, %v337
        %vm340 = vcmask 646144
        %v342 = vsel %vm340, %v306, 0
        %vm344 = vcmask 1046528
        %v346 = vsel %vm344, %v332, 0
        %348 = vmatprep.subr.mxu0 0.0
        %349 = vmatpush1.msra.mxu0 %v322
        %350 = vmatprep.subr.mxu0 0.0
        %351 = vmatpush1.msra.mxu0 %v321
        %352 = vmatprep.subr.mxu0 0.0
        %353 = vmatpush1.msra.mxu0 %v320
        %354 = vmatprep.subr.mxu0 0.0
        %355 = vmatpush1.msra.mxu0 %v319
        %356 = vmatprep.subr.mxu0 0.0
        %357 = vmatpush1.msra.mxu0 %v318
        %358 = vmatprep.subr.mxu0 0.0
        %359 = vmatpush1.msra.mxu0 %v317
        %360 = vmatprep.subr.mxu0 0.0
        %361 = vmatpush1.msra.mxu0 %v316
        %362 = vmatprep.subr.mxu0 0.0
        %363 = vmatpush1.msra.mxu0 %v315
        %364 = vmatprep.subr.mxu0 0.0
        %365 = vmatpush1.msra.mxu0 %v314
        %366 = vmatprep.subr.mxu0 0.0
        %367 = vmatpush1.msra.mxu0 %v313
        %368 = vmatprep.subr.mxu0 0.0
        %369 = vmatpush1.msra.mxu0 %v312
        %370 = vmatprep.subr.mxu0 0.0
        %371 = vmatpush1.msra.mxu0 %v311
        %372 = vmatprep.subr.mxu0 0.0
        %373 = vmatpush1.msra.mxu0 %v310
        %374 = vmatprep.subr.mxu0 0.0
        %375 = vmatpush1.msra.mxu0 %v309
        %376 = vmatprep.subr.mxu0 0.0
        %377 = vmatpush1.msra.mxu0 %v308
        %378 = vmatprep.subr.mxu0 0.0
        %379 = vmatpush1.msra.mxu0 %v307
        %380 = vmatprep.subr.mxu0 0.0
        %381 = vmatpush2.msra.mxu0 0.0
        %382 = vmatprep.subr.mxu0 0.0
        %383 = vmatpush2.msra.mxu0 0.0
        %384 = vmatprep.subr.mxu0 0.0
        %385 = vmatpush2.msra.mxu0 0.0
        %386 = vmatprep.subr.mxu0 0.0
        %387 = vmatpush2.msra.mxu0 0.0
        %388 = vmatprep.subr.mxu0 0.0
        %389 = vmatpush2.msra.mxu0 0.0
        %390 = vmatprep.subr.mxu0 0.0
        %391 = vmatpush2.msra.mxu0 0.0
        %392 = vmatprep.subr.mxu0 0.0
        %393 = vmatpush2.msra.mxu0 %v346
        %394 = vmatprep.subr.mxu0 0.0
        %395 = vmatpush2.msra.mxu0 %v331
        %396 = vmatprep.subr.mxu0 0.0
        %397 = vmatpush2.msra.mxu0 %v330
        %398 = vmatprep.subr.mxu0 0.0
        %399 = vmatpush2.msra.mxu0 %v329
        %400 = vmatprep.subr.mxu0 0.0
        %401 = vmatpush2.msra.mxu0 %v328
        %402 = vmatprep.subr.mxu0 0.0
        %403 = vmatpush2.msra.mxu0 %v327
        %404 = vmatprep.subr.mxu0 0.0
        %405 = vmatpush2.msra.mxu0 %v326
        %406 = vmatprep.subr.mxu0 0.0
        %407 = vmatpush2.msra.mxu0 %v325
        %408 = vmatprep.subr.mxu0 0.0
        %409 = vmatpush2.msra.mxu0 %v324
        %410 = vmatprep.subr.mxu0 0.0
        %411 = vmatpush2.msra.mxu0 %v323
        %412 = vmatprep.mubr.f32.mxu0 %v342
        %413 = vmatmul.mubr.f32.gmra.mxu0 %v305
        %v414 = vpop.f32.mrf.mxu0
        %v415 = vadd.f32 %v338, %v414
        %v416 = vpop.f32.mrf.mxu0
        %417 = vdwg.mxu0
        %vm418 = vcmp.gt.f32.partialorder %v415, 0.0
        %v419 = vmul.f32 %v415, 0.01
        %v420 = vsel %vm418, %v415, %v419
        %v421 = vpack.c.bf16 %v420, %v420
        %v422 = vld [vmem:[%s260] sm:$0xff]
        %v423 = vld [vmem:[%s260 + $0x8] sm:$0xff]
        %v424 = vld [vmem:[%s260 + $0x10] sm:$0xff]
        %v425 = vld [vmem:[%s260 + $0x18] sm:$0xff]
        %v426 = vld [vmem:[%s260 + $0x20] sm:$0xff]
        %v427 = vld [vmem:[%s260 + $0x28] sm:$0xff]
        %v428 = vld [vmem:[%s260 + $0x30] sm:$0xff]
        %v429 = vld [vmem:[%s260 + $0x38] sm:$0xff]
        %v430 = vld [vmem:[%s260 + $0x40] sm:$0xff]
        %v431 = vld [vmem:[%s260 + $0x48] sm:$0xff]
        %v432 = vld [vmem:[%s260 + $0x50] sm:$0xff]
        %v433 = vld [vmem:[%s260 + $0x58] sm:$0xff]
        %v434 = vld [vmem:[%s260 + $0x60] sm:$0xff]
        %v435 = vld [vmem:[%s260 + $0x68] sm:$0xff]
        %v436 = vld [vmem:[%s260 + $0x70] sm:$0xff]
        %v437 = vld [vmem:[%s260 + $0x78] sm:$0xff]
        %v438 = vld [vmem:[%s260 + $0x80] sm:$0xff]
        %v439 = vld [vmem:[%s260 + $0x88] sm:$0xff]
        %v440 = vld [vmem:[%s260 + $0x90] sm:$0xff]
        %v441 = vld [vmem:[%s260 + $0x98] sm:$0xff]
        %v442 = vld [vmem:[%s260 + $0xa0] sm:$0xff]
        %v443 = vld [vmem:[%s260 + $0xa8] sm:$0xff]
        %v444 = vld [vmem:[%s260 + $0xb0] sm:$0xff]
        %v445 = vld [vmem:[%s260 + $0xb8] sm:$0xff]
        %v446 = vld [vmem:[%s260 + $0xc0] sm:$0xff]
        %v447 = vld [vmem:[%s260 + $0xc8] sm:$0xff]
        %v448 = vld [vmem:[%s260 + $0xd0] sm:$0xff]
        %v449 = vld [vmem:[%s260 + $0xd8] sm:$0xff]
        %v450 = vld [vmem:[%s260 + $0xe0] sm:$0xff]
        %v451 = vld [vmem:[%s260 + $0xe8] sm:$0xff]
        %v452 = vld [vmem:[%s260 + $0xf0] sm:$0xff]
        %v453 = vld [vmem:[%s260 + $0xf8] sm:$0xff]
        %v454 = vld [vmem:[%s260 + $0x100] sm:$0xff]
        %v455 = vld [vmem:[%s260 + $0x108] sm:$0xff]
        %v456 = vld [vmem:[%s260 + $0x110] sm:$0xff]
        %v457 = vld [vmem:[%s260 + $0x118] sm:$0xff]
        %v458 = vld [vmem:[%s260 + $0x120] sm:$0xff]
        %v459 = vld [vmem:[%s260 + $0x128] sm:$0xff]
        %v460 = vld [vmem:[%s260 + $0x130] sm:$0xff]
        %v461 = vld [vmem:[%s260 + $0x138] sm:$0xff]
        %v462 = vld [vmem:[%s260 + $0x140] sm:$0xf]
        %v463 = vld [vmem:[%s260 + $0x144] sm:$0xff]
        %v464 = vld [vmem:[%s260 + $0x14c] sm:$0xff]
        %v465 = vld [vmem:[%s260 + $0x154] sm:$0xff]
        %v466 = vld [vmem:[%s260 + $0x15c] sm:$0xff]
        %v467 = vld [vmem:[%s260 + $0x164] sm:$0xff]
        %v468 = vld [vmem:[%s260 + $0x16c] sm:$0xff]
        %v469 = vld [vmem:[%s260 + $0x174] sm:$0xff]
        %v470 = vld [vmem:[%s260 + $0x17c] sm:$0xff]
        %v471 = vld [vmem:[%s260 + $0x184] sm:$0xff]
        %v472 = vld [vmem:[%s260 + $0x18c] sm:$0xff]
        %v473 = vld [vmem:[%s260 + $0x194] sm:$0xff]
        %v474 = vld [vmem:[%s260 + $0x19c] sm:$0xff]
        %v475 = vld [vmem:[%s260 + $0x1a4] sm:$0xff]
        %v476 = vld [vmem:[%s260 + $0x1ac] sm:$0xff]
        %v477 = vld [vmem:[%s260 + $0x1b4] sm:$0xff]
        %v478 = vld [vmem:[%s260 + $0x1bc] sm:$0xff]
        %v479 = vld [vmem:[%s260 + $0x1c4] sm:$0xff]
        %v480 = vld [vmem:[%s260 + $0x1cc] sm:$0xff]
        %v481 = vld [vmem:[%s260 + $0x1d4] sm:$0xff]
        %v482 = vld [vmem:[%s260 + $0x1dc] sm:$0xff]
        %v483 = vld [vmem:[%s260 + $0x1e4] sm:$0xff]
        %v484 = vld [vmem:[%s260 + $0x1ec] sm:$0xff]
        %v485 = vld [vmem:[%s260 + $0x1f4] sm:$0xff]
        %v486 = vld [vmem:[%s260 + $0x1fc] sm:$0xff]
        %v487 = vld [vmem:[%s260 + $0x204] sm:$0xff]
        %v488 = vld [vmem:[%s260 + $0x20c] sm:$0xff]
        %v489 = vld [vmem:[%s260 + $0x214] sm:$0xff]
        %v490 = vld [vmem:[%s260 + $0x21c] sm:$0xff]
        %v491 = vld [vmem:[%s260 + $0x224] sm:$0xff]
        %v492 = vld [vmem:[%s260 + $0x22c] sm:$0xff]
        %v493 = vld [vmem:[%s260 + $0x234] sm:$0xff]
        %v494 = vld [vmem:[%s260 + $0x23c] sm:$0xff]
        %v495 = vld [vmem:[%s260 + $0x244] sm:$0xff]
        %v496 = vld [vmem:[%s260 + $0x24c] sm:$0xff]
        %v497 = vld [vmem:[%s260 + $0x254] sm:$0xff]
        %v498 = vld [vmem:[%s260 + $0x25c] sm:$0xff]
        %v499 = vld [vmem:[%s260 + $0x264] sm:$0xff]
        %v500 = vld [vmem:[%s260 + $0x26c] sm:$0xff]
        %v501 = vld [vmem:[%s260 + $0x274] sm:$0xff]
        %v502 = vld [vmem:[%s260 + $0x27c] sm:$0xff]
        %v503 = vld [vmem:[%s260 + $0x284] sm:$0xf]
        %v504 = vld [vmem:[%s260 + $0x288] sm:$0xff]
        %v505 = vld [vmem:[%s260 + $0x290] sm:$0xff]
        %v506 = vld [vmem:[%s260 + $0x298] sm:$0xff]
        %v507 = vld [vmem:[%s260 + $0x2a0] sm:$0xff]
        %v508 = vld [vmem:[%s260 + $0x2a8] sm:$0xff]
        %v509 = vld [vmem:[%s260 + $0x2b0] sm:$0xff]
        %v510 = vld [vmem:[%s260 + $0x2b8] sm:$0xff]
        %v511 = vld [vmem:[%s260 + $0x2c0] sm:$0xff]
        %v512 = vld [vmem:[%s260 + $0x2c8] sm:$0xff]
        %v513 = vld [vmem:[%s260 + $0x2d0] sm:$0xff]
        %v514 = vld [vmem:[%s260 + $0x2d8] sm:$0xff]
        %v515 = vld [vmem:[%s260 + $0x2e0] sm:$0xff]
        %v516 = vld [vmem:[%s260 + $0x2e8] sm:$0xff]
        %v517 = vld [vmem:[%s260 + $0x2f0] sm:$0xff]
        %v518 = vld [vmem:[%s260 + $0x2f8] sm:$0xff]
        %v519 = vld [vmem:[%s260 + $0x300] sm:$0xff]
        %v520 = vld [vmem:[%s260 + $0x308] sm:$0xff]
        %v521 = vld [vmem:[%s260 + $0x310] sm:$0xff]
        %v522 = vld [vmem:[%s260 + $0x318] sm:$0xff]
        %v523 = vld [vmem:[%s260 + $0x320] sm:$0xff]
        %v524 = vld [vmem:[%s260 + $0x328] sm:$0xff]
        %v525 = vld [vmem:[%s260 + $0x330] sm:$0xff]
        %v526 = vld [vmem:[%s260 + $0x338] sm:$0xff]
        %v527 = vld [vmem:[%s260 + $0x340] sm:$0xff]
        %v528 = vld [vmem:[%s260 + $0x348] sm:$0xff]
        %v529 = vld [vmem:[%s260 + $0x350] sm:$0xff]
        %v530 = vld [vmem:[%s260 + $0x358] sm:$0xff]
        %v531 = vld [vmem:[%s260 + $0x360] sm:$0xff]
        %v532 = vld [vmem:[%s260 + $0x368] sm:$0xff]
        %v533 = vld [vmem:[%s260 + $0x370] sm:$0xff]
        %v534 = vld [vmem:[%s260 + $0x378] sm:$0xff]
        %v535 = vld [vmem:[%s260 + $0x380] sm:$0xff]
        %v536 = vld [vmem:[%s260 + $0x388] sm:$0xff]
        %v537 = vld [vmem:[%s260 + $0x390] sm:$0xff]
        %v538 = vld [vmem:[%s260 + $0x398] sm:$0xff]
        %v539 = vld [vmem:[%s260 + $0x3a0] sm:$0xff]
        %v540 = vld [vmem:[%s260 + $0x3a8] sm:$0xff]
        %v541 = vld [vmem:[%s260 + $0x3b0] sm:$0xff]
        %v542 = vld [vmem:[%s260 + $0x3b8] sm:$0xff]
        %v543 = vld [vmem:[%s260 + $0x3c0] sm:$0xff]
        %v544 = vld [vmem:[%s260 + $0x3c8] sm:$0xf]
        %v545 = vld [vmem:[%s260 + $0x3cc] sm:$0xff]
        %v546 = vld [vmem:[%s260 + $0x3d4] sm:$0xff]
        %v547 = vld [vmem:[%s260 + $0x3dc] sm:$0xff]
        %v548 = vld [vmem:[%s260 + $0x3e4] sm:$0xff]
        %v549 = vld [vmem:[%s260 + $0x3ec] sm:$0xff]
        %v550 = vld [vmem:[%s260 + $0x3f4] sm:$0xff]
        %v551 = vld [vmem:[%s260 + $0x3fc] sm:$0xff]
        %v552 = vld [vmem:[%s260 + $0x404] sm:$0xff]
        %v553 = vld [vmem:[%s260 + $0x40c] sm:$0xff]
        %v554 = vld [vmem:[%s260 + $0x414] sm:$0xff]
        %v555 = vld [vmem:[%s260 + $0x41c] sm:$0xff]
        %v556 = vld [vmem:[%s260 + $0x424] sm:$0xff]
        %v557 = vld [vmem:[%s260 + $0x42c] sm:$0xff]
        %v558 = vld [vmem:[%s260 + $0x434] sm:$0xff]
        %v559 = vld [vmem:[%s260 + $0x43c] sm:$0xff]
        %v560 = vld [vmem:[%s260 + $0x444] sm:$0xff]
        %v561 = vld [vmem:[%s260 + $0x44c] sm:$0xff]
        %v562 = vld [vmem:[%s260 + $0x454] sm:$0xff]
        %v563 = vld [vmem:[%s260 + $0x45c] sm:$0xff]
        %v564 = vld [vmem:[%s260 + $0x464] sm:$0xff]
        %v565 = vld [vmem:[%s260 + $0x46c] sm:$0xff]
        %v566 = vld [vmem:[%s260 + $0x474] sm:$0xff]
        %v567 = vld [vmem:[%s260 + $0x47c] sm:$0xff]
        %v568 = vld [vmem:[%s260 + $0x484] sm:$0xff]
        %v569 = vld [vmem:[%s260 + $0x48c] sm:$0xff]
        %v570 = vld [vmem:[%s260 + $0x494] sm:$0xff]
        %v571 = vld [vmem:[%s260 + $0x49c] sm:$0xff]
        %v572 = vld [vmem:[%s260 + $0x4a4] sm:$0xff]
        %v573 = vld [vmem:[%s260 + $0x4ac] sm:$0xff]
        %v574 = vld [vmem:[%s260 + $0x4b4] sm:$0xff]
        %v575 = vld [vmem:[%s260 + $0x4bc] sm:$0xff]
        %v576 = vld [vmem:[%s260 + $0x4c4] sm:$0xff]
        %v577 = vld [vmem:[%s260 + $0x4cc] sm:$0xff]
        %v578 = vld [vmem:[%s260 + $0x4d4] sm:$0xff]
        %v579 = vld [vmem:[%s260 + $0x4dc] sm:$0xff]
        %v580 = vld [vmem:[%s260 + $0x4e4] sm:$0xff]
        %v581 = vld [vmem:[%s260 + $0x4ec] sm:$0xff]
        %v582 = vld [vmem:[%s260 + $0x4f4] sm:$0xff]
        %v583 = vld [vmem:[%s260 + $0x4fc] sm:$0xff]
        %v584 = vld [vmem:[%s260 + $0x504] sm:$0xff]
        %v585 = vld [vmem:[%s260 + $0x50c] sm:$0xf]
        %v586 = vld [vmem:[%s260 + $0x510] sm:$0xff]
        %v587 = vld [vmem:[%s260 + $0x518] sm:$0xff]
        %v588 = vld [vmem:[%s260 + $0x520] sm:$0xff]
        %v589 = vld [vmem:[%s260 + $0x528] sm:$0xff]
        %v590 = vld [vmem:[%s260 + $0x530] sm:$0xff]
        %v591 = vld [vmem:[%s260 + $0x538] sm:$0xff]
        %v592 = vld [vmem:[%s260 + $0x540] sm:$0xff]
        %v593 = vld [vmem:[%s260 + $0x548] sm:$0xff]
        %v594 = vld [vmem:[%s260 + $0x550] sm:$0xff]
        %v595 = vld [vmem:[%s260 + $0x558] sm:$0xff]
        %v596 = vld [vmem:[%s260 + $0x560] sm:$0xff]
        %v597 = vld [vmem:[%s260 + $0x568] sm:$0xff]
        %v598 = vld [vmem:[%s260 + $0x570] sm:$0xff]
        %v599 = vld [vmem:[%s260 + $0x578] sm:$0xff]
        %v600 = vld [vmem:[%s260 + $0x580] sm:$0xff]
        %v601 = vld [vmem:[%s260 + $0x588] sm:$0xff]
        %v602 = vld [vmem:[%s260 + $0x590] sm:$0xff]
        %v603 = vld [vmem:[%s260 + $0x598] sm:$0xff]
        %v604 = vld [vmem:[%s260 + $0x5a0] sm:$0xff]
        %v605 = vld [vmem:[%s260 + $0x5a8] sm:$0xff]
        %v606 = vld [vmem:[%s260 + $0x5b0] sm:$0xff]
        %v607 = vld [vmem:[%s260 + $0x5b8] sm:$0xff]
        %v608 = vld [vmem:[%s260 + $0x5c0] sm:$0xff]
        %v609 = vld [vmem:[%s260 + $0x5c8] sm:$0xff]
        %v610 = vld [vmem:[%s260 + $0x5d0] sm:$0xff]
        %v611 = vld [vmem:[%s260 + $0x5d8] sm:$0xff]
        %v612 = vld [vmem:[%s260 + $0x5e0] sm:$0xff]
        %v613 = vld [vmem:[%s260 + $0x5e8] sm:$0xff]
        %v614 = vld [vmem:[%s260 + $0x5f0] sm:$0xff]
        %v615 = vld [vmem:[%s260 + $0x5f8] sm:$0xff]
        %v616 = vld [vmem:[%s260 + $0x600] sm:$0xff]
        %v617 = vld [vmem:[%s260 + $0x608] sm:$0xff]
        %v618 = vld [vmem:[%s260 + $0x610] sm:$0xff]
        %v619 = vld [vmem:[%s260 + $0x618] sm:$0xff]
        %v620 = vld [vmem:[%s260 + $0x620] sm:$0xff]
        %v621 = vld [vmem:[%s260 + $0x628] sm:$0xff]
        %v622 = vld [vmem:[%s260 + $0x630] sm:$0xff]
        %v623 = vld [vmem:[%s260 + $0x638] sm:$0xff]
        %v624 = vld [vmem:[%s260 + $0x640] sm:$0xff]
        %v625 = vld [vmem:[%s260 + $0x648] sm:$0xff]
        %v626 = vld [vmem:[%s260 + $0x650] sm:$0xf]
        %v627 = vld [vmem:[%s260 + $0x654] sm:$0xff]
        %v628 = vld [vmem:[%s260 + $0x65c] sm:$0xff]
        %v629 = vld [vmem:[%s260 + $0x664] sm:$0xff]
        %v630 = vld [vmem:[%s260 + $0x66c] sm:$0xff]
        %v631 = vld [vmem:[%s260 + $0x674] sm:$0xff]
        %v632 = vld [vmem:[%s260 + $0x67c] sm:$0xff]
        %v633 = vld [vmem:[%s260 + $0x684] sm:$0xff]
        %v634 = vld [vmem:[%s260 + $0x68c] sm:$0xff]
        %v635 = vld [vmem:[%s260 + $0x694] sm:$0xff]
        %v636 = vld [vmem:[%s260 + $0x69c] sm:$0xff]
        %v637 = vld [vmem:[%s260 + $0x6a4] sm:$0xff]
        %v638 = vld [vmem:[%s260 + $0x6ac] sm:$0xff]
        %v639 = vld [vmem:[%s260 + $0x6b4] sm:$0xff]
        %v640 = vld [vmem:[%s260 + $0x6bc] sm:$0xff]
        %v641 = vld [vmem:[%s260 + $0x6c4] sm:$0xff]
        %v642 = vld [vmem:[%s260 + $0x6cc] sm:$0xff]
        %v643 = vld [vmem:[%s260 + $0x6d4] sm:$0xff]
        %v644 = vld [vmem:[%s260 + $0x6dc] sm:$0xff]
        %v645 = vld [vmem:[%s260 + $0x6e4] sm:$0xff]
        %v646 = vld [vmem:[%s260 + $0x6ec] sm:$0xff]
        %v647 = vld [vmem:[%s260 + $0x6f4] sm:$0xff]
        %v648 = vld [vmem:[%s260 + $0x6fc] sm:$0xff]
        %v649 = vld [vmem:[%s260 + $0x704] sm:$0xff]
        %v650 = vld [vmem:[%s260 + $0x70c] sm:$0xff]
        %v651 = vld [vmem:[%s260 + $0x714] sm:$0xff]
        %v652 = vld [vmem:[%s260 + $0x71c] sm:$0xff]
        %v653 = vld [vmem:[%s260 + $0x724] sm:$0xff]
        %v654 = vld [vmem:[%s260 + $0x72c] sm:$0xff]
        %v655 = vld [vmem:[%s260 + $0x734] sm:$0xff]
        %v656 = vld [vmem:[%s260 + $0x73c] sm:$0xff]
        %v657 = vld [vmem:[%s260 + $0x744] sm:$0xff]
        %v658 = vld [vmem:[%s260 + $0x74c] sm:$0xff]
        %v659 = vld [vmem:[%s260 + $0x754] sm:$0xff]
        %v660 = vld [vmem:[%s260 + $0x75c] sm:$0xff]
        %v661 = vld [vmem:[%s260 + $0x764] sm:$0xff]
        %v662 = vld [vmem:[%s260 + $0x76c] sm:$0xff]
        %v663 = vld [vmem:[%s260 + $0x774] sm:$0xff]
        %v664 = vld [vmem:[%s260 + $0x77c] sm:$0xff]
        %v665 = vld [vmem:[%s260 + $0x784] sm:$0xff]
        %v666 = vld [vmem:[%s260 + $0x78c] sm:$0xff]
        %v667 = vld [vmem:[%s260 + $0x794] sm:$0xf]
        %v668 = vld [vmem:[%s260 + $0x798] sm:$0xff]
        %v669 = vld [vmem:[%s260 + $0x7a0] sm:$0xff]
        %v670 = vld [vmem:[%s260 + $0x7a8] sm:$0xff]
        %v671 = vld [vmem:[%s260 + $0x7b0] sm:$0xff]
        %v672 = vld [vmem:[%s260 + $0x7b8] sm:$0xff]
        %v673 = vld [vmem:[%s260 + $0x7c0] sm:$0xff]
        %v674 = vld [vmem:[%s260 + $0x7c8] sm:$0xff]
        %v675 = vld [vmem:[%s260 + $0x7d0] sm:$0xff]
        %v676 = vld [vmem:[%s260 + $0x7d8] sm:$0xff]
        %v677 = vld [vmem:[%s260 + $0x7e0] sm:$0xff]
        %v678 = vld [vmem:[%s260 + $0x7e8] sm:$0xff]
        %v679 = vld [vmem:[%s260 + $0x7f0] sm:$0xff]
        %v680 = vld [vmem:[%s260 + $0x7f8] sm:$0xff]
        %v681 = vld [vmem:[%s260 + $0x800] sm:$0xff]
        %v682 = vld [vmem:[%s260 + $0x808] sm:$0xff]
        %v683 = vld [vmem:[%s260 + $0x810] sm:$0xff]
        %v684 = vld [vmem:[%s260 + $0x818] sm:$0xff]
        %v685 = vld [vmem:[%s260 + $0x820] sm:$0xff]
        %v686 = vld [vmem:[%s260 + $0x828] sm:$0xff]
        %v687 = vld [vmem:[%s260 + $0x830] sm:$0xff]
        %v688 = vld [vmem:[%s260 + $0x838] sm:$0xff]
        %v689 = vld [vmem:[%s260 + $0x840] sm:$0xff]
        %v690 = vld [vmem:[%s260 + $0x848] sm:$0xff]
        %v691 = vld [vmem:[%s260 + $0x850] sm:$0xff]
        %v692 = vld [vmem:[%s260 + $0x858] sm:$0xff]
        %v693 = vld [vmem:[%s260 + $0x860] sm:$0xff]
        %v694 = vld [vmem:[%s260 + $0x868] sm:$0xff]
        %v695 = vld [vmem:[%s260 + $0x870] sm:$0xff]
        %v696 = vld [vmem:[%s260 + $0x878] sm:$0xff]
        %v697 = vld [vmem:[%s260 + $0x880] sm:$0xff]
        %v698 = vld [vmem:[%s260 + $0x888] sm:$0xff]
        %v699 = vld [vmem:[%s260 + $0x890] sm:$0xff]
        %v700 = vld [vmem:[%s260 + $0x898] sm:$0xff]
        %v701 = vld [vmem:[%s260 + $0x8a0] sm:$0xff]
        %v702 = vld [vmem:[%s260 + $0x8a8] sm:$0xff]
        %v703 = vld [vmem:[%s260 + $0x8b0] sm:$0xff]
        %v704 = vld [vmem:[%s260 + $0x8b8] sm:$0xff]
        %v705 = vld [vmem:[%s260 + $0x8c0] sm:$0xff]
        %v706 = vld [vmem:[%s260 + $0x8c8] sm:$0xff]
        %v707 = vld [vmem:[%s260 + $0x8d0] sm:$0xff]
        %v708 = vld [vmem:[%s260 + $0x8d8] sm:$0xf]
        %v709 = vld [vmem:[%s260 + $0x8dc] sm:$0xff]
        %v710 = vld [vmem:[%s260 + $0x8e4] sm:$0xff]
        %v711 = vld [vmem:[%s260 + $0x8ec] sm:$0xff]
        %v712 = vld [vmem:[%s260 + $0x8f4] sm:$0xff]
        %v713 = vld [vmem:[%s260 + $0x8fc] sm:$0xff]
        %v714 = vld [vmem:[%s260 + $0x904] sm:$0xff]
        %v715 = vld [vmem:[%s260 + $0x90c] sm:$0xff]
        %v716 = vld [vmem:[%s260 + $0x914] sm:$0xff]
        %v717 = vld [vmem:[%s260 + $0x91c] sm:$0xff]
        %v718 = vld [vmem:[%s260 + $0x924] sm:$0xff]
        %v719 = vld [vmem:[%s260 + $0x92c] sm:$0xff]
        %v720 = vld [vmem:[%s260 + $0x934] sm:$0xff]
        %v721 = vld [vmem:[%s260 + $0x93c] sm:$0xff]
        %v722 = vld [vmem:[%s260 + $0x944] sm:$0xff]
        %v723 = vld [vmem:[%s260 + $0x94c] sm:$0xff]
        %v724 = vld [vmem:[%s260 + $0x954] sm:$0xff]
        %v725 = vld [vmem:[%s260 + $0x95c] sm:$0xff]
        %v726 = vld [vmem:[%s260 + $0x964] sm:$0xff]
        %v727 = vld [vmem:[%s260 + $0x96c] sm:$0xff]
        %v728 = vld [vmem:[%s260 + $0x974] sm:$0xff]
        %v729 = vld [vmem:[%s260 + $0x97c] sm:$0xff]
        %v730 = vld [vmem:[%s260 + $0x984] sm:$0xff]
        %v731 = vld [vmem:[%s260 + $0x98c] sm:$0xff]
        %v732 = vld [vmem:[%s260 + $0x994] sm:$0xff]
        %v733 = vld [vmem:[%s260 + $0x99c] sm:$0xff]
        %v734 = vld [vmem:[%s260 + $0x9a4] sm:$0xff]
        %v735 = vld [vmem:[%s260 + $0x9ac] sm:$0xff]
        %v736 = vld [vmem:[%s260 + $0x9b4] sm:$0xff]
        %v737 = vld [vmem:[%s260 + $0x9bc] sm:$0xff]
        %v738 = vld [vmem:[%s260 + $0x9c4] sm:$0xff]
        %v739 = vld [vmem:[%s260 + $0x9cc] sm:$0xff]
        %v740 = vld [vmem:[%s260 + $0x9d4] sm:$0xff]
        %v741 = vld [vmem:[%s260 + $0x9dc] sm:$0xff]
        %v742 = vld [vmem:[%s260 + $0x9e4] sm:$0xff]
        %v743 = vld [vmem:[%s260 + $0x9ec] sm:$0xff]
        %v744 = vld [vmem:[%s260 + $0x9f4] sm:$0xff]
        %v745 = vld [vmem:[%s260 + $0x9fc] sm:$0xff]
        %v746 = vld [vmem:[%s260 + $0xa04] sm:$0xff]
        %v747 = vld [vmem:[%s260 + $0xa0c] sm:$0xff]
        %v748 = vld [vmem:[%s260 + $0xa14] sm:$0xff]
        %v749 = vld [vmem:[%s260 + $0xa1c] sm:$0xf]
        %v750 = vld [vmem:[%s260 + $0xa20] sm:$0x77]
        %v751 = vld [vmem:[%s260 + $0xa28] sm:$0x77]
        %v752 = vld [vmem:[%s260 + $0xa30] sm:$0x77]
        %v753 = vld [vmem:[%s260 + $0xa38] sm:$0x77]
        %v754 = vld [vmem:[%s260 + $0xa40] sm:$0x77]
        %v755 = vld [vmem:[%s260 + $0xa48] sm:$0x77]
        %v756 = vld [vmem:[%s260 + $0xa50] sm:$0x77]
        %v757 = vld [vmem:[%s260 + $0xa58] sm:$0x77]
        %v758 = vld [vmem:[%s260 + $0xa60] sm:$0x77]
        %v759 = vld [vmem:[%s260 + $0xa68] sm:$0x77]
        %v760 = vld [vmem:[%s260 + $0xa70] sm:$0x77]
        %v761 = vld [vmem:[%s260 + $0xa78] sm:$0x77]
        %v762 = vld [vmem:[%s260 + $0xa80] sm:$0x77]
        %v763 = vld [vmem:[%s260 + $0xa88] sm:$0x77]
        %v764 = vld [vmem:[%s260 + $0xa90] sm:$0x77]
        %v765 = vld [vmem:[%s260 + $0xa98] sm:$0x77]
        %v766 = vld [vmem:[%s260 + $0xaa0] sm:$0x77]
        %v767 = vld [vmem:[%s260 + $0xaa8] sm:$0x77]
        %v768 = vld [vmem:[%s260 + $0xab0] sm:$0x77]
        %v769 = vld [vmem:[%s260 + $0xab8] sm:$0x77]
        %v770 = vld [vmem:[%s260 + $0xac0] sm:$0x77]
        %v771 = vld [vmem:[%s260 + $0xac8] sm:$0x77]
        %v772 = vld [vmem:[%s260 + $0xad0] sm:$0x77]
        %v773 = vld [vmem:[%s260 + $0xad8] sm:$0x77]
        %v774 = vld [vmem:[%s260 + $0xae0] sm:$0x77]
        %v775 = vld [vmem:[%s260 + $0xae8] sm:$0x77]
        %v776 = vld [vmem:[%s260 + $0xaf0] sm:$0x77]
        %v777 = vld [vmem:[%s260 + $0xaf8] sm:$0x77]
        %v778 = vld [vmem:[%s260 + $0xb00] sm:$0x77]
        %v779 = vld [vmem:[%s260 + $0xb08] sm:$0x77]
        %v780 = vld [vmem:[%s260 + $0xb10] sm:$0x77]
        %v781 = vld [vmem:[%s260 + $0xb18] sm:$0x77]
        %v782 = vld [vmem:[%s260 + $0xb20] sm:$0x77]
        %v783 = vld [vmem:[%s260 + $0xb28] sm:$0x77]
        %v784 = vld [vmem:[%s260 + $0xb30] sm:$0x77]
        %v785 = vld [vmem:[%s260 + $0xb38] sm:$0x77]
        %v786 = vld [vmem:[%s260 + $0xb40] sm:$0x77]
        %v787 = vld [vmem:[%s260 + $0xb48] sm:$0x77]
        %v788 = vld [vmem:[%s260 + $0xb50] sm:$0x77]
        %v789 = vld [vmem:[%s260 + $0xb58] sm:$0x77]
        %v790 = vld [vmem:[%s260 + $0xb60] sm:$0x7]
        %v791 = vld [vmem:[%s269] sm:$0xff]
        %v792 = vld [vmem:[%s269 + $0x8] sm:$0xff]
        %v793 = vld [vmem:[%s269 + $0x10] sm:$0xff]
        %v794 = vld [vmem:[%s269 + $0x18] sm:$0xff]
        %v795 = vld [vmem:[%s269 + $0x20] sm:$0xff]
        %v796 = vld [vmem:[%s269 + $0x28] sm:$0xff]
        %v797 = vld [vmem:[%s269 + $0x30] sm:$0xff]
        %v798 = vld [vmem:[%s269 + $0x38] sm:$0xff]
        %v799 = vld [vmem:[%s269 + $0x40] sm:$0xff]
        %v800 = vld [vmem:[%s269 + $0x48] sm:$0xff]
        %v801 = vld [vmem:[%s269 + $0x50] sm:$0x1]
        %v813 = vlaneseq
        %v814 = vshrl.u32 %v813, 7
        %v815 = vsub.s32 0, %v814
        %v816 = vrot.slane %v791, %v815
        %v817 = vlaneseq
        %v818 = vshrl.u32 %v817, 7
        %v819 = vsub.s32 1, %v818
        %v820 = vrot.slane %v791, %v819
        %v821 = vlaneseq
        %v822 = vshrl.u32 %v821, 7
        %v823 = vsub.s32 2, %v822
        %v824 = vrot.slane %v791, %v823
        %v825 = vlaneseq
        %v826 = vshrl.u32 %v825, 7
        %v827 = vsub.s32 3, %v826
        %v828 = vrot.slane %v791, %v827
        %v829 = vlaneseq
        %v830 = vshrl.u32 %v829, 7
        %v831 = vsub.s32 4, %v830
        %v832 = vrot.slane %v791, %v831
        %v833 = vlaneseq
        %v834 = vshrl.u32 %v833, 7
        %v835 = vsub.s32 5, %v834
        %v836 = vrot.slane %v791, %v835
        %v837 = vlaneseq
        %v838 = vshrl.u32 %v837, 7
        %v839 = vsub.s32 6, %v838
        %v840 = vrot.slane %v791, %v839
        %v841 = vlaneseq
        %v842 = vshrl.u32 %v841, 7
        %v843 = vsub.s32 7, %v842
        %v844 = vrot.slane %v791, %v843
        %v845 = vlaneseq
        %v846 = vshrl.u32 %v845, 7
        %v847 = vsub.s32 0, %v846
        %v848 = vrot.slane %v792, %v847
        %v849 = vlaneseq
        %v850 = vshrl.u32 %v849, 7
        %v851 = vsub.s32 1, %v850
        %v852 = vrot.slane %v792, %v851
        %v853 = vlaneseq
        %v854 = vshrl.u32 %v853, 7
        %v855 = vsub.s32 2, %v854
        %v856 = vrot.slane %v792, %v855
        %v857 = vlaneseq
        %v858 = vshrl.u32 %v857, 7
        %v859 = vsub.s32 3, %v858
        %v860 = vrot.slane %v792, %v859
        %v861 = vlaneseq
        %v862 = vshrl.u32 %v861, 7
        %v863 = vsub.s32 4, %v862
        %v864 = vrot.slane %v792, %v863
        %v865 = vlaneseq
        %v866 = vshrl.u32 %v865, 7
        %v867 = vsub.s32 5, %v866
        %v868 = vrot.slane %v792, %v867
        %v869 = vlaneseq
        %v870 = vshrl.u32 %v869, 7
        %v871 = vsub.s32 6, %v870
        %v872 = vrot.slane %v792, %v871
        %v873 = vlaneseq
        %v874 = vshrl.u32 %v873, 7
        %v875 = vsub.s32 7, %v874
        %v876 = vrot.slane %v792, %v875
        %v877 = vlaneseq
        %v878 = vshrl.u32 %v877, 7
        %v879 = vsub.s32 0, %v878
        %v880 = vrot.slane %v793, %v879
        %v881 = vlaneseq
        %v882 = vshrl.u32 %v881, 7
        %v883 = vsub.s32 1, %v882
        %v884 = vrot.slane %v793, %v883
        %v885 = vlaneseq
        %v886 = vshrl.u32 %v885, 7
        %v887 = vsub.s32 2, %v886
        %v888 = vrot.slane %v793, %v887
        %v889 = vlaneseq
        %v890 = vshrl.u32 %v889, 7
        %v891 = vsub.s32 3, %v890
        %v892 = vrot.slane %v793, %v891
        %v893 = vlaneseq
        %v894 = vshrl.u32 %v893, 7
        %v895 = vsub.s32 4, %v894
        %v896 = vrot.slane %v793, %v895
        %v897 = vlaneseq
        %v898 = vshrl.u32 %v897, 7
        %v899 = vsub.s32 5, %v898
        %v900 = vrot.slane %v793, %v899
        %v901 = vlaneseq
        %v902 = vshrl.u32 %v901, 7
        %v903 = vsub.s32 6, %v902
        %v904 = vrot.slane %v793, %v903
        %v905 = vlaneseq
        %v906 = vshrl.u32 %v905, 7
        %v907 = vsub.s32 7, %v906
        %v908 = vrot.slane %v793, %v907
        %v909 = vlaneseq
        %v910 = vshrl.u32 %v909, 7
        %v911 = vsub.s32 0, %v910
        %v912 = vrot.slane %v794, %v911
        %v913 = vlaneseq
        %v914 = vshrl.u32 %v913, 7
        %v915 = vsub.s32 1, %v914
        %v916 = vrot.slane %v794, %v915
        %v917 = vlaneseq
        %v918 = vshrl.u32 %v917, 7
        %v919 = vsub.s32 2, %v918
        %v920 = vrot.slane %v794, %v919
        %v921 = vlaneseq
        %v922 = vshrl.u32 %v921, 7
        %v923 = vsub.s32 3, %v922
        %v924 = vrot.slane %v794, %v923
        %v925 = vlaneseq
        %v926 = vshrl.u32 %v925, 7
        %v927 = vsub.s32 4, %v926
        %v928 = vrot.slane %v794, %v927
        %v929 = vlaneseq
        %v930 = vshrl.u32 %v929, 7
        %v931 = vsub.s32 5, %v930
        %v932 = vrot.slane %v794, %v931
        %v933 = vlaneseq
        %v934 = vshrl.u32 %v933, 7
        %v935 = vsub.s32 6, %v934
        %v936 = vrot.slane %v794, %v935
        %v937 = vlaneseq
        %v938 = vshrl.u32 %v937, 7
        %v939 = vsub.s32 7, %v938
        %v940 = vrot.slane %v794, %v939
        %v941 = vlaneseq
        %v942 = vshrl.u32 %v941, 7
        %v943 = vsub.s32 0, %v942
        %v944 = vrot.slane %v795, %v943
        %v945 = vlaneseq
        %v946 = vshrl.u32 %v945, 7
        %v947 = vsub.s32 1, %v946
        %v948 = vrot.slane %v795, %v947
        %v949 = vlaneseq
        %v950 = vshrl.u32 %v949, 7
        %v951 = vsub.s32 2, %v950
        %v952 = vrot.slane %v795, %v951
        %v953 = vlaneseq
        %v954 = vshrl.u32 %v953, 7
        %v955 = vsub.s32 3, %v954
        %v956 = vrot.slane %v795, %v955
        %v957 = vlaneseq
        %v958 = vshrl.u32 %v957, 7
        %v959 = vsub.s32 4, %v958
        %v960 = vrot.slane %v795, %v959
        %v961 = vlaneseq
        %v962 = vshrl.u32 %v961, 7
        %v963 = vsub.s32 5, %v962
        %v964 = vrot.slane %v795, %v963
        %v965 = vlaneseq
        %v966 = vshrl.u32 %v965, 7
        %v967 = vsub.s32 6, %v966
        %v968 = vrot.slane %v795, %v967
        %v969 = vlaneseq
        %v970 = vshrl.u32 %v969, 7
        %v971 = vsub.s32 7, %v970
        %v972 = vrot.slane %v795, %v971
        %v973 = vlaneseq
        %v974 = vshrl.u32 %v973, 7
        %v975 = vsub.s32 0, %v974
        %v976 = vrot.slane %v796, %v975
        %v977 = vlaneseq
        %v978 = vshrl.u32 %v977, 7
        %v979 = vsub.s32 1, %v978
        %v980 = vrot.slane %v796, %v979
        %v981 = vlaneseq
        %v982 = vshrl.u32 %v981, 7
        %v983 = vsub.s32 2, %v982
        %v984 = vrot.slane %v796, %v983
        %v985 = vlaneseq
        %v986 = vshrl.u32 %v985, 7
        %v987 = vsub.s32 3, %v986
        %v988 = vrot.slane %v796, %v987
        %v989 = vlaneseq
        %v990 = vshrl.u32 %v989, 7
        %v991 = vsub.s32 4, %v990
        %v992 = vrot.slane %v796, %v991
        %v993 = vlaneseq
        %v994 = vshrl.u32 %v993, 7
        %v995 = vsub.s32 5, %v994
        %v996 = vrot.slane %v796, %v995
        %v997 = vlaneseq
        %v998 = vshrl.u32 %v997, 7
        %v999 = vsub.s32 6, %v998
        %v1000 = vrot.slane %v796, %v999
        %v1001 = vlaneseq
        %v1002 = vshrl.u32 %v1001, 7
        %v1003 = vsub.s32 7, %v1002
        %v1004 = vrot.slane %v796, %v1003
        %v1005 = vlaneseq
        %v1006 = vshrl.u32 %v1005, 7
        %v1007 = vsub.s32 0, %v1006
        %v1008 = vrot.slane %v797, %v1007
        %v1009 = vlaneseq
        %v1010 = vshrl.u32 %v1009, 7
        %v1011 = vsub.s32 1, %v1010
        %v1012 = vrot.slane %v797, %v1011
        %v1013 = vlaneseq
        %v1014 = vshrl.u32 %v1013, 7
        %v1015 = vsub.s32 2, %v1014
        %v1016 = vrot.slane %v797, %v1015
        %v1017 = vlaneseq
        %v1018 = vshrl.u32 %v1017, 7
        %v1019 = vsub.s32 3, %v1018
        %v1020 = vrot.slane %v797, %v1019
        %v1021 = vlaneseq
        %v1022 = vshrl.u32 %v1021, 7
        %v1023 = vsub.s32 4, %v1022
        %v1024 = vrot.slane %v797, %v1023
        %v1025 = vlaneseq
        %v1026 = vshrl.u32 %v1025, 7
        %v1027 = vsub.s32 5, %v1026
        %v1028 = vrot.slane %v797, %v1027
        %v1029 = vlaneseq
        %v1030 = vshrl.u32 %v1029, 7
        %v1031 = vsub.s32 6, %v1030
        %v1032 = vrot.slane %v797, %v1031
        %v1033 = vlaneseq
        %v1034 = vshrl.u32 %v1033, 7
        %v1035 = vsub.s32 7, %v1034
        %v1036 = vrot.slane %v797, %v1035
        %v1037 = vlaneseq
        %v1038 = vshrl.u32 %v1037, 7
        %v1039 = vsub.s32 0, %v1038
        %v1040 = vrot.slane %v798, %v1039
        %v1041 = vlaneseq
        %v1042 = vshrl.u32 %v1041, 7
        %v1043 = vsub.s32 1, %v1042
        %v1044 = vrot.slane %v798, %v1043
        %v1045 = vlaneseq
        %v1046 = vshrl.u32 %v1045, 7
        %v1047 = vsub.s32 2, %v1046
        %v1048 = vrot.slane %v798, %v1047
        %v1049 = vlaneseq
        %v1050 = vshrl.u32 %v1049, 7
        %v1051 = vsub.s32 3, %v1050
        %v1052 = vrot.slane %v798, %v1051
        %v1053 = vlaneseq
        %v1054 = vshrl.u32 %v1053, 7
        %v1055 = vsub.s32 4, %v1054
        %v1056 = vrot.slane %v798, %v1055
        %v1057 = vlaneseq
        %v1058 = vshrl.u32 %v1057, 7
        %v1059 = vsub.s32 5, %v1058
        %v1060 = vrot.slane %v798, %v1059
        %v1061 = vlaneseq
        %v1062 = vshrl.u32 %v1061, 7
        %v1063 = vsub.s32 6, %v1062
        %v1064 = vrot.slane %v798, %v1063
        %v1065 = vlaneseq
        %v1066 = vshrl.u32 %v1065, 7
        %v1067 = vsub.s32 7, %v1066
        %v1068 = vrot.slane %v798, %v1067
        %v1069 = vlaneseq
        %v1070 = vshrl.u32 %v1069, 7
        %v1071 = vsub.s32 0, %v1070
        %v1072 = vrot.slane %v799, %v1071
        %v1073 = vlaneseq
        %v1074 = vshrl.u32 %v1073, 7
        %v1075 = vsub.s32 1, %v1074
        %v1076 = vrot.slane %v799, %v1075
        %v1077 = vlaneseq
        %v1078 = vshrl.u32 %v1077, 7
        %v1079 = vsub.s32 2, %v1078
        %v1080 = vrot.slane %v799, %v1079
        %v1081 = vlaneseq
        %v1082 = vshrl.u32 %v1081, 7
        %v1083 = vsub.s32 3, %v1082
        %v1084 = vrot.slane %v799, %v1083
        %v1085 = vlaneseq
        %v1086 = vshrl.u32 %v1085, 7
        %v1087 = vsub.s32 4, %v1086
        %v1088 = vrot.slane %v799, %v1087
        %v1089 = vlaneseq
        %v1090 = vshrl.u32 %v1089, 7
        %v1091 = vsub.s32 5, %v1090
        %v1092 = vrot.slane %v799, %v1091
        %v1093 = vlaneseq
        %v1094 = vshrl.u32 %v1093, 7
        %v1095 = vsub.s32 6, %v1094
        %v1096 = vrot.slane %v799, %v1095
        %v1097 = vlaneseq
        %v1098 = vshrl.u32 %v1097, 7
        %v1099 = vsub.s32 7, %v1098
        %v1100 = vrot.slane %v799, %v1099
        %v1101 = vlaneseq
        %v1102 = vshrl.u32 %v1101, 7
        %v1103 = vsub.s32 0, %v1102
        %v1104 = vrot.slane %v800, %v1103
        %v1105 = vlaneseq
        %v1106 = vshrl.u32 %v1105, 7
        %v1107 = vsub.s32 1, %v1106
        %v1108 = vrot.slane %v800, %v1107
        %v1109 = vlaneseq
        %v1110 = vshrl.u32 %v1109, 7
        %v1111 = vsub.s32 2, %v1110
        %v1112 = vrot.slane %v800, %v1111
        %v1113 = vlaneseq
        %v1114 = vshrl.u32 %v1113, 7
        %v1115 = vsub.s32 3, %v1114
        %v1116 = vrot.slane %v800, %v1115
        %v1117 = vlaneseq
        %v1118 = vshrl.u32 %v1117, 7
        %v1119 = vsub.s32 4, %v1118
        %v1120 = vrot.slane %v800, %v1119
        %v1121 = vlaneseq
        %v1122 = vshrl.u32 %v1121, 7
        %v1123 = vsub.s32 5, %v1122
        %v1124 = vrot.slane %v800, %v1123
        %v1125 = vlaneseq
        %v1126 = vshrl.u32 %v1125, 7
        %v1127 = vsub.s32 6, %v1126
        %v1128 = vrot.slane %v800, %v1127
        %v1129 = vlaneseq
        %v1130 = vshrl.u32 %v1129, 7
        %v1131 = vsub.s32 7, %v1130
        %v1132 = vrot.slane %v800, %v1131
        %v1133 = vlaneseq
        %v1134 = vshrl.u32 %v1133, 7
        %v1135 = vsub.s32 0, %v1134
        %v1136 = vrot.slane %v801, %v1135
        %v1587 = vunpack.c.l.b16 %v422
        %v1588 = vunpack.c.h.b16 %v422
        %v1589 = vunpack.c.l.b16 %v423
        %v1590 = vunpack.c.h.b16 %v423
        %v1591 = vunpack.c.l.b16 %v424
        %v1592 = vunpack.c.h.b16 %v424
        %v1593 = vunpack.c.l.b16 %v425
        %v1594 = vunpack.c.h.b16 %v425
        %v1595 = vunpack.c.l.b16 %v426
        %v1596 = vunpack.c.h.b16 %v426
        %v1597 = vunpack.c.l.b16 %v427
        %v1598 = vunpack.c.h.b16 %v427
        %v1599 = vunpack.c.l.b16 %v428
        %v1600 = vunpack.c.h.b16 %v428
        %v1601 = vunpack.c.l.b16 %v429
        %v1602 = vunpack.c.h.b16 %v429
        %v1603 = vunpack.c.l.b16 %v430
        %v1604 = vunpack.c.h.b16 %v430
        %v1605 = vunpack.c.l.b16 %v431
        %v1606 = vunpack.c.h.b16 %v431
        %v1607 = vunpack.c.l.b16 %v432
        %v1608 = vunpack.c.h.b16 %v432
        %v1609 = vunpack.c.l.b16 %v433
        %v1610 = vunpack.c.h.b16 %v433
        %v1611 = vunpack.c.l.b16 %v434
        %v1612 = vunpack.c.h.b16 %v434
        %v1613 = vunpack.c.l.b16 %v435
        %v1614 = vunpack.c.h.b16 %v435
        %v1615 = vunpack.c.l.b16 %v436
        %v1616 = vunpack.c.h.b16 %v436
        %v1617 = vunpack.c.l.b16 %v437
        %v1618 = vunpack.c.h.b16 %v437
        %v1619 = vunpack.c.l.b16 %v438
        %v1620 = vunpack.c.h.b16 %v438
        %v1621 = vunpack.c.l.b16 %v439
        %v1622 = vunpack.c.h.b16 %v439
        %v1623 = vunpack.c.l.b16 %v440
        %v1624 = vunpack.c.h.b16 %v440
        %v1625 = vunpack.c.l.b16 %v441
        %v1626 = vunpack.c.h.b16 %v441
        %v1627 = vunpack.c.l.b16 %v442
        %v1628 = vunpack.c.h.b16 %v442
        %v1629 = vunpack.c.l.b16 %v443
        %v1630 = vunpack.c.h.b16 %v443
        %v1631 = vunpack.c.l.b16 %v444
        %v1632 = vunpack.c.h.b16 %v444
        %v1633 = vunpack.c.l.b16 %v445
        %v1634 = vunpack.c.h.b16 %v445
        %v1635 = vunpack.c.l.b16 %v446
        %v1636 = vunpack.c.h.b16 %v446
        %v1637 = vunpack.c.l.b16 %v447
        %v1638 = vunpack.c.h.b16 %v447
        %v1639 = vunpack.c.l.b16 %v448
        %v1640 = vunpack.c.h.b16 %v448
        %v1641 = vunpack.c.l.b16 %v449
        %v1642 = vunpack.c.h.b16 %v449
        %v1643 = vunpack.c.l.b16 %v450
        %v1644 = vunpack.c.h.b16 %v450
        %v1645 = vunpack.c.l.b16 %v451
        %v1646 = vunpack.c.h.b16 %v451
        %v1647 = vunpack.c.l.b16 %v452
        %v1648 = vunpack.c.h.b16 %v452
        %v1649 = vunpack.c.l.b16 %v453
        %v1650 = vunpack.c.h.b16 %v453
        %v1651 = vunpack.c.l.b16 %v454
        %v1652 = vunpack.c.h.b16 %v454
        %v1653 = vunpack.c.l.b16 %v455
        %v1654 = vunpack.c.h.b16 %v455
        %v1655 = vunpack.c.l.b16 %v456
        %v1656 = vunpack.c.h.b16 %v456
        %v1657 = vunpack.c.l.b16 %v457
        %v1658 = vunpack.c.h.b16 %v457
        %v1659 = vunpack.c.l.b16 %v458
        %v1660 = vunpack.c.h.b16 %v458
        %v1661 = vunpack.c.l.b16 %v459
        %v1662 = vunpack.c.h.b16 %v459
        %v1663 = vunpack.c.l.b16 %v460
        %v1664 = vunpack.c.h.b16 %v460
        %v1665 = vunpack.c.l.b16 %v461
        %v1666 = vunpack.c.h.b16 %v461
        %v1667 = vunpack.c.l.b16 %v462
        %v1668 = vunpack.c.l.b16 %v463
        %v1669 = vunpack.c.h.b16 %v463
        %v1670 = vunpack.c.l.b16 %v464
        %v1671 = vunpack.c.h.b16 %v464
        %v1672 = vunpack.c.l.b16 %v465
        %v1673 = vunpack.c.h.b16 %v465
        %v1674 = vunpack.c.l.b16 %v466
        %v1675 = vunpack.c.h.b16 %v466
        %v1676 = vunpack.c.l.b16 %v467
        %v1677 = vunpack.c.h.b16 %v467
        %v1678 = vunpack.c.l.b16 %v468
        %v1679 = vunpack.c.h.b16 %v468
        %v1680 = vunpack.c.l.b16 %v469
        %v1681 = vunpack.c.h.b16 %v469
        %v1682 = vunpack.c.l.b16 %v470
        %v1683 = vunpack.c.h.b16 %v470
        %v1684 = vunpack.c.l.b16 %v471
        %v1685 = vunpack.c.h.b16 %v471
        %v1686 = vunpack.c.l.b16 %v472
        %v1687 = vunpack.c.h.b16 %v472
        %v1688 = vunpack.c.l.b16 %v473
        %v1689 = vunpack.c.h.b16 %v473
        %v1690 = vunpack.c.l.b16 %v474
        %v1691 = vunpack.c.h.b16 %v474
        %v1692 = vunpack.c.l.b16 %v475
        %v1693 = vunpack.c.h.b16 %v475
        %v1694 = vunpack.c.l.b16 %v476
        %v1695 = vunpack.c.h.b16 %v476
        %v1696 = vunpack.c.l.b16 %v477
        %v1697 = vunpack.c.h.b16 %v477
        %v1698 = vunpack.c.l.b16 %v478
        %v1699 = vunpack.c.h.b16 %v478
        %v1700 = vunpack.c.l.b16 %v479
        %v1701 = vunpack.c.h.b16 %v479
        %v1702 = vunpack.c.l.b16 %v480
        %v1703 = vunpack.c.h.b16 %v480
        %v1704 = vunpack.c.l.b16 %v481
        %v1705 = vunpack.c.h.b16 %v481
        %v1706 = vunpack.c.l.b16 %v482
        %v1707 = vunpack.c.h.b16 %v482
        %v1708 = vunpack.c.l.b16 %v483
        %v1709 = vunpack.c.h.b16 %v483
        %v1710 = vunpack.c.l.b16 %v484
        %v1711 = vunpack.c.h.b16 %v484
        %v1712 = vunpack.c.l.b16 %v485
        %v1713 = vunpack.c.h.b16 %v485
        %v1714 = vunpack.c.l.b16 %v486
        %v1715 = vunpack.c.h.b16 %v486
        %v1716 = vunpack.c.l.b16 %v487
        %v1717 = vunpack.c.h.b16 %v487
        %v1718 = vunpack.c.l.b16 %v488
        %v1719 = vunpack.c.h.b16 %v488
        %v1720 = vunpack.c.l.b16 %v489
        %v1721 = vunpack.c.h.b16 %v489
        %v1722 = vunpack.c.l.b16 %v490
        %v1723 = vunpack.c.h.b16 %v490
        %v1724 = vunpack.c.l.b16 %v491
        %v1725 = vunpack.c.h.b16 %v491
        %v1726 = vunpack.c.l.b16 %v492
        %v1727 = vunpack.c.h.b16 %v492
        %v1728 = vunpack.c.l.b16 %v493
        %v1729 = vunpack.c.h.b16 %v493
        %v1730 = vunpack.c.l.b16 %v494
        %v1731 = vunpack.c.h.b16 %v494
        %v1732 = vunpack.c.l.b16 %v495
        %v1733 = vunpack.c.h.b16 %v495
        %v1734 = vunpack.c.l.b16 %v496
        %v1735 = vunpack.c.h.b16 %v496
        %v1736 = vunpack.c.l.b16 %v497
        %v1737 = vunpack.c.h.b16 %v497
        %v1738 = vunpack.c.l.b16 %v498
        %v1739 = vunpack.c.h.b16 %v498
        %v1740 = vunpack.c.l.b16 %v499
        %v1741 = vunpack.c.h.b16 %v499
        %v1742 = vunpack.c.l.b16 %v500
        %v1743 = vunpack.c.h.b16 %v500
        %v1744 = vunpack.c.l.b16 %v501
        %v1745 = vunpack.c.h.b16 %v501
        %v1746 = vunpack.c.l.b16 %v502
        %v1747 = vunpack.c.h.b16 %v502
        %v1748 = vunpack.c.l.b16 %v503
        %v1749 = vunpack.c.l.b16 %v504
        %v1750 = vunpack.c.h.b16 %v504
        %v1751 = vunpack.c.l.b16 %v505
        %v1752 = vunpack.c.h.b16 %v505
        %v1753 = vunpack.c.l.b16 %v506
        %v1754 = vunpack.c.h.b16 %v506
        %v1755 = vunpack.c.l.b16 %v507
        %v1756 = vunpack.c.h.b16 %v507
        %v1757 = vunpack.c.l.b16 %v508
        %v1758 = vunpack.c.h.b16 %v508
        %v1759 = vunpack.c.l.b16 %v509
        %v1760 = vunpack.c.h.b16 %v509
        %v1761 = vunpack.c.l.b16 %v510
        %v1762 = vunpack.c.h.b16 %v510
        %v1763 = vunpack.c.l.b16 %v511
        %v1764 = vunpack.c.h.b16 %v511
        %v1765 = vunpack.c.l.b16 %v512
        %v1766 = vunpack.c.h.b16 %v512
        %v1767 = vunpack.c.l.b16 %v513
        %v1768 = vunpack.c.h.b16 %v513
        %v1769 = vunpack.c.l.b16 %v514
        %v1770 = vunpack.c.h.b16 %v514
        %v1771 = vunpack.c.l.b16 %v515
        %v1772 = vunpack.c.h.b16 %v515
        %v1773 = vunpack.c.l.b16 %v516
        %v1774 = vunpack.c.h.b16 %v516
        %v1775 = vunpack.c.l.b16 %v517
        %v1776 = vunpack.c.h.b16 %v517
        %v1777 = vunpack.c.l.b16 %v518
        %v1778 = vunpack.c.h.b16 %v518
        %v1779 = vunpack.c.l.b16 %v519
        %v1780 = vunpack.c.h.b16 %v519
        %v1781 = vunpack.c.l.b16 %v520
        %v1782 = vunpack.c.h.b16 %v520
        %v1783 = vunpack.c.l.b16 %v521
        %v1784 = vunpack.c.h.b16 %v521
        %v1785 = vunpack.c.l.b16 %v522
        %v1786 = vunpack.c.h.b16 %v522
        %v1787 = vunpack.c.l.b16 %v523
        %v1788 = vunpack.c.h.b16 %v523
        %v1789 = vunpack.c.l.b16 %v524
        %v1790 = vunpack.c.h.b16 %v524
        %v1791 = vunpack.c.l.b16 %v525
        %v1792 = vunpack.c.h.b16 %v525
        %v1793 = vunpack.c.l.b16 %v526
        %v1794 = vunpack.c.h.b16 %v526
        %v1795 = vunpack.c.l.b16 %v527
        %v1796 = vunpack.c.h.b16 %v527
        %v1797 = vunpack.c.l.b16 %v528
        %v1798 = vunpack.c.h.b16 %v528
        %v1799 = vunpack.c.l.b16 %v529
        %v1800 = vunpack.c.h.b16 %v529
        %v1801 = vunpack.c.l.b16 %v530
        %v1802 = vunpack.c.h.b16 %v530
        %v1803 = vunpack.c.l.b16 %v531
        %v1804 = vunpack.c.h.b16 %v531
        %v1805 = vunpack.c.l.b16 %v532
        %v1806 = vunpack.c.h.b16 %v532
        %v1807 = vunpack.c.l.b16 %v533
        %v1808 = vunpack.c.h.b16 %v533
        %v1809 = vunpack.c.l.b16 %v534
        %v1810 = vunpack.c.h.b16 %v534
        %v1811 = vunpack.c.l.b16 %v535
        %v1812 = vunpack.c.h.b16 %v535
        %v1813 = vunpack.c.l.b16 %v536
        %v1814 = vunpack.c.h.b16 %v536
        %v1815 = vunpack.c.l.b16 %v537
        %v1816 = vunpack.c.h.b16 %v537
        %v1817 = vunpack.c.l.b16 %v538
        %v1818 = vunpack.c.h.b16 %v538
        %v1819 = vunpack.c.l.b16 %v539
        %v1820 = vunpack.c.h.b16 %v539
        %v1821 = vunpack.c.l.b16 %v540
        %v1822 = vunpack.c.h.b16 %v540
        %v1823 = vunpack.c.l.b16 %v541
        %v1824 = vunpack.c.h.b16 %v541
        %v1825 = vunpack.c.l.b16 %v542
        %v1826 = vunpack.c.h.b16 %v542
        %v1827 = vunpack.c.l.b16 %v543
        %v1828 = vunpack.c.h.b16 %v543
        %v1829 = vunpack.c.l.b16 %v544
        %v1830 = vunpack.c.l.b16 %v545
        %v1831 = vunpack.c.h.b16 %v545
        %v1832 = vunpack.c.l.b16 %v546
        %v1833 = vunpack.c.h.b16 %v546
        %v1834 = vunpack.c.l.b16 %v547
        %v1835 = vunpack.c.h.b16 %v547
        %v1836 = vunpack.c.l.b16 %v548
        %v1837 = vunpack.c.h.b16 %v548
        %v1838 = vunpack.c.l.b16 %v549
        %v1839 = vunpack.c.h.b16 %v549
        %v1840 = vunpack.c.l.b16 %v550
        %v1841 = vunpack.c.h.b16 %v550
        %v1842 = vunpack.c.l.b16 %v551
        %v1843 = vunpack.c.h.b16 %v551
        %v1844 = vunpack.c.l.b16 %v552
        %v1845 = vunpack.c.h.b16 %v552
        %v1846 = vunpack.c.l.b16 %v553
        %v1847 = vunpack.c.h.b16 %v553
        %v1848 = vunpack.c.l.b16 %v554
        %v1849 = vunpack.c.h.b16 %v554
        %v1850 = vunpack.c.l.b16 %v555
        %v1851 = vunpack.c.h.b16 %v555
        %v1852 = vunpack.c.l.b16 %v556
        %v1853 = vunpack.c.h.b16 %v556
        %v1854 = vunpack.c.l.b16 %v557
        %v1855 = vunpack.c.h.b16 %v557
        %v1856 = vunpack.c.l.b16 %v558
        %v1857 = vunpack.c.h.b16 %v558
        %v1858 = vunpack.c.l.b16 %v559
        %v1859 = vunpack.c.h.b16 %v559
        %v1860 = vunpack.c.l.b16 %v560
        %v1861 = vunpack.c.h.b16 %v560
        %v1862 = vunpack.c.l.b16 %v561
        %v1863 = vunpack.c.h.b16 %v561
        %v1864 = vunpack.c.l.b16 %v562
        %v1865 = vunpack.c.h.b16 %v562
        %v1866 = vunpack.c.l.b16 %v563
        %v1867 = vunpack.c.h.b16 %v563
        %v1868 = vunpack.c.l.b16 %v564
        %v1869 = vunpack.c.h.b16 %v564
        %v1870 = vunpack.c.l.b16 %v565
        %v1871 = vunpack.c.h.b16 %v565
        %v1872 = vunpack.c.l.b16 %v566
        %v1873 = vunpack.c.h.b16 %v566
        %v1874 = vunpack.c.l.b16 %v567
        %v1875 = vunpack.c.h.b16 %v567
        %v1876 = vunpack.c.l.b16 %v568
        %v1877 = vunpack.c.h.b16 %v568
        %v1878 = vunpack.c.l.b16 %v569
        %v1879 = vunpack.c.h.b16 %v569
        %v1880 = vunpack.c.l.b16 %v570
        %v1881 = vunpack.c.h.b16 %v570
        %v1882 = vunpack.c.l.b16 %v571
        %v1883 = vunpack.c.h.b16 %v571
        %v1884 = vunpack.c.l.b16 %v572
        %v1885 = vunpack.c.h.b16 %v572
        %v1886 = vunpack.c.l.b16 %v573
        %v1887 = vunpack.c.h.b16 %v573
        %v1888 = vunpack.c.l.b16 %v574
        %v1889 = vunpack.c.h.b16 %v574
        %v1890 = vunpack.c.l.b16 %v575
        %v1891 = vunpack.c.h.b16 %v575
        %v1892 = vunpack.c.l.b16 %v576
        %v1893 = vunpack.c.h.b16 %v576
        %v1894 = vunpack.c.l.b16 %v577
        %v1895 = vunpack.c.h.b16 %v577
        %v1896 = vunpack.c.l.b16 %v578
        %v1897 = vunpack.c.h.b16 %v578
        %v1898 = vunpack.c.l.b16 %v579
        %v1899 = vunpack.c.h.b16 %v579
        %v1900 = vunpack.c.l.b16 %v580
        %v1901 = vunpack.c.h.b16 %v580
        %v1902 = vunpack.c.l.b16 %v581
        %v1903 = vunpack.c.h.b16 %v581
        %v1904 = vunpack.c.l.b16 %v582
        %v1905 = vunpack.c.h.b16 %v582
        %v1906 = vunpack.c.l.b16 %v583
        %v1907 = vunpack.c.h.b16 %v583
        %v1908 = vunpack.c.l.b16 %v584
        %v1909 = vunpack.c.h.b16 %v584
        %v1910 = vunpack.c.l.b16 %v585
        %v1911 = vunpack.c.l.b16 %v586
        %v1912 = vunpack.c.h.b16 %v586
        %v1913 = vunpack.c.l.b16 %v587
        %v1914 = vunpack.c.h.b16 %v587
        %v1915 = vunpack.c.l.b16 %v588
        %v1916 = vunpack.c.h.b16 %v588
        %v1917 = vunpack.c.l.b16 %v589
        %v1918 = vunpack.c.h.b16 %v589
        %v1919 = vunpack.c.l.b16 %v590
        %v1920 = vunpack.c.h.b16 %v590
        %v1921 = vunpack.c.l.b16 %v591
        %v1922 = vunpack.c.h.b16 %v591
        %v1923 = vunpack.c.l.b16 %v592
        %v1924 = vunpack.c.h.b16 %v592
        %v1925 = vunpack.c.l.b16 %v593
        %v1926 = vunpack.c.h.b16 %v593
        %v1927 = vunpack.c.l.b16 %v594
        %v1928 = vunpack.c.h.b16 %v594
        %v1929 = vunpack.c.l.b16 %v595
        %v1930 = vunpack.c.h.b16 %v595
        %v1931 = vunpack.c.l.b16 %v596
        %v1932 = vunpack.c.h.b16 %v596
        %v1933 = vunpack.c.l.b16 %v597
        %v1934 = vunpack.c.h.b16 %v597
        %v1935 = vunpack.c.l.b16 %v598
        %v1936 = vunpack.c.h.b16 %v598
        %v1937 = vunpack.c.l.b16 %v599
        %v1938 = vunpack.c.h.b16 %v599
        %v1939 = vunpack.c.l.b16 %v600
        %v1940 = vunpack.c.h.b16 %v600
        %v1941 = vunpack.c.l.b16 %v601
        %v1942 = vunpack.c.h.b16 %v601
        %v1943 = vunpack.c.l.b16 %v602
        %v1944 = vunpack.c.h.b16 %v602
        %v1945 = vunpack.c.l.b16 %v603
        %v1946 = vunpack.c.h.b16 %v603
        %v1947 = vunpack.c.l.b16 %v604
        %v1948 = vunpack.c.h.b16 %v604
        %v1949 = vunpack.c.l.b16 %v605
        %v1950 = vunpack.c.h.b16 %v605
        %v1951 = vunpack.c.l.b16 %v606
        %v1952 = vunpack.c.h.b16 %v606
        %v1953 = vunpack.c.l.b16 %v607
        %v1954 = vunpack.c.h.b16 %v607
        %v1955 = vunpack.c.l.b16 %v608
        %v1956 = vunpack.c.h.b16 %v608
        %v1957 = vunpack.c.l.b16 %v609
        %v1958 = vunpack.c.h.b16 %v609
        %v1959 = vunpack.c.l.b16 %v610
        %v1960 = vunpack.c.h.b16 %v610
        %v1961 = vunpack.c.l.b16 %v611
        %v1962 = vunpack.c.h.b16 %v611
        %v1963 = vunpack.c.l.b16 %v612
        %v1964 = vunpack.c.h.b16 %v612
        %v1965 = vunpack.c.l.b16 %v613
        %v1966 = vunpack.c.h.b16 %v613
        %v1967 = vunpack.c.l.b16 %v614
        %v1968 = vunpack.c.h.b16 %v614
        %v1969 = vunpack.c.l.b16 %v615
        %v1970 = vunpack.c.h.b16 %v615
        %v1971 = vunpack.c.l.b16 %v616
        %v1972 = vunpack.c.h.b16 %v616
        %v1973 = vunpack.c.l.b16 %v617
        %v1974 = vunpack.c.h.b16 %v617
        %v1975 = vunpack.c.l.b16 %v618
        %v1976 = vunpack.c.h.b16 %v618
        %v1977 = vunpack.c.l.b16 %v619
        %v1978 = vunpack.c.h.b16 %v619
        %v1979 = vunpack.c.l.b16 %v620
        %v1980 = vunpack.c.h.b16 %v620
        %v1981 = vunpack.c.l.b16 %v621
        %v1982 = vunpack.c.h.b16 %v621
        %v1983 = vunpack.c.l.b16 %v622
        %v1984 = vunpack.c.h.b16 %v622
        %v1985 = vunpack.c.l.b16 %v623
        %v1986 = vunpack.c.h.b16 %v623
        %v1987 = vunpack.c.l.b16 %v624
        %v1988 = vunpack.c.h.b16 %v624
        %v1989 = vunpack.c.l.b16 %v625
        %v1990 = vunpack.c.h.b16 %v625
        %v1991 = vunpack.c.l.b16 %v626
        %v1992 = vunpack.c.l.b16 %v627
        %v1993 = vunpack.c.h.b16 %v627
        %v1994 = vunpack.c.l.b16 %v628
        %v1995 = vunpack.c.h.b16 %v628
        %v1996 = vunpack.c.l.b16 %v629
        %v1997 = vunpack.c.h.b16 %v629
        %v1998 = vunpack.c.l.b16 %v630
        %v1999 = vunpack.c.h.b16 %v630
        %v2000 = vunpack.c.l.b16 %v631
        %v2001 = vunpack.c.h.b16 %v631
        %v2002 = vunpack.c.l.b16 %v632
        %v2003 = vunpack.c.h.b16 %v632
        %v2004 = vunpack.c.l.b16 %v633
        %v2005 = vunpack.c.h.b16 %v633
        %v2006 = vunpack.c.l.b16 %v634
        %v2007 = vunpack.c.h.b16 %v634
        %v2008 = vunpack.c.l.b16 %v635
        %v2009 = vunpack.c.h.b16 %v635
        %v2010 = vunpack.c.l.b16 %v636
        %v2011 = vunpack.c.h.b16 %v636
        %v2012 = vunpack.c.l.b16 %v637
        %v2013 = vunpack.c.h.b16 %v637
        %v2014 = vunpack.c.l.b16 %v638
        %v2015 = vunpack.c.h.b16 %v638
        %v2016 = vunpack.c.l.b16 %v639
        %v2017 = vunpack.c.h.b16 %v639
        %v2018 = vunpack.c.l.b16 %v640
        %v2019 = vunpack.c.h.b16 %v640
        %v2020 = vunpack.c.l.b16 %v641
        %v2021 = vunpack.c.h.b16 %v641
        %v2022 = vunpack.c.l.b16 %v642
        %v2023 = vunpack.c.h.b16 %v642
        %v2024 = vunpack.c.l.b16 %v643
        %v2025 = vunpack.c.h.b16 %v643
        %v2026 = vunpack.c.l.b16 %v644
        %v2027 = vunpack.c.h.b16 %v644
        %v2028 = vunpack.c.l.b16 %v645
        %v2029 = vunpack.c.h.b16 %v645
        %v2030 = vunpack.c.l.b16 %v646
        %v2031 = vunpack.c.h.b16 %v646
        %v2032 = vunpack.c.l.b16 %v647
        %v2033 = vunpack.c.h.b16 %v647
        %v2034 = vunpack.c.l.b16 %v648
        %v2035 = vunpack.c.h.b16 %v648
        %v2036 = vunpack.c.l.b16 %v649
        %v2037 = vunpack.c.h.b16 %v649
        %v2038 = vunpack.c.l.b16 %v650
        %v2039 = vunpack.c.h.b16 %v650
        %v2040 = vunpack.c.l.b16 %v651
        %v2041 = vunpack.c.h.b16 %v651
        %v2042 = vunpack.c.l.b16 %v652
        %v2043 = vunpack.c.h.b16 %v652
        %v2044 = vunpack.c.l.b16 %v653
        %v2045 = vunpack.c.h.b16 %v653
        %v2046 = vunpack.c.l.b16 %v654
        %v2047 = vunpack.c.h.b16 %v654
        %v2048 = vunpack.c.l.b16 %v655
        %v2049 = vunpack.c.h.b16 %v655
        %v2050 = vunpack.c.l.b16 %v656
        %v2051 = vunpack.c.h.b16 %v656
        %v2052 = vunpack.c.l.b16 %v657
        %v2053 = vunpack.c.h.b16 %v657
        %v2054 = vunpack.c.l.b16 %v658
        %v2055 = vunpack.c.h.b16 %v658
        %v2056 = vunpack.c.l.b16 %v659
        %v2057 = vunpack.c.h.b16 %v659
        %v2058 = vunpack.c.l.b16 %v660
        %v2059 = vunpack.c.h.b16 %v660
        %v2060 = vunpack.c.l.b16 %v661
        %v2061 = vunpack.c.h.b16 %v661
        %v2062 = vunpack.c.l.b16 %v662
        %v2063 = vunpack.c.h.b16 %v662
        %v2064 = vunpack.c.l.b16 %v663
        %v2065 = vunpack.c.h.b16 %v663
        %v2066 = vunpack.c.l.b16 %v664
        %v2067 = vunpack.c.h.b16 %v664
        %v2068 = vunpack.c.l.b16 %v665
        %v2069 = vunpack.c.h.b16 %v665
        %v2070 = vunpack.c.l.b16 %v666
        %v2071 = vunpack.c.h.b16 %v666
        %v2072 = vunpack.c.l.b16 %v667
        %v2073 = vunpack.c.l.b16 %v668
        %v2074 = vunpack.c.h.b16 %v668
        %v2075 = vunpack.c.l.b16 %v669
        %v2076 = vunpack.c.h.b16 %v669
        %v2077 = vunpack.c.l.b16 %v670
        %v2078 = vunpack.c.h.b16 %v670
        %v2079 = vunpack.c.l.b16 %v671
        %v2080 = vunpack.c.h.b16 %v671
        %v2081 = vunpack.c.l.b16 %v672
        %v2082 = vunpack.c.h.b16 %v672
        %v2083 = vunpack.c.l.b16 %v673
        %v2084 = vunpack.c.h.b16 %v673
        %v2085 = vunpack.c.l.b16 %v674
        %v2086 = vunpack.c.h.b16 %v674
        %v2087 = vunpack.c.l.b16 %v675
        %v2088 = vunpack.c.h.b16 %v675
        %v2089 = vunpack.c.l.b16 %v676
        %v2090 = vunpack.c.h.b16 %v676
        %v2091 = vunpack.c.l.b16 %v677
        %v2092 = vunpack.c.h.b16 %v677
        %v2093 = vunpack.c.l.b16 %v678
        %v2094 = vunpack.c.h.b16 %v678
        %v2095 = vunpack.c.l.b16 %v679
        %v2096 = vunpack.c.h.b16 %v679
        %v2097 = vunpack.c.l.b16 %v680
        %v2098 = vunpack.c.h.b16 %v680
        %v2099 = vunpack.c.l.b16 %v681
        %v2100 = vunpack.c.h.b16 %v681
        %v2101 = vunpack.c.l.b16 %v682
        %v2102 = vunpack.c.h.b16 %v682
        %v2103 = vunpack.c.l.b16 %v683
        %v2104 = vunpack.c.h.b16 %v683
        %v2105 = vunpack.c.l.b16 %v684
        %v2106 = vunpack.c.h.b16 %v684
        %v2107 = vunpack.c.l.b16 %v685
        %v2108 = vunpack.c.h.b16 %v685
        %v2109 = vunpack.c.l.b16 %v686
        %v2110 = vunpack.c.h.b16 %v686
        %v2111 = vunpack.c.l.b16 %v687
        %v2112 = vunpack.c.h.b16 %v687
        %v2113 = vunpack.c.l.b16 %v688
        %v2114 = vunpack.c.h.b16 %v688
        %v2115 = vunpack.c.l.b16 %v689
        %v2116 = vunpack.c.h.b16 %v689
        %v2117 = vunpack.c.l.b16 %v690
        %v2118 = vunpack.c.h.b16 %v690
        %v2119 = vunpack.c.l.b16 %v691
        %v2120 = vunpack.c.h.b16 %v691
        %v2121 = vunpack.c.l.b16 %v692
        %v2122 = vunpack.c.h.b16 %v692
        %v2123 = vunpack.c.l.b16 %v693
        %v2124 = vunpack.c.h.b16 %v693
        %v2125 = vunpack.c.l.b16 %v694
        %v2126 = vunpack.c.h.b16 %v694
        %v2127 = vunpack.c.l.b16 %v695
        %v2128 = vunpack.c.h.b16 %v695
        %v2129 = vunpack.c.l.b16 %v696
        %v2130 = vunpack.c.h.b16 %v696
        %v2131 = vunpack.c.l.b16 %v697
        %v2132 = vunpack.c.h.b16 %v697
        %v2133 = vunpack.c.l.b16 %v698
        %v2134 = vunpack.c.h.b16 %v698
        %v2135 = vunpack.c.l.b16 %v699
        %v2136 = vunpack.c.h.b16 %v699
        %v2137 = vunpack.c.l.b16 %v700
        %v2138 = vunpack.c.h.b16 %v700
        %v2139 = vunpack.c.l.b16 %v701
        %v2140 = vunpack.c.h.b16 %v701
        %v2141 = vunpack.c.l.b16 %v702
        %v2142 = vunpack.c.h.b16 %v702
        %v2143 = vunpack.c.l.b16 %v703
        %v2144 = vunpack.c.h.b16 %v703
        %v2145 = vunpack.c.l.b16 %v704
        %v2146 = vunpack.c.h.b16 %v704
        %v2147 = vunpack.c.l.b16 %v705
        %v2148 = vunpack.c.h.b16 %v705
        %v2149 = vunpack.c.l.b16 %v706
        %v2150 = vunpack.c.h.b16 %v706
        %v2151 = vunpack.c.l.b16 %v707
        %v2152 = vunpack.c.h.b16 %v707
        %v2153 = vunpack.c.l.b16 %v708
        %v2154 = vunpack.c.l.b16 %v709
        %v2155 = vunpack.c.h.b16 %v709
        %v2156 = vunpack.c.l.b16 %v710
        %v2157 = vunpack.c.h.b16 %v710
        %v2158 = vunpack.c.l.b16 %v711
        %v2159 = vunpack.c.h.b16 %v711
        %v2160 = vunpack.c.l.b16 %v712
        %v2161 = vunpack.c.h.b16 %v712
        %v2162 = vunpack.c.l.b16 %v713
        %v2163 = vunpack.c.h.b16 %v713
        %v2164 = vunpack.c.l.b16 %v714
        %v2165 = vunpack.c.h.b16 %v714
        %v2166 = vunpack.c.l.b16 %v715
        %v2167 = vunpack.c.h.b16 %v715
        %v2168 = vunpack.c.l.b16 %v716
        %v2169 = vunpack.c.h.b16 %v716
        %v2170 = vunpack.c.l.b16 %v717
        %v2171 = vunpack.c.h.b16 %v717
        %v2172 = vunpack.c.l.b16 %v718
        %v2173 = vunpack.c.h.b16 %v718
        %v2174 = vunpack.c.l.b16 %v719
        %v2175 = vunpack.c.h.b16 %v719
        %v2176 = vunpack.c.l.b16 %v720
        %v2177 = vunpack.c.h.b16 %v720
        %v2178 = vunpack.c.l.b16 %v721
        %v2179 = vunpack.c.h.b16 %v721
        %v2180 = vunpack.c.l.b16 %v722
        %v2181 = vunpack.c.h.b16 %v722
        %v2182 = vunpack.c.l.b16 %v723
        %v2183 = vunpack.c.h.b16 %v723
        %v2184 = vunpack.c.l.b16 %v724
        %v2185 = vunpack.c.h.b16 %v724
        %v2186 = vunpack.c.l.b16 %v725
        %v2187 = vunpack.c.h.b16 %v725
        %v2188 = vunpack.c.l.b16 %v726
        %v2189 = vunpack.c.h.b16 %v726
        %v2190 = vunpack.c.l.b16 %v727
        %v2191 = vunpack.c.h.b16 %v727
        %v2192 = vunpack.c.l.b16 %v728
        %v2193 = vunpack.c.h.b16 %v728
        %v2194 = vunpack.c.l.b16 %v729
        %v2195 = vunpack.c.h.b16 %v729
        %v2196 = vunpack.c.l.b16 %v730
        %v2197 = vunpack.c.h.b16 %v730
        %v2198 = vunpack.c.l.b16 %v731
        %v2199 = vunpack.c.h.b16 %v731
        %v2200 = vunpack.c.l.b16 %v732
        %v2201 = vunpack.c.h.b16 %v732
        %v2202 = vunpack.c.l.b16 %v733
        %v2203 = vunpack.c.h.b16 %v733
        %v2204 = vunpack.c.l.b16 %v734
        %v2205 = vunpack.c.h.b16 %v734
        %v2206 = vunpack.c.l.b16 %v735
        %v2207 = vunpack.c.h.b16 %v735
        %v2208 = vunpack.c.l.b16 %v736
        %v2209 = vunpack.c.h.b16 %v736
        %v2210 = vunpack.c.l.b16 %v737
        %v2211 = vunpack.c.h.b16 %v737
        %v2212 = vunpack.c.l.b16 %v738
        %v2213 = vunpack.c.h.b16 %v738
        %v2214 = vunpack.c.l.b16 %v739
        %v2215 = vunpack.c.h.b16 %v739
        %v2216 = vunpack.c.l.b16 %v740
        %v2217 = vunpack.c.h.b16 %v740
        %v2218 = vunpack.c.l.b16 %v741
        %v2219 = vunpack.c.h.b16 %v741
        %v2220 = vunpack.c.l.b16 %v742
        %v2221 = vunpack.c.h.b16 %v742
        %v2222 = vunpack.c.l.b16 %v743
        %v2223 = vunpack.c.h.b16 %v743
        %v2224 = vunpack.c.l.b16 %v744
        %v2225 = vunpack.c.h.b16 %v744
        %v2226 = vunpack.c.l.b16 %v745
        %v2227 = vunpack.c.h.b16 %v745
        %v2228 = vunpack.c.l.b16 %v746
        %v2229 = vunpack.c.h.b16 %v746
        %v2230 = vunpack.c.l.b16 %v747
        %v2231 = vunpack.c.h.b16 %v747
        %v2232 = vunpack.c.l.b16 %v748
        %v2233 = vunpack.c.h.b16 %v748
        %v2234 = vunpack.c.l.b16 %v749
        %v2235 = vunpack.c.l.b16 %v750
        %v2236 = vunpack.c.h.b16 %v750
        %v2237 = vunpack.c.l.b16 %v751
        %v2238 = vunpack.c.h.b16 %v751
        %v2239 = vunpack.c.l.b16 %v752
        %v2240 = vunpack.c.h.b16 %v752
        %v2241 = vunpack.c.l.b16 %v753
        %v2242 = vunpack.c.h.b16 %v753
        %v2243 = vunpack.c.l.b16 %v754
        %v2244 = vunpack.c.h.b16 %v754
        %v2245 = vunpack.c.l.b16 %v755
        %v2246 = vunpack.c.h.b16 %v755
        %v2247 = vunpack.c.l.b16 %v756
        %v2248 = vunpack.c.h.b16 %v756
        %v2249 = vunpack.c.l.b16 %v757
        %v2250 = vunpack.c.h.b16 %v757
        %v2251 = vunpack.c.l.b16 %v758
        %v2252 = vunpack.c.h.b16 %v758
        %v2253 = vunpack.c.l.b16 %v759
        %v2254 = vunpack.c.h.b16 %v759
        %v2255 = vunpack.c.l.b16 %v760
        %v2256 = vunpack.c.h.b16 %v760
        %v2257 = vunpack.c.l.b16 %v761
        %v2258 = vunpack.c.h.b16 %v761
        %v2259 = vunpack.c.l.b16 %v762
        %v2260 = vunpack.c.h.b16 %v762
        %v2261 = vunpack.c.l.b16 %v763
        %v2262 = vunpack.c.h.b16 %v763
        %v2263 = vunpack.c.l.b16 %v764
        %v2264 = vunpack.c.h.b16 %v764
        %v2265 = vunpack.c.l.b16 %v765
        %v2266 = vunpack.c.h.b16 %v765
        %v2267 = vunpack.c.l.b16 %v766
        %v2268 = vunpack.c.h.b16 %v766
        %v2269 = vunpack.c.l.b16 %v767
        %v2270 = vunpack.c.h.b16 %v767
        %v2271 = vunpack.c.l.b16 %v768
        %v2272 = vunpack.c.h.b16 %v768
        %v2273 = vunpack.c.l.b16 %v769
        %v2274 = vunpack.c.h.b16 %v769
        %v2275 = vunpack.c.l.b16 %v770
        %v2276 = vunpack.c.h.b16 %v770
        %v2277 = vunpack.c.l.b16 %v771
        %v2278 = vunpack.c.h.b16 %v771
        %v2279 = vunpack.c.l.b16 %v772
        %v2280 = vunpack.c.h.b16 %v772
        %v2281 = vunpack.c.l.b16 %v773
        %v2282 = vunpack.c.h.b16 %v773
        %v2283 = vunpack.c.l.b16 %v774
        %v2284 = vunpack.c.h.b16 %v774
        %v2285 = vunpack.c.l.b16 %v775
        %v2286 = vunpack.c.h.b16 %v775
        %v2287 = vunpack.c.l.b16 %v776
        %v2288 = vunpack.c.h.b16 %v776
        %v2289 = vunpack.c.l.b16 %v777
        %v2290 = vunpack.c.h.b16 %v777
        %v2291 = vunpack.c.l.b16 %v778
        %v2292 = vunpack.c.h.b16 %v778
        %v2293 = vunpack.c.l.b16 %v779
        %v2294 = vunpack.c.h.b16 %v779
        %v2295 = vunpack.c.l.b16 %v780
        %v2296 = vunpack.c.h.b16 %v780
        %v2297 = vunpack.c.l.b16 %v781
        %v2298 = vunpack.c.h.b16 %v781
        %v2299 = vunpack.c.l.b16 %v782
        %v2300 = vunpack.c.h.b16 %v782
        %v2301 = vunpack.c.l.b16 %v783
        %v2302 = vunpack.c.h.b16 %v783
        %v2303 = vunpack.c.l.b16 %v784
        %v2304 = vunpack.c.h.b16 %v784
        %v2305 = vunpack.c.l.b16 %v785
        %v2306 = vunpack.c.h.b16 %v785
        %v2307 = vunpack.c.l.b16 %v786
        %v2308 = vunpack.c.h.b16 %v786
        %v2309 = vunpack.c.l.b16 %v787
        %v2310 = vunpack.c.h.b16 %v787
        %v2311 = vunpack.c.l.b16 %v788
        %v2312 = vunpack.c.h.b16 %v788
        %v2313 = vunpack.c.l.b16 %v789
        %v2314 = vunpack.c.h.b16 %v789
        %v2315 = vunpack.c.l.b16 %v790
        %v2316 = vpack.c.b16 %v1668, %v1587
        %v2317 = vpack.c.b16 %v1669, %v1588
        %v2318 = vpack.c.b16 %v1670, %v1589
        %v2319 = vpack.c.b16 %v1671, %v1590
        %v2320 = vpack.c.b16 %v1672, %v1591
        %v2321 = vpack.c.b16 %v1673, %v1592
        %v2322 = vpack.c.b16 %v1674, %v1593
        %v2323 = vpack.c.b16 %v1675, %v1594
        %v2324 = vpack.c.b16 %v1676, %v1595
        %v2325 = vpack.c.b16 %v1677, %v1596
        %v2326 = vpack.c.b16 %v1678, %v1597
        %v2327 = vpack.c.b16 %v1679, %v1598
        %v2328 = vpack.c.b16 %v1680, %v1599
        %v2329 = vpack.c.b16 %v1681, %v1600
        %v2330 = vpack.c.b16 %v1682, %v1601
        %v2331 = vpack.c.b16 %v1683, %v1602
        %v2332 = vpack.c.b16 %v1684, %v1603
        %v2333 = vpack.c.b16 %v1685, %v1604
        %v2334 = vpack.c.b16 %v1686, %v1605
        %v2335 = vpack.c.b16 %v1687, %v1606
        %v2336 = vpack.c.b16 %v1688, %v1607
        %v2337 = vpack.c.b16 %v1689, %v1608
        %v2338 = vpack.c.b16 %v1690, %v1609
        %v2339 = vpack.c.b16 %v1691, %v1610
        %v2340 = vpack.c.b16 %v1692, %v1611
        %v2341 = vpack.c.b16 %v1693, %v1612
        %v2342 = vpack.c.b16 %v1694, %v1613
        %v2343 = vpack.c.b16 %v1695, %v1614
        %v2344 = vpack.c.b16 %v1696, %v1615
        %v2345 = vpack.c.b16 %v1697, %v1616
        %v2346 = vpack.c.b16 %v1698, %v1617
        %v2347 = vpack.c.b16 %v1699, %v1618
        %v2348 = vpack.c.b16 %v1700, %v1619
        %v2349 = vpack.c.b16 %v1701, %v1620
        %v2350 = vpack.c.b16 %v1702, %v1621
        %v2351 = vpack.c.b16 %v1703, %v1622
        %v2352 = vpack.c.b16 %v1704, %v1623
        %v2353 = vpack.c.b16 %v1705, %v1624
        %v2354 = vpack.c.b16 %v1706, %v1625
        %v2355 = vpack.c.b16 %v1707, %v1626
        %v2356 = vpack.c.b16 %v1708, %v1627
        %v2357 = vpack.c.b16 %v1709, %v1628
        %v2358 = vpack.c.b16 %v1710, %v1629
        %v2359 = vpack.c.b16 %v1711, %v1630
        %v2360 = vpack.c.b16 %v1712, %v1631
        %v2361 = vpack.c.b16 %v1713, %v1632
        %v2362 = vpack.c.b16 %v1714, %v1633
        %v2363 = vpack.c.b16 %v1715, %v1634
        %v2364 = vpack.c.b16 %v1716, %v1635
        %v2365 = vpack.c.b16 %v1717, %v1636
        %v2366 = vpack.c.b16 %v1718, %v1637
        %v2367 = vpack.c.b16 %v1719, %v1638
        %v2368 = vpack.c.b16 %v1720, %v1639
        %v2369 = vpack.c.b16 %v1721, %v1640
        %v2370 = vpack.c.b16 %v1722, %v1641
        %v2371 = vpack.c.b16 %v1723, %v1642
        %v2372 = vpack.c.b16 %v1724, %v1643
        %v2373 = vpack.c.b16 %v1725, %v1644
        %v2374 = vpack.c.b16 %v1726, %v1645
        %v2375 = vpack.c.b16 %v1727, %v1646
        %v2376 = vpack.c.b16 %v1728, %v1647
        %v2377 = vpack.c.b16 %v1729, %v1648
        %v2378 = vpack.c.b16 %v1730, %v1649
        %v2379 = vpack.c.b16 %v1731, %v1650
        %v2380 = vpack.c.b16 %v1732, %v1651
        %v2381 = vpack.c.b16 %v1733, %v1652
        %v2382 = vpack.c.b16 %v1734, %v1653
        %v2383 = vpack.c.b16 %v1735, %v1654
        %v2384 = vpack.c.b16 %v1736, %v1655
        %v2385 = vpack.c.b16 %v1737, %v1656
        %v2386 = vpack.c.b16 %v1738, %v1657
        %v2387 = vpack.c.b16 %v1739, %v1658
        %v2388 = vpack.c.b16 %v1740, %v1659
        %v2389 = vpack.c.b16 %v1741, %v1660
        %v2390 = vpack.c.b16 %v1742, %v1661
        %v2391 = vpack.c.b16 %v1743, %v1662
        %v2392 = vpack.c.b16 %v1744, %v1663
        %v2393 = vpack.c.b16 %v1745, %v1664
        %v2394 = vpack.c.b16 %v1746, %v1665
        %v2395 = vpack.c.b16 %v1747, %v1666
        %v2396 = vpack.c.b16 %v1748, %v1667
        %v2397 = vpack.c.b16 %v1830, %v1749
        %v2398 = vpack.c.b16 %v1831, %v1750
        %v2399 = vpack.c.b16 %v1832, %v1751
        %v2400 = vpack.c.b16 %v1833, %v1752
        %v2401 = vpack.c.b16 %v1834, %v1753
        %v2402 = vpack.c.b16 %v1835, %v1754
        %v2403 = vpack.c.b16 %v1836, %v1755
        %v2404 = vpack.c.b16 %v1837, %v1756
        %v2405 = vpack.c.b16 %v1838, %v1757
        %v2406 = vpack.c.b16 %v1839, %v1758
        %v2407 = vpack.c.b16 %v1840, %v1759
        %v2408 = vpack.c.b16 %v1841, %v1760
        %v2409 = vpack.c.b16 %v1842, %v1761
        %v2410 = vpack.c.b16 %v1843, %v1762
        %v2411 = vpack.c.b16 %v1844, %v1763
        %v2412 = vpack.c.b16 %v1845, %v1764
        %v2413 = vpack.c.b16 %v1846, %v1765
        %v2414 = vpack.c.b16 %v1847, %v1766
        %v2415 = vpack.c.b16 %v1848, %v1767
        %v2416 = vpack.c.b16 %v1849, %v1768
        %v2417 = vpack.c.b16 %v1850, %v1769
        %v2418 = vpack.c.b16 %v1851, %v1770
        %v2419 = vpack.c.b16 %v1852, %v1771
        %v2420 = vpack.c.b16 %v1853, %v1772
        %v2421 = vpack.c.b16 %v1854, %v1773
        %v2422 = vpack.c.b16 %v1855, %v1774
        %v2423 = vpack.c.b16 %v1856, %v1775
        %v2424 = vpack.c.b16 %v1857, %v1776
        %v2425 = vpack.c.b16 %v1858, %v1777
        %v2426 = vpack.c.b16 %v1859, %v1778
        %v2427 = vpack.c.b16 %v1860, %v1779
        %v2428 = vpack.c.b16 %v1861, %v1780
        %v2429 = vpack.c.b16 %v1862, %v1781
        %v2430 = vpack.c.b16 %v1863, %v1782
        %v2431 = vpack.c.b16 %v1864, %v1783
        %v2432 = vpack.c.b16 %v1865, %v1784
        %v2433 = vpack.c.b16 %v1866, %v1785
        %v2434 = vpack.c.b16 %v1867, %v1786
        %v2435 = vpack.c.b16 %v1868, %v1787
        %v2436 = vpack.c.b16 %v1869, %v1788
        %v2437 = vpack.c.b16 %v1870, %v1789
        %v2438 = vpack.c.b16 %v1871, %v1790
        %v2439 = vpack.c.b16 %v1872, %v1791
        %v2440 = vpack.c.b16 %v1873, %v1792
        %v2441 = vpack.c.b16 %v1874, %v1793
        %v2442 = vpack.c.b16 %v1875, %v1794
        %v2443 = vpack.c.b16 %v1876, %v1795
        %v2444 = vpack.c.b16 %v1877, %v1796
        %v2445 = vpack.c.b16 %v1878, %v1797
        %v2446 = vpack.c.b16 %v1879, %v1798
        %v2447 = vpack.c.b16 %v1880, %v1799
        %v2448 = vpack.c.b16 %v1881, %v1800
        %v2449 = vpack.c.b16 %v1882, %v1801
        %v2450 = vpack.c.b16 %v1883, %v1802
        %v2451 = vpack.c.b16 %v1884, %v1803
        %v2452 = vpack.c.b16 %v1885, %v1804
        %v2453 = vpack.c.b16 %v1886, %v1805
        %v2454 = vpack.c.b16 %v1887, %v1806
        %v2455 = vpack.c.b16 %v1888, %v1807
        %v2456 = vpack.c.b16 %v1889, %v1808
        %v2457 = vpack.c.b16 %v1890, %v1809
        %v2458 = vpack.c.b16 %v1891, %v1810
        %v2459 = vpack.c.b16 %v1892, %v1811
        %v2460 = vpack.c.b16 %v1893, %v1812
        %v2461 = vpack.c.b16 %v1894, %v1813
        %v2462 = vpack.c.b16 %v1895, %v1814
        %v2463 = vpack.c.b16 %v1896, %v1815
        %v2464 = vpack.c.b16 %v1897, %v1816
        %v2465 = vpack.c.b16 %v1898, %v1817
        %v2466 = vpack.c.b16 %v1899, %v1818
        %v2467 = vpack.c.b16 %v1900, %v1819
        %v2468 = vpack.c.b16 %v1901, %v1820
        %v2469 = vpack.c.b16 %v1902, %v1821
        %v2470 = vpack.c.b16 %v1903, %v1822
        %v2471 = vpack.c.b16 %v1904, %v1823
        %v2472 = vpack.c.b16 %v1905, %v1824
        %v2473 = vpack.c.b16 %v1906, %v1825
        %v2474 = vpack.c.b16 %v1907, %v1826
        %v2475 = vpack.c.b16 %v1908, %v1827
        %v2476 = vpack.c.b16 %v1909, %v1828
        %v2477 = vpack.c.b16 %v1910, %v1829
        %v2478 = vpack.c.b16 %v1992, %v1911
        %v2479 = vpack.c.b16 %v1993, %v1912
        %v2480 = vpack.c.b16 %v1994, %v1913
        %v2481 = vpack.c.b16 %v1995, %v1914
        %v2482 = vpack.c.b16 %v1996, %v1915
        %v2483 = vpack.c.b16 %v1997, %v1916
        %v2484 = vpack.c.b16 %v1998, %v1917
        %v2485 = vpack.c.b16 %v1999, %v1918
        %v2486 = vpack.c.b16 %v2000, %v1919
        %v2487 = vpack.c.b16 %v2001, %v1920
        %v2488 = vpack.c.b16 %v2002, %v1921
        %v2489 = vpack.c.b16 %v2003, %v1922
        %v2490 = vpack.c.b16 %v2004, %v1923
        %v2491 = vpack.c.b16 %v2005, %v1924
        %v2492 = vpack.c.b16 %v2006, %v1925
        %v2493 = vpack.c.b16 %v2007, %v1926
        %v2494 = vpack.c.b16 %v2008, %v1927
        %v2495 = vpack.c.b16 %v2009, %v1928
        %v2496 = vpack.c.b16 %v2010, %v1929
        %v2497 = vpack.c.b16 %v2011, %v1930
        %v2498 = vpack.c.b16 %v2012, %v1931
        %v2499 = vpack.c.b16 %v2013, %v1932
        %v2500 = vpack.c.b16 %v2014, %v1933
        %v2501 = vpack.c.b16 %v2015, %v1934
        %v2502 = vpack.c.b16 %v2016, %v1935
        %v2503 = vpack.c.b16 %v2017, %v1936
        %v2504 = vpack.c.b16 %v2018, %v1937
        %v2505 = vpack.c.b16 %v2019, %v1938
        %v2506 = vpack.c.b16 %v2020, %v1939
        %v2507 = vpack.c.b16 %v2021, %v1940
        %v2508 = vpack.c.b16 %v2022, %v1941
        %v2509 = vpack.c.b16 %v2023, %v1942
        %v2510 = vpack.c.b16 %v2024, %v1943
        %v2511 = vpack.c.b16 %v2025, %v1944
        %v2512 = vpack.c.b16 %v2026, %v1945
        %v2513 = vpack.c.b16 %v2027, %v1946
        %v2514 = vpack.c.b16 %v2028, %v1947
        %v2515 = vpack.c.b16 %v2029, %v1948
        %v2516 = vpack.c.b16 %v2030, %v1949
        %v2517 = vpack.c.b16 %v2031, %v1950
        %v2518 = vpack.c.b16 %v2032, %v1951
        %v2519 = vpack.c.b16 %v2033, %v1952
        %v2520 = vpack.c.b16 %v2034, %v1953
        %v2521 = vpack.c.b16 %v2035, %v1954
        %v2522 = vpack.c.b16 %v2036, %v1955
        %v2523 = vpack.c.b16 %v2037, %v1956
        %v2524 = vpack.c.b16 %v2038, %v1957
        %v2525 = vpack.c.b16 %v2039, %v1958
        %v2526 = vpack.c.b16 %v2040, %v1959
        %v2527 = vpack.c.b16 %v2041, %v1960
        %v2528 = vpack.c.b16 %v2042, %v1961
        %v2529 = vpack.c.b16 %v2043, %v1962
        %v2530 = vpack.c.b16 %v2044, %v1963
        %v2531 = vpack.c.b16 %v2045, %v1964
        %v2532 = vpack.c.b16 %v2046, %v1965
        %v2533 = vpack.c.b16 %v2047, %v1966
        %v2534 = vpack.c.b16 %v2048, %v1967
        %v2535 = vpack.c.b16 %v2049, %v1968
        %v2536 = vpack.c.b16 %v2050, %v1969
        %v2537 = vpack.c.b16 %v2051, %v1970
        %v2538 = vpack.c.b16 %v2052, %v1971
        %v2539 = vpack.c.b16 %v2053, %v1972
        %v2540 = vpack.c.b16 %v2054, %v1973
        %v2541 = vpack.c.b16 %v2055, %v1974
        %v2542 = vpack.c.b16 %v2056, %v1975
        %v2543 = vpack.c.b16 %v2057, %v1976
        %v2544 = vpack.c.b16 %v2058, %v1977
        %v2545 = vpack.c.b16 %v2059, %v1978
        %v2546 = vpack.c.b16 %v2060, %v1979
        %v2547 = vpack.c.b16 %v2061, %v1980
        %v2548 = vpack.c.b16 %v2062, %v1981
        %v2549 = vpack.c.b16 %v2063, %v1982
        %v2550 = vpack.c.b16 %v2064, %v1983
        %v2551 = vpack.c.b16 %v2065, %v1984
        %v2552 = vpack.c.b16 %v2066, %v1985
        %v2553 = vpack.c.b16 %v2067, %v1986
        %v2554 = vpack.c.b16 %v2068, %v1987
        %v2555 = vpack.c.b16 %v2069, %v1988
        %v2556 = vpack.c.b16 %v2070, %v1989
        %v2557 = vpack.c.b16 %v2071, %v1990
        %v2558 = vpack.c.b16 %v2072, %v1991
        %v2559 = vpack.c.b16 %v2154, %v2073
        %v2560 = vpack.c.b16 %v2155, %v2074
        %v2561 = vpack.c.b16 %v2156, %v2075
        %v2562 = vpack.c.b16 %v2157, %v2076
        %v2563 = vpack.c.b16 %v2158, %v2077
        %v2564 = vpack.c.b16 %v2159, %v2078
        %v2565 = vpack.c.b16 %v2160, %v2079
        %v2566 = vpack.c.b16 %v2161, %v2080
        %v2567 = vpack.c.b16 %v2162, %v2081
        %v2568 = vpack.c.b16 %v2163, %v2082
        %v2569 = vpack.c.b16 %v2164, %v2083
        %v2570 = vpack.c.b16 %v2165, %v2084
        %v2571 = vpack.c.b16 %v2166, %v2085
        %v2572 = vpack.c.b16 %v2167, %v2086
        %v2573 = vpack.c.b16 %v2168, %v2087
        %v2574 = vpack.c.b16 %v2169, %v2088
        %v2575 = vpack.c.b16 %v2170, %v2089
        %v2576 = vpack.c.b16 %v2171, %v2090
        %v2577 = vpack.c.b16 %v2172, %v2091
        %v2578 = vpack.c.b16 %v2173, %v2092
        %v2579 = vpack.c.b16 %v2174, %v2093
        %v2580 = vpack.c.b16 %v2175, %v2094
        %v2581 = vpack.c.b16 %v2176, %v2095
        %v2582 = vpack.c.b16 %v2177, %v2096
        %v2583 = vpack.c.b16 %v2178, %v2097
        %v2584 = vpack.c.b16 %v2179, %v2098
        %v2585 = vpack.c.b16 %v2180, %v2099
        %v2586 = vpack.c.b16 %v2181, %v2100
        %v2587 = vpack.c.b16 %v2182, %v2101
        %v2588 = vpack.c.b16 %v2183, %v2102
        %v2589 = vpack.c.b16 %v2184, %v2103
        %v2590 = vpack.c.b16 %v2185, %v2104
        %v2591 = vpack.c.b16 %v2186, %v2105
        %v2592 = vpack.c.b16 %v2187, %v2106
        %v2593 = vpack.c.b16 %v2188, %v2107
        %v2594 = vpack.c.b16 %v2189, %v2108
        %v2595 = vpack.c.b16 %v2190, %v2109
        %v2596 = vpack.c.b16 %v2191, %v2110
        %v2597 = vpack.c.b16 %v2192, %v2111
        %v2598 = vpack.c.b16 %v2193, %v2112
        %v2599 = vpack.c.b16 %v2194, %v2113
        %v2600 = vpack.c.b16 %v2195, %v2114
        %v2601 = vpack.c.b16 %v2196, %v2115
        %v2602 = vpack.c.b16 %v2197, %v2116
        %v2603 = vpack.c.b16 %v2198, %v2117
        %v2604 = vpack.c.b16 %v2199, %v2118
        %v2605 = vpack.c.b16 %v2200, %v2119
        %v2606 = vpack.c.b16 %v2201, %v2120
        %v2607 = vpack.c.b16 %v2202, %v2121
        %v2608 = vpack.c.b16 %v2203, %v2122
        %v2609 = vpack.c.b16 %v2204, %v2123
        %v2610 = vpack.c.b16 %v2205, %v2124
        %v2611 = vpack.c.b16 %v2206, %v2125
        %v2612 = vpack.c.b16 %v2207, %v2126
        %v2613 = vpack.c.b16 %v2208, %v2127
        %v2614 = vpack.c.b16 %v2209, %v2128
        %v2615 = vpack.c.b16 %v2210, %v2129
        %v2616 = vpack.c.b16 %v2211, %v2130
        %v2617 = vpack.c.b16 %v2212, %v2131
        %v2618 = vpack.c.b16 %v2213, %v2132
        %v2619 = vpack.c.b16 %v2214, %v2133
        %v2620 = vpack.c.b16 %v2215, %v2134
        %v2621 = vpack.c.b16 %v2216, %v2135
        %v2622 = vpack.c.b16 %v2217, %v2136
        %v2623 = vpack.c.b16 %v2218, %v2137
        %v2624 = vpack.c.b16 %v2219, %v2138
        %v2625 = vpack.c.b16 %v2220, %v2139
        %v2626 = vpack.c.b16 %v2221, %v2140
        %v2627 = vpack.c.b16 %v2222, %v2141
        %v2628 = vpack.c.b16 %v2223, %v2142
        %v2629 = vpack.c.b16 %v2224, %v2143
        %v2630 = vpack.c.b16 %v2225, %v2144
        %v2631 = vpack.c.b16 %v2226, %v2145
        %v2632 = vpack.c.b16 %v2227, %v2146
        %v2633 = vpack.c.b16 %v2228, %v2147
        %v2634 = vpack.c.b16 %v2229, %v2148
        %v2635 = vpack.c.b16 %v2230, %v2149
        %v2636 = vpack.c.b16 %v2231, %v2150
        %v2637 = vpack.c.b16 %v2232, %v2151
        %v2638 = vpack.c.b16 %v2233, %v2152
        %v2639 = vpack.c.b16 %v2234, %v2153
        %v2640 = vpack.c.b16 %v2235, %v2235
        %v2641 = vpack.c.b16 %v2236, %v2236
        %v2642 = vpack.c.b16 %v2237, %v2237
        %v2643 = vpack.c.b16 %v2238, %v2238
        %v2644 = vpack.c.b16 %v2239, %v2239
        %v2645 = vpack.c.b16 %v2240, %v2240
        %v2646 = vpack.c.b16 %v2241, %v2241
        %v2647 = vpack.c.b16 %v2242, %v2242
        %v2648 = vpack.c.b16 %v2243, %v2243
        %v2649 = vpack.c.b16 %v2244, %v2244
        %v2650 = vpack.c.b16 %v2245, %v2245
        %v2651 = vpack.c.b16 %v2246, %v2246
        %v2652 = vpack.c.b16 %v2247, %v2247
        %v2653 = vpack.c.b16 %v2248, %v2248
        %v2654 = vpack.c.b16 %v2249, %v2249
        %v2655 = vpack.c.b16 %v2250, %v2250
        %v2656 = vpack.c.b16 %v2251, %v2251
        %v2657 = vpack.c.b16 %v2252, %v2252
        %v2658 = vpack.c.b16 %v2253, %v2253
        %v2659 = vpack.c.b16 %v2254, %v2254
        %v2660 = vpack.c.b16 %v2255, %v2255
        %v2661 = vpack.c.b16 %v2256, %v2256
        %v2662 = vpack.c.b16 %v2257, %v2257
        %v2663 = vpack.c.b16 %v2258, %v2258
        %v2664 = vpack.c.b16 %v2259, %v2259
        %v2665 = vpack.c.b16 %v2260, %v2260
        %v2666 = vpack.c.b16 %v2261, %v2261
        %v2667 = vpack.c.b16 %v2262, %v2262
        %v2668 = vpack.c.b16 %v2263, %v2263
        %v2669 = vpack.c.b16 %v2264, %v2264
        %v2670 = vpack.c.b16 %v2265, %v2265
        %v2671 = vpack.c.b16 %v2266, %v2266
        %v2672 = vpack.c.b16 %v2267, %v2267
        %v2673 = vpack.c.b16 %v2268, %v2268
        %v2674 = vpack.c.b16 %v2269, %v2269
        %v2675 = vpack.c.b16 %v2270, %v2270
        %v2676 = vpack.c.b16 %v2271, %v2271
        %v2677 = vpack.c.b16 %v2272, %v2272
        %v2678 = vpack.c.b16 %v2273, %v2273
        %v2679 = vpack.c.b16 %v2274, %v2274
        %v2680 = vpack.c.b16 %v2275, %v2275
        %v2681 = vpack.c.b16 %v2276, %v2276
        %v2682 = vpack.c.b16 %v2277, %v2277
        %v2683 = vpack.c.b16 %v2278, %v2278
        %v2684 = vpack.c.b16 %v2279, %v2279
        %v2685 = vpack.c.b16 %v2280, %v2280
        %v2686 = vpack.c.b16 %v2281, %v2281
        %v2687 = vpack.c.b16 %v2282, %v2282
        %v2688 = vpack.c.b16 %v2283, %v2283
        %v2689 = vpack.c.b16 %v2284, %v2284
        %v2690 = vpack.c.b16 %v2285, %v2285
        %v2691 = vpack.c.b16 %v2286, %v2286
        %v2692 = vpack.c.b16 %v2287, %v2287
        %v2693 = vpack.c.b16 %v2288, %v2288
        %v2694 = vpack.c.b16 %v2289, %v2289
        %v2695 = vpack.c.b16 %v2290, %v2290
        %v2696 = vpack.c.b16 %v2291, %v2291
        %v2697 = vpack.c.b16 %v2292, %v2292
        %v2698 = vpack.c.b16 %v2293, %v2293
        %v2699 = vpack.c.b16 %v2294, %v2294
        %v2700 = vpack.c.b16 %v2295, %v2295
        %v2701 = vpack.c.b16 %v2296, %v2296
        %v2702 = vpack.c.b16 %v2297, %v2297
        %v2703 = vpack.c.b16 %v2298, %v2298
        %v2704 = vpack.c.b16 %v2299, %v2299
        %v2705 = vpack.c.b16 %v2300, %v2300
        %v2706 = vpack.c.b16 %v2301, %v2301
        %v2707 = vpack.c.b16 %v2302, %v2302
        %v2708 = vpack.c.b16 %v2303, %v2303
        %v2709 = vpack.c.b16 %v2304, %v2304
        %v2710 = vpack.c.b16 %v2305, %v2305
        %v2711 = vpack.c.b16 %v2306, %v2306
        %v2712 = vpack.c.b16 %v2307, %v2307
        %v2713 = vpack.c.b16 %v2308, %v2308
        %v2714 = vpack.c.b16 %v2309, %v2309
        %v2715 = vpack.c.b16 %v2310, %v2310
        %v2716 = vpack.c.b16 %v2311, %v2311
        %v2717 = vpack.c.b16 %v2312, %v2312
        %v2718 = vpack.c.b16 %v2313, %v2313
        %v2719 = vpack.c.b16 %v2314, %v2314
        %v2720 = vpack.c.b16 %v2315, %v2315
        %vm3045 = vcmask 564224
        %v3047 = vsel %vm3045, %v421, 0
        %vm3049 = vcmask 1041408
        %vm3050 = vcmask 1042432
        %v3051 = vsel %vm3049, 4294967295, 65535
        %v3052 = vsel %vm3050, %v3051, 0
        %v3054 = vand.u32 %v2640, %v3052
        %v3057 = vand.u32 %v2641, %v3052
        %v3060 = vand.u32 %v2642, %v3052
        %v3063 = vand.u32 %v2643, %v3052
        %v3066 = vand.u32 %v2644, %v3052
        %v3069 = vand.u32 %v2645, %v3052
        %v3072 = vand.u32 %v2646, %v3052
        %v3075 = vand.u32 %v2647, %v3052
        %v3078 = vand.u32 %v2648, %v3052
        %v3081 = vand.u32 %v2649, %v3052
        %v3084 = vand.u32 %v2650, %v3052
        %v3087 = vand.u32 %v2651, %v3052
        %v3090 = vand.u32 %v2652, %v3052
        %v3093 = vand.u32 %v2653, %v3052
        %v3096 = vand.u32 %v2654, %v3052
        %v3099 = vand.u32 %v2655, %v3052
        %v3102 = vand.u32 %v2656, %v3052
        %v3105 = vand.u32 %v2657, %v3052
        %v3108 = vand.u32 %v2658, %v3052
        %v3111 = vand.u32 %v2659, %v3052
        %v3114 = vand.u32 %v2660, %v3052
        %v3117 = vand.u32 %v2661, %v3052
        %v3120 = vand.u32 %v2662, %v3052
        %v3123 = vand.u32 %v2663, %v3052
        %v3126 = vand.u32 %v2664, %v3052
        %v3129 = vand.u32 %v2665, %v3052
        %v3132 = vand.u32 %v2666, %v3052
        %v3135 = vand.u32 %v2667, %v3052
        %v3138 = vand.u32 %v2668, %v3052
        %v3141 = vand.u32 %v2669, %v3052
        %v3144 = vand.u32 %v2670, %v3052
        %v3147 = vand.u32 %v2671, %v3052
        %v3150 = vand.u32 %v2672, %v3052
        %v3153 = vand.u32 %v2673, %v3052
        %v3156 = vand.u32 %v2674, %v3052
        %v3159 = vand.u32 %v2675, %v3052
        %v3162 = vand.u32 %v2676, %v3052
        %v3165 = vand.u32 %v2677, %v3052
        %v3168 = vand.u32 %v2678, %v3052
        %v3171 = vand.u32 %v2679, %v3052
        %v3174 = vand.u32 %v2680, %v3052
        %v3177 = vand.u32 %v2681, %v3052
        %v3180 = vand.u32 %v2682, %v3052
        %v3183 = vand.u32 %v2683, %v3052
        %v3186 = vand.u32 %v2684, %v3052
        %v3189 = vand.u32 %v2685, %v3052
        %v3192 = vand.u32 %v2686, %v3052
        %v3195 = vand.u32 %v2687, %v3052
        %v3198 = vand.u32 %v2688, %v3052
        %v3201 = vand.u32 %v2689, %v3052
        %v3204 = vand.u32 %v2690, %v3052
        %v3207 = vand.u32 %v2691, %v3052
        %v3210 = vand.u32 %v2692, %v3052
        %v3213 = vand.u32 %v2693, %v3052
        %v3216 = vand.u32 %v2694, %v3052
        %v3219 = vand.u32 %v2695, %v3052
        %v3222 = vand.u32 %v2696, %v3052
        %v3225 = vand.u32 %v2697, %v3052
        %v3228 = vand.u32 %v2698, %v3052
        %v3231 = vand.u32 %v2699, %v3052
        %v3234 = vand.u32 %v2700, %v3052
        %v3237 = vand.u32 %v2701, %v3052
        %v3240 = vand.u32 %v2702, %v3052
        %v3243 = vand.u32 %v2703, %v3052
        %v3246 = vand.u32 %v2704, %v3052
        %v3249 = vand.u32 %v2705, %v3052
        %v3252 = vand.u32 %v2706, %v3052
        %v3255 = vand.u32 %v2707, %v3052
        %v3258 = vand.u32 %v2708, %v3052
        %v3261 = vand.u32 %v2709, %v3052
        %v3264 = vand.u32 %v2710, %v3052
        %v3267 = vand.u32 %v2711, %v3052
        %v3270 = vand.u32 %v2712, %v3052
        %v3273 = vand.u32 %v2713, %v3052
        %v3276 = vand.u32 %v2714, %v3052
        %v3279 = vand.u32 %v2715, %v3052
        %v3282 = vand.u32 %v2716, %v3052
        %v3285 = vand.u32 %v2717, %v3052
        %v3288 = vand.u32 %v2718, %v3052
        %v3291 = vand.u32 %v2719, %v3052
        %v3294 = vand.u32 %v2720, %v3052
        %3296 = vmatprep.subr.bf16.mxu0 0
        %3297 = vmatpush1.bf16.msra.mxu0 0
        %3298 = vmatprep.subr.bf16.mxu0 0
        %3299 = vmatpush1.bf16.msra.mxu0 0
        %3300 = vmatprep.subr.bf16.mxu0 0
        %3301 = vmatpush1.bf16.msra.mxu0 0
        %3302 = vmatprep.subr.bf16.mxu0 %v3057
        %3303 = vmatpush1.bf16.msra.mxu0 %v3054
        %3304 = vmatprep.subr.bf16.mxu0 %v2560
        %3305 = vmatpush1.bf16.msra.mxu0 %v2559
        %3306 = vmatprep.subr.bf16.mxu0 %v2479
        %3307 = vmatpush1.bf16.msra.mxu0 %v2478
        %3308 = vmatprep.subr.bf16.mxu0 %v2398
        %3309 = vmatpush1.bf16.msra.mxu0 %v2397
        %3310 = vmatprep.subr.bf16.mxu0 %v2317
        %3311 = vmatpush1.bf16.msra.mxu0 %v2316
        %3312 = vmatprep.subr.bf16.mxu0 0
        %3313 = vmatpush2.bf16.msra.mxu0 0
        %3314 = vmatprep.subr.bf16.mxu0 0
        %3315 = vmatpush2.bf16.msra.mxu0 0
        %3316 = vmatprep.subr.bf16.mxu0 0
        %3317 = vmatpush2.bf16.msra.mxu0 0
        %3318 = vmatprep.subr.bf16.mxu0 0
        %3319 = vmatpush2.bf16.msra.mxu0 0
        %3320 = vmatprep.subr.bf16.mxu0 0
        %3321 = vmatpush2.bf16.msra.mxu0 0
        %3322 = vmatprep.subr.bf16.mxu0 0
        %3323 = vmatpush2.bf16.msra.mxu0 0
        %3324 = vmatprep.subr.bf16.mxu0 0
        %3325 = vmatpush2.bf16.msra.mxu0 0
        %3326 = vmatprep.subr.bf16.mxu0 0
        %3327 = vmatpush2.bf16.msra.mxu0 0
        %3328 = vmatprep.mubr.bf16.mxu0 0
        %3329 = vmatmul.mubr.bf16.gmra.mxu0 %v3047
        %v3330 = vpop.f32.mrf.mxu0
        %v3331 = vadd.f32 %v816, %v3330
        %v3332 = vpop.f32.mrf.mxu0
        %v3333 = vadd.f32 %v820, %v3332
        %v3334 = vpop.f32.mrf.mxu0
        %v3335 = vpop.f32.mrf.mxu0
        %3336 = vdwg.mxu0
        %3337 = vmatprep.subr.bf16.mxu0 0
        %3338 = vmatpush1.bf16.msra.mxu0 0
        %3339 = vmatprep.subr.bf16.mxu0 0
        %3340 = vmatpush1.bf16.msra.mxu0 0
        %3341 = vmatprep.subr.bf16.mxu0 0
        %3342 = vmatpush1.bf16.msra.mxu0 0
        %3343 = vmatprep.subr.bf16.mxu0 %v3063
        %3344 = vmatpush1.bf16.msra.mxu0 %v3060
        %3345 = vmatprep.subr.bf16.mxu0 %v2562
        %3346 = vmatpush1.bf16.msra.mxu0 %v2561
        %3347 = vmatprep.subr.bf16.mxu0 %v2481
        %3348 = vmatpush1.bf16.msra.mxu0 %v2480
        %3349 = vmatprep.subr.bf16.mxu0 %v2400
        %3350 = vmatpush1.bf16.msra.mxu0 %v2399
        %3351 = vmatprep.subr.bf16.mxu0 %v2319
        %3352 = vmatpush1.bf16.msra.mxu0 %v2318
        %3353 = vmatprep.subr.bf16.mxu0 0
        %3354 = vmatpush2.bf16.msra.mxu0 0
        %3355 = vmatprep.subr.bf16.mxu0 0
        %3356 = vmatpush2.bf16.msra.mxu0 0
        %3357 = vmatprep.subr.bf16.mxu0 0
        %3358 = vmatpush2.bf16.msra.mxu0 0
        %3359 = vmatprep.subr.bf16.mxu0 0
        %3360 = vmatpush2.bf16.msra.mxu0 0
        %3361 = vmatprep.subr.bf16.mxu0 0
        %3362 = vmatpush2.bf16.msra.mxu0 0
        %3363 = vmatprep.subr.bf16.mxu0 0
        %3364 = vmatpush2.bf16.msra.mxu0 0
        %3365 = vmatprep.subr.bf16.mxu0 0
        %3366 = vmatpush2.bf16.msra.mxu0 0
        %3367 = vmatprep.subr.bf16.mxu0 0
        %3368 = vmatpush2.bf16.msra.mxu0 0
        %3369 = vmatprep.mubr.bf16.mxu0 0
        %3370 = vmatmul.mubr.bf16.gmra.mxu0 %v3047
        %v3371 = vpop.f32.mrf.mxu0
        %v3372 = vadd.f32 %v824, %v3371
        %v3373 = vpop.f32.mrf.mxu0
        %v3374 = vadd.f32 %v828, %v3373
        %v3375 = vpop.f32.mrf.mxu0
        %v3376 = vpop.f32.mrf.mxu0
        %3377 = vdwg.mxu0
        %3378 = vmatprep.subr.bf16.mxu0 0
        %3379 = vmatpush1.bf16.msra.mxu0 0
        %3380 = vmatprep.subr.bf16.mxu0 0
        %3381 = vmatpush1.bf16.msra.mxu0 0
        %3382 = vmatprep.subr.bf16.mxu0 0
        %3383 = vmatpush1.bf16.msra.mxu0 0
        %3384 = vmatprep.subr.bf16.mxu0 %v3069
        %3385 = vmatpush1.bf16.msra.mxu0 %v3066
        %3386 = vmatprep.subr.bf16.mxu0 %v2564
        %3387 = vmatpush1.bf16.msra.mxu0 %v2563
        %3388 = vmatprep.subr.bf16.mxu0 %v2483
        %3389 = vmatpush1.bf16.msra.mxu0 %v2482
        %3390 = vmatprep.subr.bf16.mxu0 %v2402
        %3391 = vmatpush1.bf16.msra.mxu0 %v2401
        %3392 = vmatprep.subr.bf16.mxu0 %v2321
        %3393 = vmatpush1.bf16.msra.mxu0 %v2320
        %3394 = vmatprep.subr.bf16.mxu0 0
        %3395 = vmatpush2.bf16.msra.mxu0 0
        %3396 = vmatprep.subr.bf16.mxu0 0
        %3397 = vmatpush2.bf16.msra.mxu0 0
        %3398 = vmatprep.subr.bf16.mxu0 0
        %3399 = vmatpush2.bf16.msra.mxu0 0
        %3400 = vmatprep.subr.bf16.mxu0 0
        %3401 = vmatpush2.bf16.msra.mxu0 0
        %3402 = vmatprep.subr.bf16.mxu0 0
        %3403 = vmatpush2.bf16.msra.mxu0 0
        %3404 = vmatprep.subr.bf16.mxu0 0
        %3405 = vmatpush2.bf16.msra.mxu0 0
        %3406 = vmatprep.subr.bf16.mxu0 0
        %3407 = vmatpush2.bf16.msra.mxu0 0
        %3408 = vmatprep.subr.bf16.mxu0 0
        %3409 = vmatpush2.bf16.msra.mxu0 0
        %3410 = vmatprep.mubr.bf16.mxu0 0
        %3411 = vmatmul.mubr.bf16.gmra.mxu0 %v3047
        %v3412 = vpop.f32.mrf.mxu0
        %v3413 = vadd.f32 %v832, %v3412
        %v3414 = vpop.f32.mrf.mxu0
        %v3415 = vadd.f32 %v836, %v3414
        %v3416 = vpop.f32.mrf.mxu0
        %v3417 = vpop.f32.mrf.mxu0
        %3418 = vdwg.mxu0
        %3419 = vmatprep.subr.bf16.mxu0 0
        %3420 = vmatpush1.bf16.msra.mxu0 0
        %3421 = vmatprep.subr.bf16.mxu0 0
        %3422 = vmatpush1.bf16.msra.mxu0 0
        %3423 = vmatprep.subr.bf16.mxu0 0
        %3424 = vmatpush1.bf16.msra.mxu0 0
        %3425 = vmatprep.subr.bf16.mxu0 %v3075
        %3426 = vmatpush1.bf16.msra.mxu0 %v3072
        %3427 = vmatprep.subr.bf16.mxu0 %v2566
        %3428 = vmatpush1.bf16.msra.mxu0 %v2565
        %3429 = vmatprep.subr.bf16.mxu0 %v2485
        %3430 = vmatpush1.bf16.msra.mxu0 %v2484
        %3431 = vmatprep.subr.bf16.mxu0 %v2404
        %3432 = vmatpush1.bf16.msra.mxu0 %v2403
        %3433 = vmatprep.subr.bf16.mxu0 %v2323
        %3434 = vmatpush1.bf16.msra.mxu0 %v2322
        %3435 = vmatprep.subr.bf16.mxu0 0
        %3436 = vmatpush2.bf16.msra.mxu0 0
        %3437 = vmatprep.subr.bf16.mxu0 0
        %3438 = vmatpush2.bf16.msra.mxu0 0
        %3439 = vmatprep.subr.bf16.mxu0 0
        %3440 = vmatpush2.bf16.msra.mxu0 0
        %3441 = vmatprep.subr.bf16.mxu0 0
        %3442 = vmatpush2.bf16.msra.mxu0 0
        %3443 = vmatprep.subr.bf16.mxu0 0
        %3444 = vmatpush2.bf16.msra.mxu0 0
        %3445 = vmatprep.subr.bf16.mxu0 0
        %3446 = vmatpush2.bf16.msra.mxu0 0
        %3447 = vmatprep.subr.bf16.mxu0 0
        %3448 = vmatpush2.bf16.msra.mxu0 0
        %3449 = vmatprep.subr.bf16.mxu0 0
        %3450 = vmatpush2.bf16.msra.mxu0 0
        %3451 = vmatprep.mubr.bf16.mxu0 0
        %3452 = vmatmul.mubr.bf16.gmra.mxu0 %v3047
        %v3453 = vpop.f32.mrf.mxu0
        %v3454 = vadd.f32 %v840, %v3453
        %v3455 = vpop.f32.mrf.mxu0
        %v3456 = vadd.f32 %v844, %v3455
        %v3457 = vpop.f32.mrf.mxu0
        %v3458 = vpop.f32.mrf.mxu0
        %3459 = vdwg.mxu0
        %3460 = vmatprep.subr.bf16.mxu0 0
        %3461 = vmatpush1.bf16.msra.mxu0 0
        %3462 = vmatprep.subr.bf16.mxu0 0
        %3463 = vmatpush1.bf16.msra.mxu0 0
        %3464 = vmatprep.subr.bf16.mxu0 0
        %3465 = vmatpush1.bf16.msra.mxu0 0
        %3466 = vmatprep.subr.bf16.mxu0 %v3081
        %3467 = vmatpush1.bf16.msra.mxu0 %v3078
        %3468 = vmatprep.subr.bf16.mxu0 %v2568
        %3469 = vmatpush1.bf16.msra.mxu0 %v2567
        %3470 = vmatprep.subr.bf16.mxu0 %v2487
        %3471 = vmatpush1.bf16.msra.mxu0 %v2486
        %3472 = vmatprep.subr.bf16.mxu0 %v2406
        %3473 = vmatpush1.bf16.msra.mxu0 %v2405
        %3474 = vmatprep.subr.bf16.mxu0 %v2325
        %3475 = vmatpush1.bf16.msra.mxu0 %v2324
        %3476 = vmatprep.subr.bf16.mxu0 0
        %3477 = vmatpush2.bf16.msra.mxu0 0
        %3478 = vmatprep.subr.bf16.mxu0 0
        %3479 = vmatpush2.bf16.msra.mxu0 0
        %3480 = vmatprep.subr.bf16.mxu0 0
        %3481 = vmatpush2.bf16.msra.mxu0 0
        %3482 = vmatprep.subr.bf16.mxu0 0
        %3483 = vmatpush2.bf16.msra.mxu0 0
        %3484 = vmatprep.subr.bf16.mxu0 0
        %3485 = vmatpush2.bf16.msra.mxu0 0
        %3486 = vmatprep.subr.bf16.mxu0 0
        %3487 = vmatpush2.bf16.msra.mxu0 0
        %3488 = vmatprep.subr.bf16.mxu0 0
        %3489 = vmatpush2.bf16.msra.mxu0 0
        %3490 = vmatprep.subr.bf16.mxu0 0
        %3491 = vmatpush2.bf16.msra.mxu0 0
        %3492 = vmatprep.mubr.bf16.mxu0 0
        %3493 = vmatmul.mubr.bf16.gmra.mxu0 %v3047
        %v3494 = vpop.f32.mrf.mxu0
        %v3495 = vadd.f32 %v848, %v3494
        %v3496 = vpop.f32.mrf.mxu0
        %v3497 = vadd.f32 %v852, %v3496
        %v3498 = vpop.f32.mrf.mxu0
        %v3499 = vpop.f32.mrf.mxu0
        %3500 = vdwg.mxu0
        %3501 = vmatprep.subr.bf16.mxu0 0
        %3502 = vmatpush1.bf16.msra.mxu0 0
        %3503 = vmatprep.subr.bf16.mxu0 0
        %3504 = vmatpush1.bf16.msra.mxu0 0
        %3505 = vmatprep.subr.bf16.mxu0 0
        %3506 = vmatpush1.bf16.msra.mxu0 0
        %3507 = vmatprep.subr.bf16.mxu0 %v3087
        %3508 = vmatpush1.bf16.msra.mxu0 %v3084
        %3509 = vmatprep.subr.bf16.mxu0 %v2570
        %3510 = vmatpush1.bf16.msra.mxu0 %v2569
        %3511 = vmatprep.subr.bf16.mxu0 %v2489
        %3512 = vmatpush1.bf16.msra.mxu0 %v2488
        %3513 = vmatprep.subr.bf16.mxu0 %v2408
        %3514 = vmatpush1.bf16.msra.mxu0 %v2407
        %3515 = vmatprep.subr.bf16.mxu0 %v2327
        %3516 = vmatpush1.bf16.msra.mxu0 %v2326
        %3517 = vmatprep.subr.bf16.mxu0 0
        %3518 = vmatpush2.bf16.msra.mxu0 0
        %3519 = vmatprep.subr.bf16.mxu0 0
        %3520 = vmatpush2.bf16.msra.mxu0 0
        %3521 = vmatprep.subr.bf16.mxu0 0
        %3522 = vmatpush2.bf16.msra.mxu0 0
        %3523 = vmatprep.subr.bf16.mxu0 0
        %3524 = vmatpush2.bf16.msra.mxu0 0
        %3525 = vmatprep.subr.bf16.mxu0 0
        %3526 = vmatpush2.bf16.msra.mxu0 0
        %3527 = vmatprep.subr.bf16.mxu0 0
        %3528 = vmatpush2.bf16.msra.mxu0 0
        %3529 = vmatprep.subr.bf16.mxu0 0
        %3530 = vmatpush2.bf16.msra.mxu0 0
        %3531 = vmatprep.subr.bf16.mxu0 0
        %3532 = vmatpush2.bf16.msra.mxu0 0
        %3533 = vmatprep.mubr.bf16.mxu0 0
        %3534 = vmatmul.mubr.bf16.gmra.mxu0 %v3047
        %v3535 = vpop.f32.mrf.mxu0
        %v3536 = vadd.f32 %v856, %v3535
        %v3537 = vpop.f32.mrf.mxu0
        %v3538 = vadd.f32 %v860, %v3537
        %v3539 = vpop.f32.mrf.mxu0
        %v3540 = vpop.f32.mrf.mxu0
        %3541 = vdwg.mxu0
        %3542 = vmatprep.subr.bf16.mxu0 0
        %3543 = vmatpush1.bf16.msra.mxu0 0
        %3544 = vmatprep.subr.bf16.mxu0 0
        %3545 = vmatpush1.bf16.msra.mxu0 0
        %3546 = vmatprep.subr.bf16.mxu0 0
        %3547 = vmatpush1.bf16.msra.mxu0 0
        %3548 = vmatprep.subr.bf16.mxu0 %v3093
        %3549 = vmatpush1.bf16.msra.mxu0 %v3090
        %3550 = vmatprep.subr.bf16.mxu0 %v2572
        %3551 = vmatpush1.bf16.msra.mxu0 %v2571
        %3552 = vmatprep.subr.bf16.mxu0 %v2491
        %3553 = vmatpush1.bf16.msra.mxu0 %v2490
        %3554 = vmatprep.subr.bf16.mxu0 %v2410
        %3555 = vmatpush1.bf16.msra.mxu0 %v2409
        %3556 = vmatprep.subr.bf16.mxu0 %v2329
        %3557 = vmatpush1.bf16.msra.mxu0 %v2328
        %3558 = vmatprep.subr.bf16.mxu0 0
        %3559 = vmatpush2.bf16.msra.mxu0 0
        %3560 = vmatprep.subr.bf16.mxu0 0
        %3561 = vmatpush2.bf16.msra.mxu0 0
        %3562 = vmatprep.subr.bf16.mxu0 0
        %3563 = vmatpush2.bf16.msra.mxu0 0
        %3564 = vmatprep.subr.bf16.mxu0 0
        %3565 = vmatpush2.bf16.msra.mxu0 0
        %3566 = vmatprep.subr.bf16.mxu0 0
        %3567 = vmatpush2.bf16.msra.mxu0 0
        %3568 = vmatprep.subr.bf16.mxu0 0
        %3569 = vmatpush2.bf16.msra.mxu0 0
        %3570 = vmatprep.subr.bf16.mxu0 0
        %3571 = vmatpush2.bf16.msra.mxu0 0
        %3572 = vmatprep.subr.bf16.mxu0 0
        %3573 = vmatpush2.bf16.msra.mxu0 0
        %3574 = vmatprep.mubr.bf16.mxu0 0
        %3575 = vmatmul.mubr.bf16.gmra.mxu0 %v3047
        %v3576 = vpop.f32.mrf.mxu0
        %v3577 = vadd.f32 %v864, %v3576
        %v3578 = vpop.f32.mrf.mxu0
        %v3579 = vadd.f32 %v868, %v3578
        %v3580 = vpop.f32.mrf.mxu0
        %v3581 = vpop.f32.mrf.mxu0
        %3582 = vdwg.mxu0
        %3583 = vmatprep.subr.bf16.mxu0 0
        %3584 = vmatpush1.bf16.msra.mxu0 0
        %3585 = vmatprep.subr.bf16.mxu0 0
        %3586 = vmatpush1.bf16.msra.mxu0 0
        %3587 = vmatprep.subr.bf16.mxu0 0
        %3588 = vmatpush1.bf16.msra.mxu0 0
        %3589 = vmatprep.subr.bf16.mxu0 %v3099
        %3590 = vmatpush1.bf16.msra.mxu0 %v3096
        %3591 = vmatprep.subr.bf16.mxu0 %v2574
        %3592 = vmatpush1.bf16.msra.mxu0 %v2573
        %3593 = vmatprep.subr.bf16.mxu0 %v2493
        %3594 = vmatpush1.bf16.msra.mxu0 %v2492
        %3595 = vmatprep.subr.bf16.mxu0 %v2412
        %3596 = vmatpush1.bf16.msra.mxu0 %v2411
        %3597 = vmatprep.subr.bf16.mxu0 %v2331
        %3598 = vmatpush1.bf16.msra.mxu0 %v2330
        %3599 = vmatprep.subr.bf16.mxu0 0
        %3600 = vmatpush2.bf16.msra.mxu0 0
        %3601 = vmatprep.subr.bf16.mxu0 0
        %3602 = vmatpush2.bf16.msra.mxu0 0
        %3603 = vmatprep.subr.bf16.mxu0 0
        %3604 = vmatpush2.bf16.msra.mxu0 0
        %3605 = vmatprep.subr.bf16.mxu0 0
        %3606 = vmatpush2.bf16.msra.mxu0 0
        %3607 = vmatprep.subr.bf16.mxu0 0
        %3608 = vmatpush2.bf16.msra.mxu0 0
        %3609 = vmatprep.subr.bf16.mxu0 0
        %3610 = vmatpush2.bf16.msra.mxu0 0
        %3611 = vmatprep.subr.bf16.mxu0 0
        %3612 = vmatpush2.bf16.msra.mxu0 0
        %3613 = vmatprep.subr.bf16.mxu0 0
        %3614 = vmatpush2.bf16.msra.mxu0 0
        %3615 = vmatprep.mubr.bf16.mxu0 0
        %3616 = vmatmul.mubr.bf16.gmra.mxu0 %v3047
        %v3617 = vpop.f32.mrf.mxu0
        %v3618 = vadd.f32 %v872, %v3617
        %v3619 = vpop.f32.mrf.mxu0
        %v3620 = vadd.f32 %v876, %v3619
        %v3621 = vpop.f32.mrf.mxu0
        %v3622 = vpop.f32.mrf.mxu0
        %3623 = vdwg.mxu0
        %3624 = vmatprep.subr.bf16.mxu0 0
        %3625 = vmatpush1.bf16.msra.mxu0 0
        %3626 = vmatprep.subr.bf16.mxu0 0
        %3627 = vmatpush1.bf16.msra.mxu0 0
        %3628 = vmatprep.subr.bf16.mxu0 0
        %3629 = vmatpush1.bf16.msra.mxu0 0
        %3630 = vmatprep.subr.bf16.mxu0 %v3105
        %3631 = vmatpush1.bf16.msra.mxu0 %v3102
        %3632 = vmatprep.subr.bf16.mxu0 %v2576
        %3633 = vmatpush1.bf16.msra.mxu0 %v2575
        %3634 = vmatprep.subr.bf16.mxu0 %v2495
        %3635 = vmatpush1.bf16.msra.mxu0 %v2494
        %3636 = vmatprep.subr.bf16.mxu0 %v2414
        %3637 = vmatpush1.bf16.msra.mxu0 %v2413
        %3638 = vmatprep.subr.bf16.mxu0 %v2333
        %3639 = vmatpush1.bf16.msra.mxu0 %v2332
        %3640 = vmatprep.subr.bf16.mxu0 0
        %3641 = vmatpush2.bf16.msra.mxu0 0
        %3642 = vmatprep.subr.bf16.mxu0 0
        %3643 = vmatpush2.bf16.msra.mxu0 0
        %3644 = vmatprep.subr.bf16.mxu0 0
        %3645 = vmatpush2.bf16.msra.mxu0 0
        %3646 = vmatprep.subr.bf16.mxu0 0
        %3647 = vmatpush2.bf16.msra.mxu0 0
        %3648 = vmatprep.subr.bf16.mxu0 0
        %3649 = vmatpush2.bf16.msra.mxu0 0
        %3650 = vmatprep.subr.bf16.mxu0 0
        %3651 = vmatpush2.bf16.msra.mxu0 0
        %3652 = vmatprep.subr.bf16.mxu0 0
        %3653 = vmatpush2.bf16.msra.mxu0 0
        %3654 = vmatprep.subr.bf16.mxu0 0
        %3655 = vmatpush2.bf16.msra.mxu0 0
        %3656 = vmatprep.mubr.bf16.mxu0 0
        %3657 = vmatmul.mubr.bf16.gmra.mxu0 %v3047
        %v3658 = vpop.f32.mrf.mxu0
        %v3659 = vadd.f32 %v880, %v3658
        %v3660 = vpop.f32.mrf.mxu0
        %v3661 = vadd.f32 %v884, %v3660
        %v3662 = vpop.f32.mrf.mxu0
        %v3663 = vpop.f32.mrf.mxu0
        %3664 = vdwg.mxu0
        %3665 = vmatprep.subr.bf16.mxu0 0
        %3666 = vmatpush1.bf16.msra.mxu0 0
        %3667 = vmatprep.subr.bf16.mxu0 0
        %3668 = vmatpush1.bf16.msra.mxu0 0
        %3669 = vmatprep.subr.bf16.mxu0 0
        %3670 = vmatpush1.bf16.msra.mxu0 0
        %3671 = vmatprep.subr.bf16.mxu0 %v3111
        %3672 = vmatpush1.bf16.msra.mxu0 %v3108
        %3673 = vmatprep.subr.bf16.mxu0 %v2578
        %3674 = vmatpush1.bf16.msra.mxu0 %v2577
        %3675 = vmatprep.subr.bf16.mxu0 %v2497
        %3676 = vmatpush1.bf16.msra.mxu0 %v2496
        %3677 = vmatprep.subr.bf16.mxu0 %v2416
        %3678 = vmatpush1.bf16.msra.mxu0 %v2415
        %3679 = vmatprep.subr.bf16.mxu0 %v2335
        %3680 = vmatpush1.bf16.msra.mxu0 %v2334
        %3681 = vmatprep.subr.bf16.mxu0 0
        %3682 = vmatpush2.bf16.msra.mxu0 0
        %3683 = vmatprep.subr.bf16.mxu0 0
        %3684 = vmatpush2.bf16.msra.mxu0 0
        %3685 = vmatprep.subr.bf16.mxu0 0
        %3686 = vmatpush2.bf16.msra.mxu0 0
        %3687 = vmatprep.subr.bf16.mxu0 0
        %3688 = vmatpush2.bf16.msra.mxu0 0
        %3689 = vmatprep.subr.bf16.mxu0 0
        %3690 = vmatpush2.bf16.msra.mxu0 0
        %3691 = vmatprep.subr.bf16.mxu0 0
        %3692 = vmatpush2.bf16.msra.mxu0 0
        %3693 = vmatprep.subr.bf16.mxu0 0
        %3694 = vmatpush2.bf16.msra.mxu0 0
        %3695 = vmatprep.subr.bf16.mxu0 0
        %3696 = vmatpush2.bf16.msra.mxu0 0
        %3697 = vmatprep.mubr.bf16.mxu0 0
        %3698 = vmatmul.mubr.bf16.gmra.mxu0 %v3047
        %v3699 = vpop.f32.mrf.mxu0
        %v3700 = vadd.f32 %v888, %v3699
        %v3701 = vpop.f32.mrf.mxu0
        %v3702 = vadd.f32 %v892, %v3701
        %v3703 = vpop.f32.mrf.mxu0
        %v3704 = vpop.f32.mrf.mxu0
        %3705 = vdwg.mxu0
        %3706 = vmatprep.subr.bf16.mxu0 0
        %3707 = vmatpush1.bf16.msra.mxu0 0
        %3708 = vmatprep.subr.bf16.mxu0 0
        %3709 = vmatpush1.bf16.msra.mxu0 0
        %3710 = vmatprep.subr.bf16.mxu0 0
        %3711 = vmatpush1.bf16.msra.mxu0 0
        %3712 = vmatprep.subr.bf16.mxu0 %v3117
        %3713 = vmatpush1.bf16.msra.mxu0 %v3114
        %3714 = vmatprep.subr.bf16.mxu0 %v2580
        %3715 = vmatpush1.bf16.msra.mxu0 %v2579
        %3716 = vmatprep.subr.bf16.mxu0 %v2499
        %3717 = vmatpush1.bf16.msra.mxu0 %v2498
        %3718 = vmatprep.subr.bf16.mxu0 %v2418
        %3719 = vmatpush1.bf16.msra.mxu0 %v2417
        %3720 = vmatprep.subr.bf16.mxu0 %v2337
        %3721 = vmatpush1.bf16.msra.mxu0 %v2336
        %3722 = vmatprep.subr.bf16.mxu0 0
        %3723 = vmatpush2.bf16.msra.mxu0 0
        %3724 = vmatprep.subr.bf16.mxu0 0
        %3725 = vmatpush2.bf16.msra.mxu0 0
        %3726 = vmatprep.subr.bf16.mxu0 0
        %3727 = vmatpush2.bf16.msra.mxu0 0
        %3728 = vmatprep.subr.bf16.mxu0 0
        %3729 = vmatpush2.bf16.msra.mxu0 0
        %3730 = vmatprep.subr.bf16.mxu0 0
        %3731 = vmatpush2.bf16.msra.mxu0 0
        %3732 = vmatprep.subr.bf16.mxu0 0
        %3733 = vmatpush2.bf16.msra.mxu0 0
        %3734 = vmatprep.subr.bf16.mxu0 0
        %3735 = vmatpush2.bf16.msra.mxu0 0
        %3736 = vmatprep.subr.bf16.mxu0 0
        %3737 = vmatpush2.bf16.msra.mxu0 0
        %3738 = vmatprep.mubr.bf16.mxu0 0
        %3739 = vmatmul.mubr.bf16.gmra.mxu0 %v3047
        %v3740 = vpop.f32.mrf.mxu0
        %v3741 = vadd.f32 %v896, %v3740
        %v3742 = vpop.f32.mrf.mxu0
        %v3743 = vadd.f32 %v900, %v3742
        %v3744 = vpop.f32.mrf.mxu0
        %v3745 = vpop.f32.mrf.mxu0
        %3746 = vdwg.mxu0
        %3747 = vmatprep.subr.bf16.mxu0 0
        %3748 = vmatpush1.bf16.msra.mxu0 0
        %3749 = vmatprep.subr.bf16.mxu0 0
        %3750 = vmatpush1.bf16.msra.mxu0 0
        %3751 = vmatprep.subr.bf16.mxu0 0
        %3752 = vmatpush1.bf16.msra.mxu0 0
        %3753 = vmatprep.subr.bf16.mxu0 %v3123
        %3754 = vmatpush1.bf16.msra.mxu0 %v3120
        %3755 = vmatprep.subr.bf16.mxu0 %v2582
        %3756 = vmatpush1.bf16.msra.mxu0 %v2581
        %3757 = vmatprep.subr.bf16.mxu0 %v2501
        %3758 = vmatpush1.bf16.msra.mxu0 %v2500
        %3759 = vmatprep.subr.bf16.mxu0 %v2420
        %3760 = vmatpush1.bf16.msra.mxu0 %v2419
        %3761 = vmatprep.subr.bf16.mxu0 %v2339
        %3762 = vmatpush1.bf16.msra.mxu0 %v2338
        %3763 = vmatprep.subr.bf16.mxu0 0
        %3764 = vmatpush2.bf16.msra.mxu0 0
        %3765 = vmatprep.subr.bf16.mxu0 0
        %3766 = vmatpush2.bf16.msra.mxu0 0
        %3767 = vmatprep.subr.bf16.mxu0 0
        %3768 = vmatpush2.bf16.msra.mxu0 0
        %3769 = vmatprep.subr.bf16.mxu0 0
        %3770 = vmatpush2.bf16.msra.mxu0 0
        %3771 = vmatprep.subr.bf16.mxu0 0
        %3772 = vmatpush2.bf16.msra.mxu0 0
        %3773 = vmatprep.subr.bf16.mxu0 0
        %3774 = vmatpush2.bf16.msra.mxu0 0
        %3775 = vmatprep.subr.bf16.mxu0 0
        %3776 = vmatpush2.bf16.msra.mxu0 0
        %3777 = vmatprep.subr.bf16.mxu0 0
        %3778 = vmatpush2.bf16.msra.mxu0 0
        %3779 = vmatprep.mubr.bf16.mxu0 0
        %3780 = vmatmul.mubr.bf16.gmra.mxu0 %v3047
        %v3781 = vpop.f32.mrf.mxu0
        %v3782 = vadd.f32 %v904, %v3781
        %v3783 = vpop.f32.mrf.mxu0
        %v3784 = vadd.f32 %v908, %v3783
        %v3785 = vpop.f32.mrf.mxu0
        %v3786 = vpop.f32.mrf.mxu0
        %3787 = vdwg.mxu0
        %3788 = vmatprep.subr.bf16.mxu0 0
        %3789 = vmatpush1.bf16.msra.mxu0 0
        %3790 = vmatprep.subr.bf16.mxu0 0
        %3791 = vmatpush1.bf16.msra.mxu0 0
        %3792 = vmatprep.subr.bf16.mxu0 0
        %3793 = vmatpush1.bf16.msra.mxu0 0
        %3794 = vmatprep.subr.bf16.mxu0 %v3129
        %3795 = vmatpush1.bf16.msra.mxu0 %v3126
        %3796 = vmatprep.subr.bf16.mxu0 %v2584
        %3797 = vmatpush1.bf16.msra.mxu0 %v2583
        %3798 = vmatprep.subr.bf16.mxu0 %v2503
        %3799 = vmatpush1.bf16.msra.mxu0 %v2502
        %3800 = vmatprep.subr.bf16.mxu0 %v2422
        %3801 = vmatpush1.bf16.msra.mxu0 %v2421
        %3802 = vmatprep.subr.bf16.mxu0 %v2341
        %3803 = vmatpush1.bf16.msra.mxu0 %v2340
        %3804 = vmatprep.subr.bf16.mxu0 0
        %3805 = vmatpush2.bf16.msra.mxu0 0
        %3806 = vmatprep.subr.bf16.mxu0 0
        %3807 = vmatpush2.bf16.msra.mxu0 0
        %3808 = vmatprep.subr.bf16.mxu0 0
        %3809 = vmatpush2.bf16.msra.mxu0 0
        %3810 = vmatprep.subr.bf16.mxu0 0
        %3811 = vmatpush2.bf16.msra.mxu0 0
        %3812 = vmatprep.subr.bf16.mxu0 0
        %3813 = vmatpush2.bf16.msra.mxu0 0
        %3814 = vmatprep.subr.bf16.mxu0 0
        %3815 = vmatpush2.bf16.msra.mxu0 0
        %3816 = vmatprep.subr.bf16.mxu0 0
        %3817 = vmatpush2.bf16.msra.mxu0 0
        %3818 = vmatprep.subr.bf16.mxu0 0
        %3819 = vmatpush2.bf16.msra.mxu0 0
        %3820 = vmatprep.mubr.bf16.mxu0 0
        %3821 = vmatmul.mubr.bf16.gmra.mxu0 %v3047
        %v3822 = vpop.f32.mrf.mxu0
        %v3823 = vadd.f32 %v912, %v3822
        %v3824 = vpop.f32.mrf.mxu0
        %v3825 = vadd.f32 %v916, %v3824
        %v3826 = vpop.f32.mrf.mxu0
        %v3827 = vpop.f32.mrf.mxu0
        %3828 = vdwg.mxu0
        %3829 = vmatprep.subr.bf16.mxu0 0
        %3830 = vmatpush1.bf16.msra.mxu0 0
        %3831 = vmatprep.subr.bf16.mxu0 0
        %3832 = vmatpush1.bf16.msra.mxu0 0
        %3833 = vmatprep.subr.bf16.mxu0 0
        %3834 = vmatpush1.bf16.msra.mxu0 0
        %3835 = vmatprep.subr.bf16.mxu0 %v3135
        %3836 = vmatpush1.bf16.msra.mxu0 %v3132
        %3837 = vmatprep.subr.bf16.mxu0 %v2586
        %3838 = vmatpush1.bf16.msra.mxu0 %v2585
        %3839 = vmatprep.subr.bf16.mxu0 %v2505
        %3840 = vmatpush1.bf16.msra.mxu0 %v2504
        %3841 = vmatprep.subr.bf16.mxu0 %v2424
        %3842 = vmatpush1.bf16.msra.mxu0 %v2423
        %3843 = vmatprep.subr.bf16.mxu0 %v2343
        %3844 = vmatpush1.bf16.msra.mxu0 %v2342
        %3845 = vmatprep.subr.bf16.mxu0 0
        %3846 = vmatpush2.bf16.msra.mxu0 0
        %3847 = vmatprep.subr.bf16.mxu0 0
        %3848 = vmatpush2.bf16.msra.mxu0 0
        %3849 = vmatprep.subr.bf16.mxu0 0
        %3850 = vmatpush2.bf16.msra.mxu0 0
        %3851 = vmatprep.subr.bf16.mxu0 0
        %3852 = vmatpush2.bf16.msra.mxu0 0
        %3853 = vmatprep.subr.bf16.mxu0 0
        %3854 = vmatpush2.bf16.msra.mxu0 0
        %3855 = vmatprep.subr.bf16.mxu0 0
        %3856 = vmatpush2.bf16.msra.mxu0 0
        %3857 = vmatprep.subr.bf16.mxu0 0
        %3858 = vmatpush2.bf16.msra.mxu0 0
        %3859 = vmatprep.subr.bf16.mxu0 0
        %3860 = vmatpush2.bf16.msra.mxu0 0
        %3861 = vmatprep.mubr.bf16.mxu0 0
        %3862 = vmatmul.mubr.bf16.gmra.mxu0 %v3047
        %v3863 = vpop.f32.mrf.mxu0
        %v3864 = vadd.f32 %v920, %v3863
        %v3865 = vpop.f32.mrf.mxu0
        %v3866 = vadd.f32 %v924, %v3865
        %v3867 = vpop.f32.mrf.mxu0
        %v3868 = vpop.f32.mrf.mxu0
        %3869 = vdwg.mxu0
        %3870 = vmatprep.subr.bf16.mxu0 0
        %3871 = vmatpush1.bf16.msra.mxu0 0
        %3872 = vmatprep.subr.bf16.mxu0 0
        %3873 = vmatpush1.bf16.msra.mxu0 0
        %3874 = vmatprep.subr.bf16.mxu0 0
        %3875 = vmatpush1.bf16.msra.mxu0 0
        %3876 = vmatprep.subr.bf16.mxu0 %v3141
        %3877 = vmatpush1.bf16.msra.mxu0 %v3138
        %3878 = vmatprep.subr.bf16.mxu0 %v2588
        %3879 = vmatpush1.bf16.msra.mxu0 %v2587
        %3880 = vmatprep.subr.bf16.mxu0 %v2507
        %3881 = vmatpush1.bf16.msra.mxu0 %v2506
        %3882 = vmatprep.subr.bf16.mxu0 %v2426
        %3883 = vmatpush1.bf16.msra.mxu0 %v2425
        %3884 = vmatprep.subr.bf16.mxu0 %v2345
        %3885 = vmatpush1.bf16.msra.mxu0 %v2344
        %3886 = vmatprep.subr.bf16.mxu0 0
        %3887 = vmatpush2.bf16.msra.mxu0 0
        %3888 = vmatprep.subr.bf16.mxu0 0
        %3889 = vmatpush2.bf16.msra.mxu0 0
        %3890 = vmatprep.subr.bf16.mxu0 0
        %3891 = vmatpush2.bf16.msra.mxu0 0
        %3892 = vmatprep.subr.bf16.mxu0 0
        %3893 = vmatpush2.bf16.msra.mxu0 0
        %3894 = vmatprep.subr.bf16.mxu0 0
        %3895 = vmatpush2.bf16.msra.mxu0 0
        %3896 = vmatprep.subr.bf16.mxu0 0
        %3897 = vmatpush2.bf16.msra.mxu0 0
        %3898 = vmatprep.subr.bf16.mxu0 0
        %3899 = vmatpush2.bf16.msra.mxu0 0
        %3900 = vmatprep.subr.bf16.mxu0 0
        %3901 = vmatpush2.bf16.msra.mxu0 0
        %3902 = vmatprep.mubr.bf16.mxu0 0
        %3903 = vmatmul.mubr.bf16.gmra.mxu0 %v3047
        %v3904 = vpop.f32.mrf.mxu0
        %v3905 = vadd.f32 %v928, %v3904
        %v3906 = vpop.f32.mrf.mxu0
        %v3907 = vadd.f32 %v932, %v3906
        %v3908 = vpop.f32.mrf.mxu0
        %v3909 = vpop.f32.mrf.mxu0
        %3910 = vdwg.mxu0
        %3911 = vmatprep.subr.bf16.mxu0 0
        %3912 = vmatpush1.bf16.msra.mxu0 0
        %3913 = vmatprep.subr.bf16.mxu0 0
        %3914 = vmatpush1.bf16.msra.mxu0 0
        %3915 = vmatprep.subr.bf16.mxu0 0
        %3916 = vmatpush1.bf16.msra.mxu0 0
        %3917 = vmatprep.subr.bf16.mxu0 %v3147
        %3918 = vmatpush1.bf16.msra.mxu0 %v3144
        %3919 = vmatprep.subr.bf16.mxu0 %v2590
        %3920 = vmatpush1.bf16.msra.mxu0 %v2589
        %3921 = vmatprep.subr.bf16.mxu0 %v2509
        %3922 = vmatpush1.bf16.msra.mxu0 %v2508
        %3923 = vmatprep.subr.bf16.mxu0 %v2428
        %3924 = vmatpush1.bf16.msra.mxu0 %v2427
        %3925 = vmatprep.subr.bf16.mxu0 %v2347
        %3926 = vmatpush1.bf16.msra.mxu0 %v2346
        %3927 = vmatprep.subr.bf16.mxu0 0
        %3928 = vmatpush2.bf16.msra.mxu0 0
        %3929 = vmatprep.subr.bf16.mxu0 0
        %3930 = vmatpush2.bf16.msra.mxu0 0
        %3931 = vmatprep.subr.bf16.mxu0 0
        %3932 = vmatpush2.bf16.msra.mxu0 0
        %3933 = vmatprep.subr.bf16.mxu0 0
        %3934 = vmatpush2.bf16.msra.mxu0 0
        %3935 = vmatprep.subr.bf16.mxu0 0
        %3936 = vmatpush2.bf16.msra.mxu0 0
        %3937 = vmatprep.subr.bf16.mxu0 0
        %3938 = vmatpush2.bf16.msra.mxu0 0
        %3939 = vmatprep.subr.bf16.mxu0 0
        %3940 = vmatpush2.bf16.msra.mxu0 0
        %3941 = vmatprep.subr.bf16.mxu0 0
        %3942 = vmatpush2.bf16.msra.mxu0 0
        %3943 = vmatprep.mubr.bf16.mxu0 0
        %3944 = vmatmul.mubr.bf16.gmra.mxu0 %v3047
        %v3945 = vpop.f32.mrf.mxu0
        %v3946 = vadd.f32 %v936, %v3945
        %v3947 = vpop.f32.mrf.mxu0
        %v3948 = vadd.f32 %v940, %v3947
        %v3949 = vpop.f32.mrf.mxu0
        %v3950 = vpop.f32.mrf.mxu0
        %3951 = vdwg.mxu0
        %3952 = vmatprep.subr.bf16.mxu0 0
        %3953 = vmatpush1.bf16.msra.mxu0 0
        %3954 = vmatprep.subr.bf16.mxu0 0
        %3955 = vmatpush1.bf16.msra.mxu0 0
        %3956 = vmatprep.subr.bf16.mxu0 0
        %3957 = vmatpush1.bf16.msra.mxu0 0
        %3958 = vmatprep.subr.bf16.mxu0 %v3153
        %3959 = vmatpush1.bf16.msra.mxu0 %v3150
        %3960 = vmatprep.subr.bf16.mxu0 %v2592
        %3961 = vmatpush1.bf16.msra.mxu0 %v2591
        %3962 = vmatprep.subr.bf16.mxu0 %v2511
        %3963 = vmatpush1.bf16.msra.mxu0 %v2510
        %3964 = vmatprep.subr.bf16.mxu0 %v2430
        %3965 = vmatpush1.bf16.msra.mxu0 %v2429
        %3966 = vmatprep.subr.bf16.mxu0 %v2349
        %3967 = vmatpush1.bf16.msra.mxu0 %v2348
        %3968 = vmatprep.subr.bf16.mxu0 0
        %3969 = vmatpush2.bf16.msra.mxu0 0
        %3970 = vmatprep.subr.bf16.mxu0 0
        %3971 = vmatpush2.bf16.msra.mxu0 0
        %3972 = vmatprep.subr.bf16.mxu0 0
        %3973 = vmatpush2.bf16.msra.mxu0 0
        %3974 = vmatprep.subr.bf16.mxu0 0
        %3975 = vmatpush2.bf16.msra.mxu0 0
        %3976 = vmatprep.subr.bf16.mxu0 0
        %3977 = vmatpush2.bf16.msra.mxu0 0
        %3978 = vmatprep.subr.bf16.mxu0 0
        %3979 = vmatpush2.bf16.msra.mxu0 0
        %3980 = vmatprep.subr.bf16.mxu0 0
        %3981 = vmatpush2.bf16.msra.mxu0 0
        %3982 = vmatprep.subr.bf16.mxu0 0
        %3983 = vmatpush2.bf16.msra.mxu0 0
        %3984 = vmatprep.mubr.bf16.mxu0 0
        %3985 = vmatmul.mubr.bf16.gmra.mxu0 %v3047
        %v3986 = vpop.f32.mrf.mxu0
        %v3987 = vadd.f32 %v944, %v3986
        %v3988 = vpop.f32.mrf.mxu0
        %v3989 = vadd.f32 %v948, %v3988
        %v3990 = vpop.f32.mrf.mxu0
        %v3991 = vpop.f32.mrf.mxu0
        %3992 = vdwg.mxu0
        %3993 = vmatprep.subr.bf16.mxu0 0
        %3994 = vmatpush1.bf16.msra.mxu0 0
        %3995 = vmatprep.subr.bf16.mxu0 0
        %3996 = vmatpush1.bf16.msra.mxu0 0
        %3997 = vmatprep.subr.bf16.mxu0 0
        %3998 = vmatpush1.bf16.msra.mxu0 0
        %3999 = vmatprep.subr.bf16.mxu0 %v3159
        %4000 = vmatpush1.bf16.msra.mxu0 %v3156
        %4001 = vmatprep.subr.bf16.mxu0 %v2594
        %4002 = vmatpush1.bf16.msra.mxu0 %v2593
        %4003 = vmatprep.subr.bf16.mxu0 %v2513
        %4004 = vmatpush1.bf16.msra.mxu0 %v2512
        %4005 = vmatprep.subr.bf16.mxu0 %v2432
        %4006 = vmatpush1.bf16.msra.mxu0 %v2431
        %4007 = vmatprep.subr.bf16.mxu0 %v2351
        %4008 = vmatpush1.bf16.msra.mxu0 %v2350
        %4009 = vmatprep.subr.bf16.mxu0 0
        %4010 = vmatpush2.bf16.msra.mxu0 0
        %4011 = vmatprep.subr.bf16.mxu0 0
        %4012 = vmatpush2.bf16.msra.mxu0 0
        %4013 = vmatprep.subr.bf16.mxu0 0
        %4014 = vmatpush2.bf16.msra.mxu0 0
        %4015 = vmatprep.subr.bf16.mxu0 0
        %4016 = vmatpush2.bf16.msra.mxu0 0
        %4017 = vmatprep.subr.bf16.mxu0 0
        %4018 = vmatpush2.bf16.msra.mxu0 0
        %4019 = vmatprep.subr.bf16.mxu0 0
        %4020 = vmatpush2.bf16.msra.mxu0 0
        %4021 = vmatprep.subr.bf16.mxu0 0
        %4022 = vmatpush2.bf16.msra.mxu0 0
        %4023 = vmatprep.subr.bf16.mxu0 0
        %4024 = vmatpush2.bf16.msra.mxu0 0
        %4025 = vmatprep.mubr.bf16.mxu0 0
        %4026 = vmatmul.mubr.bf16.gmra.mxu0 %v3047
        %v4027 = vpop.f32.mrf.mxu0
        %v4028 = vadd.f32 %v952, %v4027
        %v4029 = vpop.f32.mrf.mxu0
        %v4030 = vadd.f32 %v956, %v4029
        %v4031 = vpop.f32.mrf.mxu0
        %v4032 = vpop.f32.mrf.mxu0
        %4033 = vdwg.mxu0
        %4034 = vmatprep.subr.bf16.mxu0 0
        %4035 = vmatpush1.bf16.msra.mxu0 0
        %4036 = vmatprep.subr.bf16.mxu0 0
        %4037 = vmatpush1.bf16.msra.mxu0 0
        %4038 = vmatprep.subr.bf16.mxu0 0
        %4039 = vmatpush1.bf16.msra.mxu0 0
        %4040 = vmatprep.subr.bf16.mxu0 %v3165
        %4041 = vmatpush1.bf16.msra.mxu0 %v3162
        %4042 = vmatprep.subr.bf16.mxu0 %v2596
        %4043 = vmatpush1.bf16.msra.mxu0 %v2595
        %4044 = vmatprep.subr.bf16.mxu0 %v2515
        %4045 = vmatpush1.bf16.msra.mxu0 %v2514
        %4046 = vmatprep.subr.bf16.mxu0 %v2434
        %4047 = vmatpush1.bf16.msra.mxu0 %v2433
        %4048 = vmatprep.subr.bf16.mxu0 %v2353
        %4049 = vmatpush1.bf16.msra.mxu0 %v2352
        %4050 = vmatprep.subr.bf16.mxu0 0
        %4051 = vmatpush2.bf16.msra.mxu0 0
        %4052 = vmatprep.subr.bf16.mxu0 0
        %4053 = vmatpush2.bf16.msra.mxu0 0
        %4054 = vmatprep.subr.bf16.mxu0 0
        %4055 = vmatpush2.bf16.msra.mxu0 0
        %4056 = vmatprep.subr.bf16.mxu0 0
        %4057 = vmatpush2.bf16.msra.mxu0 0
        %4058 = vmatprep.subr.bf16.mxu0 0
        %4059 = vmatpush2.bf16.msra.mxu0 0
        %4060 = vmatprep.subr.bf16.mxu0 0
        %4061 = vmatpush2.bf16.msra.mxu0 0
        %4062 = vmatprep.subr.bf16.mxu0 0
        %4063 = vmatpush2.bf16.msra.mxu0 0
        %4064 = vmatprep.subr.bf16.mxu0 0
        %4065 = vmatpush2.bf16.msra.mxu0 0
        %4066 = vmatprep.mubr.bf16.mxu0 0
        %4067 = vmatmul.mubr.bf16.gmra.mxu0 %v3047
        %v4068 = vpop.f32.mrf.mxu0
        %v4069 = vadd.f32 %v960, %v4068
        %v4070 = vpop.f32.mrf.mxu0
        %v4071 = vadd.f32 %v964, %v4070
        %v4072 = vpop.f32.mrf.mxu0
        %v4073 = vpop.f32.mrf.mxu0
        %4074 = vdwg.mxu0
        %4075 = vmatprep.subr.bf16.mxu0 0
        %4076 = vmatpush1.bf16.msra.mxu0 0
        %4077 = vmatprep.subr.bf16.mxu0 0
        %4078 = vmatpush1.bf16.msra.mxu0 0
        %4079 = vmatprep.subr.bf16.mxu0 0
        %4080 = vmatpush1.bf16.msra.mxu0 0
        %4081 = vmatprep.subr.bf16.mxu0 %v3171
        %4082 = vmatpush1.bf16.msra.mxu0 %v3168
        %4083 = vmatprep.subr.bf16.mxu0 %v2598
        %4084 = vmatpush1.bf16.msra.mxu0 %v2597
        %4085 = vmatprep.subr.bf16.mxu0 %v2517
        %4086 = vmatpush1.bf16.msra.mxu0 %v2516
        %4087 = vmatprep.subr.bf16.mxu0 %v2436
        %4088 = vmatpush1.bf16.msra.mxu0 %v2435
        %4089 = vmatprep.subr.bf16.mxu0 %v2355
        %4090 = vmatpush1.bf16.msra.mxu0 %v2354
        %4091 = vmatprep.subr.bf16.mxu0 0
        %4092 = vmatpush2.bf16.msra.mxu0 0
        %4093 = vmatprep.subr.bf16.mxu0 0
        %4094 = vmatpush2.bf16.msra.mxu0 0
        %4095 = vmatprep.subr.bf16.mxu0 0
        %4096 = vmatpush2.bf16.msra.mxu0 0
        %4097 = vmatprep.subr.bf16.mxu0 0
        %4098 = vmatpush2.bf16.msra.mxu0 0
        %4099 = vmatprep.subr.bf16.mxu0 0
        %4100 = vmatpush2.bf16.msra.mxu0 0
        %4101 = vmatprep.subr.bf16.mxu0 0
        %4102 = vmatpush2.bf16.msra.mxu0 0
        %4103 = vmatprep.subr.bf16.mxu0 0
        %4104 = vmatpush2.bf16.msra.mxu0 0
        %4105 = vmatprep.subr.bf16.mxu0 0
        %4106 = vmatpush2.bf16.msra.mxu0 0
        %4107 = vmatprep.mubr.bf16.mxu0 0
        %4108 = vmatmul.mubr.bf16.gmra.mxu0 %v3047
        %v4109 = vpop.f32.mrf.mxu0
        %v4110 = vadd.f32 %v968, %v4109
        %v4111 = vpop.f32.mrf.mxu0
        %v4112 = vadd.f32 %v972, %v4111
        %v4113 = vpop.f32.mrf.mxu0
        %v4114 = vpop.f32.mrf.mxu0
        %4115 = vdwg.mxu0
        %4116 = vmatprep.subr.bf16.mxu0 0
        %4117 = vmatpush1.bf16.msra.mxu0 0
        %4118 = vmatprep.subr.bf16.mxu0 0
        %4119 = vmatpush1.bf16.msra.mxu0 0
        %4120 = vmatprep.subr.bf16.mxu0 0
        %4121 = vmatpush1.bf16.msra.mxu0 0
        %4122 = vmatprep.subr.bf16.mxu0 %v3177
        %4123 = vmatpush1.bf16.msra.mxu0 %v3174
        %4124 = vmatprep.subr.bf16.mxu0 %v2600
        %4125 = vmatpush1.bf16.msra.mxu0 %v2599
        %4126 = vmatprep.subr.bf16.mxu0 %v2519
        %4127 = vmatpush1.bf16.msra.mxu0 %v2518
        %4128 = vmatprep.subr.bf16.mxu0 %v2438
        %4129 = vmatpush1.bf16.msra.mxu0 %v2437
        %4130 = vmatprep.subr.bf16.mxu0 %v2357
        %4131 = vmatpush1.bf16.msra.mxu0 %v2356
        %4132 = vmatprep.subr.bf16.mxu0 0
        %4133 = vmatpush2.bf16.msra.mxu0 0
        %4134 = vmatprep.subr.bf16.mxu0 0
        %4135 = vmatpush2.bf16.msra.mxu0 0
        %4136 = vmatprep.subr.bf16.mxu0 0
        %4137 = vmatpush2.bf16.msra.mxu0 0
        %4138 = vmatprep.subr.bf16.mxu0 0
        %4139 = vmatpush2.bf16.msra.mxu0 0
        %4140 = vmatprep.subr.bf16.mxu0 0
        %4141 = vmatpush2.bf16.msra.mxu0 0
        %4142 = vmatprep.subr.bf16.mxu0 0
        %4143 = vmatpush2.bf16.msra.mxu0 0
        %4144 = vmatprep.subr.bf16.mxu0 0
        %4145 = vmatpush2.bf16.msra.mxu0 0
        %4146 = vmatprep.subr.bf16.mxu0 0
        %4147 = vmatpush2.bf16.msra.mxu0 0
        %4148 = vmatprep.mubr.bf16.mxu0 0
        %4149 = vmatmul.mubr.bf16.gmra.mxu0 %v3047
        %v4150 = vpop.f32.mrf.mxu0
        %v4151 = vadd.f32 %v976, %v4150
        %v4152 = vpop.f32.mrf.mxu0
        %v4153 = vadd.f32 %v980, %v4152
        %v4154 = vpop.f32.mrf.mxu0
        %v4155 = vpop.f32.mrf.mxu0
        %4156 = vdwg.mxu0
        %4157 = vmatprep.subr.bf16.mxu0 0
        %4158 = vmatpush1.bf16.msra.mxu0 0
        %4159 = vmatprep.subr.bf16.mxu0 0
        %4160 = vmatpush1.bf16.msra.mxu0 0
        %4161 = vmatprep.subr.bf16.mxu0 0
        %4162 = vmatpush1.bf16.msra.mxu0 0
        %4163 = vmatprep.subr.bf16.mxu0 %v3183
        %4164 = vmatpush1.bf16.msra.mxu0 %v3180
        %4165 = vmatprep.subr.bf16.mxu0 %v2602
        %4166 = vmatpush1.bf16.msra.mxu0 %v2601
        %4167 = vmatprep.subr.bf16.mxu0 %v2521
        %4168 = vmatpush1.bf16.msra.mxu0 %v2520
        %4169 = vmatprep.subr.bf16.mxu0 %v2440
        %4170 = vmatpush1.bf16.msra.mxu0 %v2439
        %4171 = vmatprep.subr.bf16.mxu0 %v2359
        %4172 = vmatpush1.bf16.msra.mxu0 %v2358
        %4173 = vmatprep.subr.bf16.mxu0 0
        %4174 = vmatpush2.bf16.msra.mxu0 0
        %4175 = vmatprep.subr.bf16.mxu0 0
        %4176 = vmatpush2.bf16.msra.mxu0 0
        %4177 = vmatprep.subr.bf16.mxu0 0
        %4178 = vmatpush2.bf16.msra.mxu0 0
        %4179 = vmatprep.subr.bf16.mxu0 0
        %4180 = vmatpush2.bf16.msra.mxu0 0
        %4181 = vmatprep.subr.bf16.mxu0 0
        %4182 = vmatpush2.bf16.msra.mxu0 0
        %4183 = vmatprep.subr.bf16.mxu0 0
        %4184 = vmatpush2.bf16.msra.mxu0 0
        %4185 = vmatprep.subr.bf16.mxu0 0
        %4186 = vmatpush2.bf16.msra.mxu0 0
        %4187 = vmatprep.subr.bf16.mxu0 0
        %4188 = vmatpush2.bf16.msra.mxu0 0
        %4189 = vmatprep.mubr.bf16.mxu0 0
        %4190 = vmatmul.mubr.bf16.gmra.mxu0 %v3047
        %v4191 = vpop.f32.mrf.mxu0
        %v4192 = vadd.f32 %v984, %v4191
        %v4193 = vpop.f32.mrf.mxu0
        %v4194 = vadd.f32 %v988, %v4193
        %v4195 = vpop.f32.mrf.mxu0
        %v4196 = vpop.f32.mrf.mxu0
        %4197 = vdwg.mxu0
        %4198 = vmatprep.subr.bf16.mxu0 0
        %4199 = vmatpush1.bf16.msra.mxu0 0
        %4200 = vmatprep.subr.bf16.mxu0 0
        %4201 = vmatpush1.bf16.msra.mxu0 0
        %4202 = vmatprep.subr.bf16.mxu0 0
        %4203 = vmatpush1.bf16.msra.mxu0 0
        %4204 = vmatprep.subr.bf16.mxu0 %v3189
        %4205 = vmatpush1.bf16.msra.mxu0 %v3186
        %4206 = vmatprep.subr.bf16.mxu0 %v2604
        %4207 = vmatpush1.bf16.msra.mxu0 %v2603
        %4208 = vmatprep.subr.bf16.mxu0 %v2523
        %4209 = vmatpush1.bf16.msra.mxu0 %v2522
        %4210 = vmatprep.subr.bf16.mxu0 %v2442
        %4211 = vmatpush1.bf16.msra.mxu0 %v2441
        %4212 = vmatprep.subr.bf16.mxu0 %v2361
        %4213 = vmatpush1.bf16.msra.mxu0 %v2360
        %4214 = vmatprep.subr.bf16.mxu0 0
        %4215 = vmatpush2.bf16.msra.mxu0 0
        %4216 = vmatprep.subr.bf16.mxu0 0
        %4217 = vmatpush2.bf16.msra.mxu0 0
        %4218 = vmatprep.subr.bf16.mxu0 0
        %4219 = vmatpush2.bf16.msra.mxu0 0
        %4220 = vmatprep.subr.bf16.mxu0 0
        %4221 = vmatpush2.bf16.msra.mxu0 0
        %4222 = vmatprep.subr.bf16.mxu0 0
        %4223 = vmatpush2.bf16.msra.mxu0 0
        %4224 = vmatprep.subr.bf16.mxu0 0
        %4225 = vmatpush2.bf16.msra.mxu0 0
        %4226 = vmatprep.subr.bf16.mxu0 0
        %4227 = vmatpush2.bf16.msra.mxu0 0
        %4228 = vmatprep.subr.bf16.mxu0 0
        %4229 = vmatpush2.bf16.msra.mxu0 0
        %4230 = vmatprep.mubr.bf16.mxu0 0
        %4231 = vmatmul.mubr.bf16.gmra.mxu0 %v3047
        %v4232 = vpop.f32.mrf.mxu0
        %v4233 = vadd.f32 %v992, %v4232
        %v4234 = vpop.f32.mrf.mxu0
        %v4235 = vadd.f32 %v996, %v4234
        %v4236 = vpop.f32.mrf.mxu0
        %v4237 = vpop.f32.mrf.mxu0
        %4238 = vdwg.mxu0
        %4239 = vmatprep.subr.bf16.mxu0 0
        %4240 = vmatpush1.bf16.msra.mxu0 0
        %4241 = vmatprep.subr.bf16.mxu0 0
        %4242 = vmatpush1.bf16.msra.mxu0 0
        %4243 = vmatprep.subr.bf16.mxu0 0
        %4244 = vmatpush1.bf16.msra.mxu0 0
        %4245 = vmatprep.subr.bf16.mxu0 %v3195
        %4246 = vmatpush1.bf16.msra.mxu0 %v3192
        %4247 = vmatprep.subr.bf16.mxu0 %v2606
        %4248 = vmatpush1.bf16.msra.mxu0 %v2605
        %4249 = vmatprep.subr.bf16.mxu0 %v2525
        %4250 = vmatpush1.bf16.msra.mxu0 %v2524
        %4251 = vmatprep.subr.bf16.mxu0 %v2444
        %4252 = vmatpush1.bf16.msra.mxu0 %v2443
        %4253 = vmatprep.subr.bf16.mxu0 %v2363
        %4254 = vmatpush1.bf16.msra.mxu0 %v2362
        %4255 = vmatprep.subr.bf16.mxu0 0
        %4256 = vmatpush2.bf16.msra.mxu0 0
        %4257 = vmatprep.subr.bf16.mxu0 0
        %4258 = vmatpush2.bf16.msra.mxu0 0
        %4259 = vmatprep.subr.bf16.mxu0 0
        %4260 = vmatpush2.bf16.msra.mxu0 0
        %4261 = vmatprep.subr.bf16.mxu0 0
        %4262 = vmatpush2.bf16.msra.mxu0 0
        %4263 = vmatprep.subr.bf16.mxu0 0
        %4264 = vmatpush2.bf16.msra.mxu0 0
        %4265 = vmatprep.subr.bf16.mxu0 0
        %4266 = vmatpush2.bf16.msra.mxu0 0
        %4267 = vmatprep.subr.bf16.mxu0 0
        %4268 = vmatpush2.bf16.msra.mxu0 0
        %4269 = vmatprep.subr.bf16.mxu0 0
        %4270 = vmatpush2.bf16.msra.mxu0 0
        %4271 = vmatprep.mubr.bf16.mxu0 0
        %4272 = vmatmul.mubr.bf16.gmra.mxu0 %v3047
        %v4273 = vpop.f32.mrf.mxu0
        %v4274 = vadd.f32 %v1000, %v4273
        %v4275 = vpop.f32.mrf.mxu0
        %v4276 = vadd.f32 %v1004, %v4275
        %v4277 = vpop.f32.mrf.mxu0
        %v4278 = vpop.f32.mrf.mxu0
        %4279 = vdwg.mxu0
        %4280 = vmatprep.subr.bf16.mxu0 0
        %4281 = vmatpush1.bf16.msra.mxu0 0
        %4282 = vmatprep.subr.bf16.mxu0 0
        %4283 = vmatpush1.bf16.msra.mxu0 0
        %4284 = vmatprep.subr.bf16.mxu0 0
        %4285 = vmatpush1.bf16.msra.mxu0 0
        %4286 = vmatprep.subr.bf16.mxu0 %v3201
        %4287 = vmatpush1.bf16.msra.mxu0 %v3198
        %4288 = vmatprep.subr.bf16.mxu0 %v2608
        %4289 = vmatpush1.bf16.msra.mxu0 %v2607
        %4290 = vmatprep.subr.bf16.mxu0 %v2527
        %4291 = vmatpush1.bf16.msra.mxu0 %v2526
        %4292 = vmatprep.subr.bf16.mxu0 %v2446
        %4293 = vmatpush1.bf16.msra.mxu0 %v2445
        %4294 = vmatprep.subr.bf16.mxu0 %v2365
        %4295 = vmatpush1.bf16.msra.mxu0 %v2364
        %4296 = vmatprep.subr.bf16.mxu0 0
        %4297 = vmatpush2.bf16.msra.mxu0 0
        %4298 = vmatprep.subr.bf16.mxu0 0
        %4299 = vmatpush2.bf16.msra.mxu0 0
        %4300 = vmatprep.subr.bf16.mxu0 0
        %4301 = vmatpush2.bf16.msra.mxu0 0
        %4302 = vmatprep.subr.bf16.mxu0 0
        %4303 = vmatpush2.bf16.msra.mxu0 0
        %4304 = vmatprep.subr.bf16.mxu0 0
        %4305 = vmatpush2.bf16.msra.mxu0 0
        %4306 = vmatprep.subr.bf16.mxu0 0
        %4307 = vmatpush2.bf16.msra.mxu0 0
        %4308 = vmatprep.subr.bf16.mxu0 0
        %4309 = vmatpush2.bf16.msra.mxu0 0
        %4310 = vmatprep.subr.bf16.mxu0 0
        %4311 = vmatpush2.bf16.msra.mxu0 0
        %4312 = vmatprep.mubr.bf16.mxu0 0
        %4313 = vmatmul.mubr.bf16.gmra.mxu0 %v3047
        %v4314 = vpop.f32.mrf.mxu0
        %v4315 = vadd.f32 %v1008, %v4314
        %v4316 = vpop.f32.mrf.mxu0
        %v4317 = vadd.f32 %v1012, %v4316
        %v4318 = vpop.f32.mrf.mxu0
        %v4319 = vpop.f32.mrf.mxu0
        %4320 = vdwg.mxu0
        %4321 = vmatprep.subr.bf16.mxu0 0
        %4322 = vmatpush1.bf16.msra.mxu0 0
        %4323 = vmatprep.subr.bf16.mxu0 0
        %4324 = vmatpush1.bf16.msra.mxu0 0
        %4325 = vmatprep.subr.bf16.mxu0 0
        %4326 = vmatpush1.bf16.msra.mxu0 0
        %4327 = vmatprep.subr.bf16.mxu0 %v3207
        %4328 = vmatpush1.bf16.msra.mxu0 %v3204
        %4329 = vmatprep.subr.bf16.mxu0 %v2610
        %4330 = vmatpush1.bf16.msra.mxu0 %v2609
        %4331 = vmatprep.subr.bf16.mxu0 %v2529
        %4332 = vmatpush1.bf16.msra.mxu0 %v2528
        %4333 = vmatprep.subr.bf16.mxu0 %v2448
        %4334 = vmatpush1.bf16.msra.mxu0 %v2447
        %4335 = vmatprep.subr.bf16.mxu0 %v2367
        %4336 = vmatpush1.bf16.msra.mxu0 %v2366
        %4337 = vmatprep.subr.bf16.mxu0 0
        %4338 = vmatpush2.bf16.msra.mxu0 0
        %4339 = vmatprep.subr.bf16.mxu0 0
        %4340 = vmatpush2.bf16.msra.mxu0 0
        %4341 = vmatprep.subr.bf16.mxu0 0
        %4342 = vmatpush2.bf16.msra.mxu0 0
        %4343 = vmatprep.subr.bf16.mxu0 0
        %4344 = vmatpush2.bf16.msra.mxu0 0
        %4345 = vmatprep.subr.bf16.mxu0 0
        %4346 = vmatpush2.bf16.msra.mxu0 0
        %4347 = vmatprep.subr.bf16.mxu0 0
        %4348 = vmatpush2.bf16.msra.mxu0 0
        %4349 = vmatprep.subr.bf16.mxu0 0
        %4350 = vmatpush2.bf16.msra.mxu0 0
        %4351 = vmatprep.subr.bf16.mxu0 0
        %4352 = vmatpush2.bf16.msra.mxu0 0
        %4353 = vmatprep.mubr.bf16.mxu0 0
        %4354 = vmatmul.mubr.bf16.gmra.mxu0 %v3047
        %v4355 = vpop.f32.mrf.mxu0
        %v4356 = vadd.f32 %v1016, %v4355
        %v4357 = vpop.f32.mrf.mxu0
        %v4358 = vadd.f32 %v1020, %v4357
        %v4359 = vpop.f32.mrf.mxu0
        %v4360 = vpop.f32.mrf.mxu0
        %4361 = vdwg.mxu0
        %4362 = vmatprep.subr.bf16.mxu0 0
        %4363 = vmatpush1.bf16.msra.mxu0 0
        %4364 = vmatprep.subr.bf16.mxu0 0
        %4365 = vmatpush1.bf16.msra.mxu0 0
        %4366 = vmatprep.subr.bf16.mxu0 0
        %4367 = vmatpush1.bf16.msra.mxu0 0
        %4368 = vmatprep.subr.bf16.mxu0 %v3213
        %4369 = vmatpush1.bf16.msra.mxu0 %v3210
        %4370 = vmatprep.subr.bf16.mxu0 %v2612
        %4371 = vmatpush1.bf16.msra.mxu0 %v2611
        %4372 = vmatprep.subr.bf16.mxu0 %v2531
        %4373 = vmatpush1.bf16.msra.mxu0 %v2530
        %4374 = vmatprep.subr.bf16.mxu0 %v2450
        %4375 = vmatpush1.bf16.msra.mxu0 %v2449
        %4376 = vmatprep.subr.bf16.mxu0 %v2369
        %4377 = vmatpush1.bf16.msra.mxu0 %v2368
        %4378 = vmatprep.subr.bf16.mxu0 0
        %4379 = vmatpush2.bf16.msra.mxu0 0
        %4380 = vmatprep.subr.bf16.mxu0 0
        %4381 = vmatpush2.bf16.msra.mxu0 0
        %4382 = vmatprep.subr.bf16.mxu0 0
        %4383 = vmatpush2.bf16.msra.mxu0 0
        %4384 = vmatprep.subr.bf16.mxu0 0
        %4385 = vmatpush2.bf16.msra.mxu0 0
        %4386 = vmatprep.subr.bf16.mxu0 0
        %4387 = vmatpush2.bf16.msra.mxu0 0
        %4388 = vmatprep.subr.bf16.mxu0 0
        %4389 = vmatpush2.bf16.msra.mxu0 0
        %4390 = vmatprep.subr.bf16.mxu0 0
        %4391 = vmatpush2.bf16.msra.mxu0 0
        %4392 = vmatprep.subr.bf16.mxu0 0
        %4393 = vmatpush2.bf16.msra.mxu0 0
        %4394 = vmatprep.mubr.bf16.mxu0 0
        %4395 = vmatmul.mubr.bf16.gmra.mxu0 %v3047
        %v4396 = vpop.f32.mrf.mxu0
        %v4397 = vadd.f32 %v1024, %v4396
        %v4398 = vpop.f32.mrf.mxu0
        %v4399 = vadd.f32 %v1028, %v4398
        %v4400 = vpop.f32.mrf.mxu0
        %v4401 = vpop.f32.mrf.mxu0
        %4402 = vdwg.mxu0
        %4403 = vmatprep.subr.bf16.mxu0 0
        %4404 = vmatpush1.bf16.msra.mxu0 0
        %4405 = vmatprep.subr.bf16.mxu0 0
        %4406 = vmatpush1.bf16.msra.mxu0 0
        %4407 = vmatprep.subr.bf16.mxu0 0
        %4408 = vmatpush1.bf16.msra.mxu0 0
        %4409 = vmatprep.subr.bf16.mxu0 %v3219
        %4410 = vmatpush1.bf16.msra.mxu0 %v3216
        %4411 = vmatprep.subr.bf16.mxu0 %v2614
        %4412 = vmatpush1.bf16.msra.mxu0 %v2613
        %4413 = vmatprep.subr.bf16.mxu0 %v2533
        %4414 = vmatpush1.bf16.msra.mxu0 %v2532
        %4415 = vmatprep.subr.bf16.mxu0 %v2452
        %4416 = vmatpush1.bf16.msra.mxu0 %v2451
        %4417 = vmatprep.subr.bf16.mxu0 %v2371
        %4418 = vmatpush1.bf16.msra.mxu0 %v2370
        %4419 = vmatprep.subr.bf16.mxu0 0
        %4420 = vmatpush2.bf16.msra.mxu0 0
        %4421 = vmatprep.subr.bf16.mxu0 0
        %4422 = vmatpush2.bf16.msra.mxu0 0
        %4423 = vmatprep.subr.bf16.mxu0 0
        %4424 = vmatpush2.bf16.msra.mxu0 0
        %4425 = vmatprep.subr.bf16.mxu0 0
        %4426 = vmatpush2.bf16.msra.mxu0 0
        %4427 = vmatprep.subr.bf16.mxu0 0
        %4428 = vmatpush2.bf16.msra.mxu0 0
        %4429 = vmatprep.subr.bf16.mxu0 0
        %4430 = vmatpush2.bf16.msra.mxu0 0
        %4431 = vmatprep.subr.bf16.mxu0 0
        %4432 = vmatpush2.bf16.msra.mxu0 0
        %4433 = vmatprep.subr.bf16.mxu0 0
        %4434 = vmatpush2.bf16.msra.mxu0 0
        %4435 = vmatprep.mubr.bf16.mxu0 0
        %4436 = vmatmul.mubr.bf16.gmra.mxu0 %v3047
        %v4437 = vpop.f32.mrf.mxu0
        %v4438 = vadd.f32 %v1032, %v4437
        %v4439 = vpop.f32.mrf.mxu0
        %v4440 = vadd.f32 %v1036, %v4439
        %v4441 = vpop.f32.mrf.mxu0
        %v4442 = vpop.f32.mrf.mxu0
        %4443 = vdwg.mxu0
        %4444 = vmatprep.subr.bf16.mxu0 0
        %4445 = vmatpush1.bf16.msra.mxu0 0
        %4446 = vmatprep.subr.bf16.mxu0 0
        %4447 = vmatpush1.bf16.msra.mxu0 0
        %4448 = vmatprep.subr.bf16.mxu0 0
        %4449 = vmatpush1.bf16.msra.mxu0 0
        %4450 = vmatprep.subr.bf16.mxu0 %v3225
        %4451 = vmatpush1.bf16.msra.mxu0 %v3222
        %4452 = vmatprep.subr.bf16.mxu0 %v2616
        %4453 = vmatpush1.bf16.msra.mxu0 %v2615
        %4454 = vmatprep.subr.bf16.mxu0 %v2535
        %4455 = vmatpush1.bf16.msra.mxu0 %v2534
        %4456 = vmatprep.subr.bf16.mxu0 %v2454
        %4457 = vmatpush1.bf16.msra.mxu0 %v2453
        %4458 = vmatprep.subr.bf16.mxu0 %v2373
        %4459 = vmatpush1.bf16.msra.mxu0 %v2372
        %4460 = vmatprep.subr.bf16.mxu0 0
        %4461 = vmatpush2.bf16.msra.mxu0 0
        %4462 = vmatprep.subr.bf16.mxu0 0
        %4463 = vmatpush2.bf16.msra.mxu0 0
        %4464 = vmatprep.subr.bf16.mxu0 0
        %4465 = vmatpush2.bf16.msra.mxu0 0
        %4466 = vmatprep.subr.bf16.mxu0 0
        %4467 = vmatpush2.bf16.msra.mxu0 0
        %4468 = vmatprep.subr.bf16.mxu0 0
        %4469 = vmatpush2.bf16.msra.mxu0 0
        %4470 = vmatprep.subr.bf16.mxu0 0
        %4471 = vmatpush2.bf16.msra.mxu0 0
        %4472 = vmatprep.subr.bf16.mxu0 0
        %4473 = vmatpush2.bf16.msra.mxu0 0
        %4474 = vmatprep.subr.bf16.mxu0 0
        %4475 = vmatpush2.bf16.msra.mxu0 0
        %4476 = vmatprep.mubr.bf16.mxu0 0
        %4477 = vmatmul.mubr.bf16.gmra.mxu0 %v3047
        %v4478 = vpop.f32.mrf.mxu0
        %v4479 = vadd.f32 %v1040, %v4478
        %v4480 = vpop.f32.mrf.mxu0
        %v4481 = vadd.f32 %v1044, %v4480
        %v4482 = vpop.f32.mrf.mxu0
        %v4483 = vpop.f32.mrf.mxu0
        %4484 = vdwg.mxu0
        %4485 = vmatprep.subr.bf16.mxu0 0
        %4486 = vmatpush1.bf16.msra.mxu0 0
        %4487 = vmatprep.subr.bf16.mxu0 0
        %4488 = vmatpush1.bf16.msra.mxu0 0
        %4489 = vmatprep.subr.bf16.mxu0 0
        %4490 = vmatpush1.bf16.msra.mxu0 0
        %4491 = vmatprep.subr.bf16.mxu0 %v3231
        %4492 = vmatpush1.bf16.msra.mxu0 %v3228
        %4493 = vmatprep.subr.bf16.mxu0 %v2618
        %4494 = vmatpush1.bf16.msra.mxu0 %v2617
        %4495 = vmatprep.subr.bf16.mxu0 %v2537
        %4496 = vmatpush1.bf16.msra.mxu0 %v2536
        %4497 = vmatprep.subr.bf16.mxu0 %v2456
        %4498 = vmatpush1.bf16.msra.mxu0 %v2455
        %4499 = vmatprep.subr.bf16.mxu0 %v2375
        %4500 = vmatpush1.bf16.msra.mxu0 %v2374
        %4501 = vmatprep.subr.bf16.mxu0 0
        %4502 = vmatpush2.bf16.msra.mxu0 0
        %4503 = vmatprep.subr.bf16.mxu0 0
        %4504 = vmatpush2.bf16.msra.mxu0 0
        %4505 = vmatprep.subr.bf16.mxu0 0
        %4506 = vmatpush2.bf16.msra.mxu0 0
        %4507 = vmatprep.subr.bf16.mxu0 0
        %4508 = vmatpush2.bf16.msra.mxu0 0
        %4509 = vmatprep.subr.bf16.mxu0 0
        %4510 = vmatpush2.bf16.msra.mxu0 0
        %4511 = vmatprep.subr.bf16.mxu0 0
        %4512 = vmatpush2.bf16.msra.mxu0 0
        %4513 = vmatprep.subr.bf16.mxu0 0
        %4514 = vmatpush2.bf16.msra.mxu0 0
        %4515 = vmatprep.subr.bf16.mxu0 0
        %4516 = vmatpush2.bf16.msra.mxu0 0
        %4517 = vmatprep.mubr.bf16.mxu0 0
        %4518 = vmatmul.mubr.bf16.gmra.mxu0 %v3047
        %v4519 = vpop.f32.mrf.mxu0
        %v4520 = vadd.f32 %v1048, %v4519
        %v4521 = vpop.f32.mrf.mxu0
        %v4522 = vadd.f32 %v1052, %v4521
        %v4523 = vpop.f32.mrf.mxu0
        %v4524 = vpop.f32.mrf.mxu0
        %4525 = vdwg.mxu0
        %4526 = vmatprep.subr.bf16.mxu0 0
        %4527 = vmatpush1.bf16.msra.mxu0 0
        %4528 = vmatprep.subr.bf16.mxu0 0
        %4529 = vmatpush1.bf16.msra.mxu0 0
        %4530 = vmatprep.subr.bf16.mxu0 0
        %4531 = vmatpush1.bf16.msra.mxu0 0
        %4532 = vmatprep.subr.bf16.mxu0 %v3237
        %4533 = vmatpush1.bf16.msra.mxu0 %v3234
        %4534 = vmatprep.subr.bf16.mxu0 %v2620
        %4535 = vmatpush1.bf16.msra.mxu0 %v2619
        %4536 = vmatprep.subr.bf16.mxu0 %v2539
        %4537 = vmatpush1.bf16.msra.mxu0 %v2538
        %4538 = vmatprep.subr.bf16.mxu0 %v2458
        %4539 = vmatpush1.bf16.msra.mxu0 %v2457
        %4540 = vmatprep.subr.bf16.mxu0 %v2377
        %4541 = vmatpush1.bf16.msra.mxu0 %v2376
        %4542 = vmatprep.subr.bf16.mxu0 0
        %4543 = vmatpush2.bf16.msra.mxu0 0
        %4544 = vmatprep.subr.bf16.mxu0 0
        %4545 = vmatpush2.bf16.msra.mxu0 0
        %4546 = vmatprep.subr.bf16.mxu0 0
        %4547 = vmatpush2.bf16.msra.mxu0 0
        %4548 = vmatprep.subr.bf16.mxu0 0
        %4549 = vmatpush2.bf16.msra.mxu0 0
        %4550 = vmatprep.subr.bf16.mxu0 0
        %4551 = vmatpush2.bf16.msra.mxu0 0
        %4552 = vmatprep.subr.bf16.mxu0 0
        %4553 = vmatpush2.bf16.msra.mxu0 0
        %4554 = vmatprep.subr.bf16.mxu0 0
        %4555 = vmatpush2.bf16.msra.mxu0 0
        %4556 = vmatprep.subr.bf16.mxu0 0
        %4557 = vmatpush2.bf16.msra.mxu0 0
        %4558 = vmatprep.mubr.bf16.mxu0 0
        %4559 = vmatmul.mubr.bf16.gmra.mxu0 %v3047
        %v4560 = vpop.f32.mrf.mxu0
        %v4561 = vadd.f32 %v1056, %v4560
        %v4562 = vpop.f32.mrf.mxu0
        %v4563 = vadd.f32 %v1060, %v4562
        %v4564 = vpop.f32.mrf.mxu0
        %v4565 = vpop.f32.mrf.mxu0
        %4566 = vdwg.mxu0
        %4567 = vmatprep.subr.bf16.mxu0 0
        %4568 = vmatpush1.bf16.msra.mxu0 0
        %4569 = vmatprep.subr.bf16.mxu0 0
        %4570 = vmatpush1.bf16.msra.mxu0 0
        %4571 = vmatprep.subr.bf16.mxu0 0
        %4572 = vmatpush1.bf16.msra.mxu0 0
        %4573 = vmatprep.subr.bf16.mxu0 %v3243
        %4574 = vmatpush1.bf16.msra.mxu0 %v3240
        %4575 = vmatprep.subr.bf16.mxu0 %v2622
        %4576 = vmatpush1.bf16.msra.mxu0 %v2621
        %4577 = vmatprep.subr.bf16.mxu0 %v2541
        %4578 = vmatpush1.bf16.msra.mxu0 %v2540
        %4579 = vmatprep.subr.bf16.mxu0 %v2460
        %4580 = vmatpush1.bf16.msra.mxu0 %v2459
        %4581 = vmatprep.subr.bf16.mxu0 %v2379
        %4582 = vmatpush1.bf16.msra.mxu0 %v2378
        %4583 = vmatprep.subr.bf16.mxu0 0
        %4584 = vmatpush2.bf16.msra.mxu0 0
        %4585 = vmatprep.subr.bf16.mxu0 0
        %4586 = vmatpush2.bf16.msra.mxu0 0
        %4587 = vmatprep.subr.bf16.mxu0 0
        %4588 = vmatpush2.bf16.msra.mxu0 0
        %4589 = vmatprep.subr.bf16.mxu0 0
        %4590 = vmatpush2.bf16.msra.mxu0 0
        %4591 = vmatprep.subr.bf16.mxu0 0
        %4592 = vmatpush2.bf16.msra.mxu0 0
        %4593 = vmatprep.subr.bf16.mxu0 0
        %4594 = vmatpush2.bf16.msra.mxu0 0
        %4595 = vmatprep.subr.bf16.mxu0 0
        %4596 = vmatpush2.bf16.msra.mxu0 0
        %4597 = vmatprep.subr.bf16.mxu0 0
        %4598 = vmatpush2.bf16.msra.mxu0 0
        %4599 = vmatprep.mubr.bf16.mxu0 0
        %4600 = vmatmul.mubr.bf16.gmra.mxu0 %v3047
        %v4601 = vpop.f32.mrf.mxu0
        %v4602 = vadd.f32 %v1064, %v4601
        %v4603 = vpop.f32.mrf.mxu0
        %v4604 = vadd.f32 %v1068, %v4603
        %v4605 = vpop.f32.mrf.mxu0
        %v4606 = vpop.f32.mrf.mxu0
        %4607 = vdwg.mxu0
        %4608 = vmatprep.subr.bf16.mxu0 0
        %4609 = vmatpush1.bf16.msra.mxu0 0
        %4610 = vmatprep.subr.bf16.mxu0 0
        %4611 = vmatpush1.bf16.msra.mxu0 0
        %4612 = vmatprep.subr.bf16.mxu0 0
        %4613 = vmatpush1.bf16.msra.mxu0 0
        %4614 = vmatprep.subr.bf16.mxu0 %v3249
        %4615 = vmatpush1.bf16.msra.mxu0 %v3246
        %4616 = vmatprep.subr.bf16.mxu0 %v2624
        %4617 = vmatpush1.bf16.msra.mxu0 %v2623
        %4618 = vmatprep.subr.bf16.mxu0 %v2543
        %4619 = vmatpush1.bf16.msra.mxu0 %v2542
        %4620 = vmatprep.subr.bf16.mxu0 %v2462
        %4621 = vmatpush1.bf16.msra.mxu0 %v2461
        %4622 = vmatprep.subr.bf16.mxu0 %v2381
        %4623 = vmatpush1.bf16.msra.mxu0 %v2380
        %4624 = vmatprep.subr.bf16.mxu0 0
        %4625 = vmatpush2.bf16.msra.mxu0 0
        %4626 = vmatprep.subr.bf16.mxu0 0
        %4627 = vmatpush2.bf16.msra.mxu0 0
        %4628 = vmatprep.subr.bf16.mxu0 0
        %4629 = vmatpush2.bf16.msra.mxu0 0
        %4630 = vmatprep.subr.bf16.mxu0 0
        %4631 = vmatpush2.bf16.msra.mxu0 0
        %4632 = vmatprep.subr.bf16.mxu0 0
        %4633 = vmatpush2.bf16.msra.mxu0 0
        %4634 = vmatprep.subr.bf16.mxu0 0
        %4635 = vmatpush2.bf16.msra.mxu0 0
        %4636 = vmatprep.subr.bf16.mxu0 0
        %4637 = vmatpush2.bf16.msra.mxu0 0
        %4638 = vmatprep.subr.bf16.mxu0 0
        %4639 = vmatpush2.bf16.msra.mxu0 0
        %4640 = vmatprep.mubr.bf16.mxu0 0
        %4641 = vmatmul.mubr.bf16.gmra.mxu0 %v3047
        %v4642 = vpop.f32.mrf.mxu0
        %v4643 = vadd.f32 %v1072, %v4642
        %v4644 = vpop.f32.mrf.mxu0
        %v4645 = vadd.f32 %v1076, %v4644
        %v4646 = vpop.f32.mrf.mxu0
        %v4647 = vpop.f32.mrf.mxu0
        %4648 = vdwg.mxu0
        %4649 = vmatprep.subr.bf16.mxu0 0
        %4650 = vmatpush1.bf16.msra.mxu0 0
        %4651 = vmatprep.subr.bf16.mxu0 0
        %4652 = vmatpush1.bf16.msra.mxu0 0
        %4653 = vmatprep.subr.bf16.mxu0 0
        %4654 = vmatpush1.bf16.msra.mxu0 0
        %4655 = vmatprep.subr.bf16.mxu0 %v3255
        %4656 = vmatpush1.bf16.msra.mxu0 %v3252
        %4657 = vmatprep.subr.bf16.mxu0 %v2626
        %4658 = vmatpush1.bf16.msra.mxu0 %v2625
        %4659 = vmatprep.subr.bf16.mxu0 %v2545
        %4660 = vmatpush1.bf16.msra.mxu0 %v2544
        %4661 = vmatprep.subr.bf16.mxu0 %v2464
        %4662 = vmatpush1.bf16.msra.mxu0 %v2463
        %4663 = vmatprep.subr.bf16.mxu0 %v2383
        %4664 = vmatpush1.bf16.msra.mxu0 %v2382
        %4665 = vmatprep.subr.bf16.mxu0 0
        %4666 = vmatpush2.bf16.msra.mxu0 0
        %4667 = vmatprep.subr.bf16.mxu0 0
        %4668 = vmatpush2.bf16.msra.mxu0 0
        %4669 = vmatprep.subr.bf16.mxu0 0
        %4670 = vmatpush2.bf16.msra.mxu0 0
        %4671 = vmatprep.subr.bf16.mxu0 0
        %4672 = vmatpush2.bf16.msra.mxu0 0
        %4673 = vmatprep.subr.bf16.mxu0 0
        %4674 = vmatpush2.bf16.msra.mxu0 0
        %4675 = vmatprep.subr.bf16.mxu0 0
        %4676 = vmatpush2.bf16.msra.mxu0 0
        %4677 = vmatprep.subr.bf16.mxu0 0
        %4678 = vmatpush2.bf16.msra.mxu0 0
        %4679 = vmatprep.subr.bf16.mxu0 0
        %4680 = vmatpush2.bf16.msra.mxu0 0
        %4681 = vmatprep.mubr.bf16.mxu0 0
        %4682 = vmatmul.mubr.bf16.gmra.mxu0 %v3047
        %v4683 = vpop.f32.mrf.mxu0
        %v4684 = vadd.f32 %v1080, %v4683
        %v4685 = vpop.f32.mrf.mxu0
        %v4686 = vadd.f32 %v1084, %v4685
        %v4687 = vpop.f32.mrf.mxu0
        %v4688 = vpop.f32.mrf.mxu0
        %4689 = vdwg.mxu0
        %4690 = vmatprep.subr.bf16.mxu0 0
        %4691 = vmatpush1.bf16.msra.mxu0 0
        %4692 = vmatprep.subr.bf16.mxu0 0
        %4693 = vmatpush1.bf16.msra.mxu0 0
        %4694 = vmatprep.subr.bf16.mxu0 0
        %4695 = vmatpush1.bf16.msra.mxu0 0
        %4696 = vmatprep.subr.bf16.mxu0 %v3261
        %4697 = vmatpush1.bf16.msra.mxu0 %v3258
        %4698 = vmatprep.subr.bf16.mxu0 %v2628
        %4699 = vmatpush1.bf16.msra.mxu0 %v2627
        %4700 = vmatprep.subr.bf16.mxu0 %v2547
        %4701 = vmatpush1.bf16.msra.mxu0 %v2546
        %4702 = vmatprep.subr.bf16.mxu0 %v2466
        %4703 = vmatpush1.bf16.msra.mxu0 %v2465
        %4704 = vmatprep.subr.bf16.mxu0 %v2385
        %4705 = vmatpush1.bf16.msra.mxu0 %v2384
        %4706 = vmatprep.subr.bf16.mxu0 0
        %4707 = vmatpush2.bf16.msra.mxu0 0
        %4708 = vmatprep.subr.bf16.mxu0 0
        %4709 = vmatpush2.bf16.msra.mxu0 0
        %4710 = vmatprep.subr.bf16.mxu0 0
        %4711 = vmatpush2.bf16.msra.mxu0 0
        %4712 = vmatprep.subr.bf16.mxu0 0
        %4713 = vmatpush2.bf16.msra.mxu0 0
        %4714 = vmatprep.subr.bf16.mxu0 0
        %4715 = vmatpush2.bf16.msra.mxu0 0
        %4716 = vmatprep.subr.bf16.mxu0 0
        %4717 = vmatpush2.bf16.msra.mxu0 0
        %4718 = vmatprep.subr.bf16.mxu0 0
        %4719 = vmatpush2.bf16.msra.mxu0 0
        %4720 = vmatprep.subr.bf16.mxu0 0
        %4721 = vmatpush2.bf16.msra.mxu0 0
        %4722 = vmatprep.mubr.bf16.mxu0 0
        %4723 = vmatmul.mubr.bf16.gmra.mxu0 %v3047
        %v4724 = vpop.f32.mrf.mxu0
        %v4725 = vadd.f32 %v1088, %v4724
        %v4726 = vpop.f32.mrf.mxu0
        %v4727 = vadd.f32 %v1092, %v4726
        %v4728 = vpop.f32.mrf.mxu0
        %v4729 = vpop.f32.mrf.mxu0
        %4730 = vdwg.mxu0
        %4731 = vmatprep.subr.bf16.mxu0 0
        %4732 = vmatpush1.bf16.msra.mxu0 0
        %4733 = vmatprep.subr.bf16.mxu0 0
        %4734 = vmatpush1.bf16.msra.mxu0 0
        %4735 = vmatprep.subr.bf16.mxu0 0
        %4736 = vmatpush1.bf16.msra.mxu0 0
        %4737 = vmatprep.subr.bf16.mxu0 %v3267
        %4738 = vmatpush1.bf16.msra.mxu0 %v3264
        %4739 = vmatprep.subr.bf16.mxu0 %v2630
        %4740 = vmatpush1.bf16.msra.mxu0 %v2629
        %4741 = vmatprep.subr.bf16.mxu0 %v2549
        %4742 = vmatpush1.bf16.msra.mxu0 %v2548
        %4743 = vmatprep.subr.bf16.mxu0 %v2468
        %4744 = vmatpush1.bf16.msra.mxu0 %v2467
        %4745 = vmatprep.subr.bf16.mxu0 %v2387
        %4746 = vmatpush1.bf16.msra.mxu0 %v2386
        %4747 = vmatprep.subr.bf16.mxu0 0
        %4748 = vmatpush2.bf16.msra.mxu0 0
        %4749 = vmatprep.subr.bf16.mxu0 0
        %4750 = vmatpush2.bf16.msra.mxu0 0
        %4751 = vmatprep.subr.bf16.mxu0 0
        %4752 = vmatpush2.bf16.msra.mxu0 0
        %4753 = vmatprep.subr.bf16.mxu0 0
        %4754 = vmatpush2.bf16.msra.mxu0 0
        %4755 = vmatprep.subr.bf16.mxu0 0
        %4756 = vmatpush2.bf16.msra.mxu0 0
        %4757 = vmatprep.subr.bf16.mxu0 0
        %4758 = vmatpush2.bf16.msra.mxu0 0
        %4759 = vmatprep.subr.bf16.mxu0 0
        %4760 = vmatpush2.bf16.msra.mxu0 0
        %4761 = vmatprep.subr.bf16.mxu0 0
        %4762 = vmatpush2.bf16.msra.mxu0 0
        %4763 = vmatprep.mubr.bf16.mxu0 0
        %4764 = vmatmul.mubr.bf16.gmra.mxu0 %v3047
        %v4765 = vpop.f32.mrf.mxu0
        %v4766 = vadd.f32 %v1096, %v4765
        %v4767 = vpop.f32.mrf.mxu0
        %v4768 = vadd.f32 %v1100, %v4767
        %v4769 = vpop.f32.mrf.mxu0
        %v4770 = vpop.f32.mrf.mxu0
        %4771 = vdwg.mxu0
        %4772 = vmatprep.subr.bf16.mxu0 0
        %4773 = vmatpush1.bf16.msra.mxu0 0
        %4774 = vmatprep.subr.bf16.mxu0 0
        %4775 = vmatpush1.bf16.msra.mxu0 0
        %4776 = vmatprep.subr.bf16.mxu0 0
        %4777 = vmatpush1.bf16.msra.mxu0 0
        %4778 = vmatprep.subr.bf16.mxu0 %v3273
        %4779 = vmatpush1.bf16.msra.mxu0 %v3270
        %4780 = vmatprep.subr.bf16.mxu0 %v2632
        %4781 = vmatpush1.bf16.msra.mxu0 %v2631
        %4782 = vmatprep.subr.bf16.mxu0 %v2551
        %4783 = vmatpush1.bf16.msra.mxu0 %v2550
        %4784 = vmatprep.subr.bf16.mxu0 %v2470
        %4785 = vmatpush1.bf16.msra.mxu0 %v2469
        %4786 = vmatprep.subr.bf16.mxu0 %v2389
        %4787 = vmatpush1.bf16.msra.mxu0 %v2388
        %4788 = vmatprep.subr.bf16.mxu0 0
        %4789 = vmatpush2.bf16.msra.mxu0 0
        %4790 = vmatprep.subr.bf16.mxu0 0
        %4791 = vmatpush2.bf16.msra.mxu0 0
        %4792 = vmatprep.subr.bf16.mxu0 0
        %4793 = vmatpush2.bf16.msra.mxu0 0
        %4794 = vmatprep.subr.bf16.mxu0 0
        %4795 = vmatpush2.bf16.msra.mxu0 0
        %4796 = vmatprep.subr.bf16.mxu0 0
        %4797 = vmatpush2.bf16.msra.mxu0 0
        %4798 = vmatprep.subr.bf16.mxu0 0
        %4799 = vmatpush2.bf16.msra.mxu0 0
        %4800 = vmatprep.subr.bf16.mxu0 0
        %4801 = vmatpush2.bf16.msra.mxu0 0
        %4802 = vmatprep.subr.bf16.mxu0 0
        %4803 = vmatpush2.bf16.msra.mxu0 0
        %4804 = vmatprep.mubr.bf16.mxu0 0
        %4805 = vmatmul.mubr.bf16.gmra.mxu0 %v3047
        %v4806 = vpop.f32.mrf.mxu0
        %v4807 = vadd.f32 %v1104, %v4806
        %v4808 = vpop.f32.mrf.mxu0
        %v4809 = vadd.f32 %v1108, %v4808
        %v4810 = vpop.f32.mrf.mxu0
        %v4811 = vpop.f32.mrf.mxu0
        %4812 = vdwg.mxu0
        %4813 = vmatprep.subr.bf16.mxu0 0
        %4814 = vmatpush1.bf16.msra.mxu0 0
        %4815 = vmatprep.subr.bf16.mxu0 0
        %4816 = vmatpush1.bf16.msra.mxu0 0
        %4817 = vmatprep.subr.bf16.mxu0 0
        %4818 = vmatpush1.bf16.msra.mxu0 0
        %4819 = vmatprep.subr.bf16.mxu0 %v3279
        %4820 = vmatpush1.bf16.msra.mxu0 %v3276
        %4821 = vmatprep.subr.bf16.mxu0 %v2634
        %4822 = vmatpush1.bf16.msra.mxu0 %v2633
        %4823 = vmatprep.subr.bf16.mxu0 %v2553
        %4824 = vmatpush1.bf16.msra.mxu0 %v2552
        %4825 = vmatprep.subr.bf16.mxu0 %v2472
        %4826 = vmatpush1.bf16.msra.mxu0 %v2471
        %4827 = vmatprep.subr.bf16.mxu0 %v2391
        %4828 = vmatpush1.bf16.msra.mxu0 %v2390
        %4829 = vmatprep.subr.bf16.mxu0 0
        %4830 = vmatpush2.bf16.msra.mxu0 0
        %4831 = vmatprep.subr.bf16.mxu0 0
        %4832 = vmatpush2.bf16.msra.mxu0 0
        %4833 = vmatprep.subr.bf16.mxu0 0
        %4834 = vmatpush2.bf16.msra.mxu0 0
        %4835 = vmatprep.subr.bf16.mxu0 0
        %4836 = vmatpush2.bf16.msra.mxu0 0
        %4837 = vmatprep.subr.bf16.mxu0 0
        %4838 = vmatpush2.bf16.msra.mxu0 0
        %4839 = vmatprep.subr.bf16.mxu0 0
        %4840 = vmatpush2.bf16.msra.mxu0 0
        %4841 = vmatprep.subr.bf16.mxu0 0
        %4842 = vmatpush2.bf16.msra.mxu0 0
        %4843 = vmatprep.subr.bf16.mxu0 0
        %4844 = vmatpush2.bf16.msra.mxu0 0
        %4845 = vmatprep.mubr.bf16.mxu0 0
        %4846 = vmatmul.mubr.bf16.gmra.mxu0 %v3047
        %v4847 = vpop.f32.mrf.mxu0
        %v4848 = vadd.f32 %v1112, %v4847
        %v4849 = vpop.f32.mrf.mxu0
        %v4850 = vadd.f32 %v1116, %v4849
        %v4851 = vpop.f32.mrf.mxu0
        %v4852 = vpop.f32.mrf.mxu0
        %4853 = vdwg.mxu0
        %4854 = vmatprep.subr.bf16.mxu0 0
        %4855 = vmatpush1.bf16.msra.mxu0 0
        %4856 = vmatprep.subr.bf16.mxu0 0
        %4857 = vmatpush1.bf16.msra.mxu0 0
        %4858 = vmatprep.subr.bf16.mxu0 0
        %4859 = vmatpush1.bf16.msra.mxu0 0
        %4860 = vmatprep.subr.bf16.mxu0 %v3285
        %4861 = vmatpush1.bf16.msra.mxu0 %v3282
        %4862 = vmatprep.subr.bf16.mxu0 %v2636
        %4863 = vmatpush1.bf16.msra.mxu0 %v2635
        %4864 = vmatprep.subr.bf16.mxu0 %v2555
        %4865 = vmatpush1.bf16.msra.mxu0 %v2554
        %4866 = vmatprep.subr.bf16.mxu0 %v2474
        %4867 = vmatpush1.bf16.msra.mxu0 %v2473
        %4868 = vmatprep.subr.bf16.mxu0 %v2393
        %4869 = vmatpush1.bf16.msra.mxu0 %v2392
        %4870 = vmatprep.subr.bf16.mxu0 0
        %4871 = vmatpush2.bf16.msra.mxu0 0
        %4872 = vmatprep.subr.bf16.mxu0 0
        %4873 = vmatpush2.bf16.msra.mxu0 0
        %4874 = vmatprep.subr.bf16.mxu0 0
        %4875 = vmatpush2.bf16.msra.mxu0 0
        %4876 = vmatprep.subr.bf16.mxu0 0
        %4877 = vmatpush2.bf16.msra.mxu0 0
        %4878 = vmatprep.subr.bf16.mxu0 0
        %4879 = vmatpush2.bf16.msra.mxu0 0
        %4880 = vmatprep.subr.bf16.mxu0 0
        %4881 = vmatpush2.bf16.msra.mxu0 0
        %4882 = vmatprep.subr.bf16.mxu0 0
        %4883 = vmatpush2.bf16.msra.mxu0 0
        %4884 = vmatprep.subr.bf16.mxu0 0
        %4885 = vmatpush2.bf16.msra.mxu0 0
        %4886 = vmatprep.mubr.bf16.mxu0 0
        %4887 = vmatmul.mubr.bf16.gmra.mxu0 %v3047
        %v4888 = vpop.f32.mrf.mxu0
        %v4889 = vadd.f32 %v1120, %v4888
        %v4890 = vpop.f32.mrf.mxu0
        %v4891 = vadd.f32 %v1124, %v4890
        %v4892 = vpop.f32.mrf.mxu0
        %v4893 = vpop.f32.mrf.mxu0
        %4894 = vdwg.mxu0
        %4895 = vmatprep.subr.bf16.mxu0 0
        %4896 = vmatpush1.bf16.msra.mxu0 0
        %4897 = vmatprep.subr.bf16.mxu0 0
        %4898 = vmatpush1.bf16.msra.mxu0 0
        %4899 = vmatprep.subr.bf16.mxu0 0
        %4900 = vmatpush1.bf16.msra.mxu0 0
        %4901 = vmatprep.subr.bf16.mxu0 %v3291
        %4902 = vmatpush1.bf16.msra.mxu0 %v3288
        %4903 = vmatprep.subr.bf16.mxu0 %v2638
        %4904 = vmatpush1.bf16.msra.mxu0 %v2637
        %4905 = vmatprep.subr.bf16.mxu0 %v2557
        %4906 = vmatpush1.bf16.msra.mxu0 %v2556
        %4907 = vmatprep.subr.bf16.mxu0 %v2476
        %4908 = vmatpush1.bf16.msra.mxu0 %v2475
        %4909 = vmatprep.subr.bf16.mxu0 %v2395
        %4910 = vmatpush1.bf16.msra.mxu0 %v2394
        %4911 = vmatprep.subr.bf16.mxu0 0
        %4912 = vmatpush2.bf16.msra.mxu0 0
        %4913 = vmatprep.subr.bf16.mxu0 0
        %4914 = vmatpush2.bf16.msra.mxu0 0
        %4915 = vmatprep.subr.bf16.mxu0 0
        %4916 = vmatpush2.bf16.msra.mxu0 0
        %4917 = vmatprep.subr.bf16.mxu0 0
        %4918 = vmatpush2.bf16.msra.mxu0 0
        %4919 = vmatprep.subr.bf16.mxu0 0
        %4920 = vmatpush2.bf16.msra.mxu0 0
        %4921 = vmatprep.subr.bf16.mxu0 0
        %4922 = vmatpush2.bf16.msra.mxu0 0
        %4923 = vmatprep.subr.bf16.mxu0 0
        %4924 = vmatpush2.bf16.msra.mxu0 0
        %4925 = vmatprep.subr.bf16.mxu0 0
        %4926 = vmatpush2.bf16.msra.mxu0 0
        %4927 = vmatprep.mubr.bf16.mxu0 0
        %4928 = vmatmul.mubr.bf16.gmra.mxu0 %v3047
        %v4929 = vpop.f32.mrf.mxu0
        %v4930 = vadd.f32 %v1128, %v4929
        %v4931 = vpop.f32.mrf.mxu0
        %v4932 = vadd.f32 %v1132, %v4931
        %v4933 = vpop.f32.mrf.mxu0
        %v4934 = vpop.f32.mrf.mxu0
        %4935 = vdwg.mxu0
        %4936 = vmatprep.subr.bf16.mxu0 0
        %4937 = vmatpush1.bf16.msra.mxu0 0
        %4938 = vmatprep.subr.bf16.mxu0 0
        %4939 = vmatpush1.bf16.msra.mxu0 0
        %4940 = vmatprep.subr.bf16.mxu0 0
        %4941 = vmatpush1.bf16.msra.mxu0 0
        %4942 = vmatprep.subr.bf16.mxu0 0
        %4943 = vmatpush1.bf16.msra.mxu0 %v3294
        %4944 = vmatprep.subr.bf16.mxu0 0
        %4945 = vmatpush1.bf16.msra.mxu0 %v2639
        %4946 = vmatprep.subr.bf16.mxu0 0
        %4947 = vmatpush1.bf16.msra.mxu0 %v2558
        %4948 = vmatprep.subr.bf16.mxu0 0
        %4949 = vmatpush1.bf16.msra.mxu0 %v2477
        %4950 = vmatprep.subr.bf16.mxu0 0
        %4951 = vmatpush1.bf16.msra.mxu0 %v2396
        %4952 = vmatprep.subr.bf16.mxu0 0
        %4953 = vmatpush2.bf16.msra.mxu0 0
        %4954 = vmatprep.subr.bf16.mxu0 0
        %4955 = vmatpush2.bf16.msra.mxu0 0
        %4956 = vmatprep.subr.bf16.mxu0 0
        %4957 = vmatpush2.bf16.msra.mxu0 0
        %4958 = vmatprep.subr.bf16.mxu0 0
        %4959 = vmatpush2.bf16.msra.mxu0 0
        %4960 = vmatprep.subr.bf16.mxu0 0
        %4961 = vmatpush2.bf16.msra.mxu0 0
        %4962 = vmatprep.subr.bf16.mxu0 0
        %4963 = vmatpush2.bf16.msra.mxu0 0
        %4964 = vmatprep.subr.bf16.mxu0 0
        %4965 = vmatpush2.bf16.msra.mxu0 0
        %4966 = vmatprep.subr.bf16.mxu0 0
        %4967 = vmatpush2.bf16.msra.mxu0 0
        %4968 = vmatprep.mubr.bf16.mxu0 0
        %4969 = vmatmul.mubr.bf16.gmra.mxu0 %v3047
        %v4970 = vpop.f32.mrf.mxu0
        %v4971 = vadd.f32 %v1136, %v4970
        %v4972 = vpop.f32.mrf.mxu0
        %v4973 = vpop.f32.mrf.mxu0
        %v4974 = vpop.f32.mrf.mxu0
        %4975 = vdwg.mxu0
        %4976 = vst [vmem:[%s300] sm:$0xff] %v3331
        %4977 = vst [vmem:[%s300 + $0x8] sm:$0xff] %v3333
        %4978 = vst [vmem:[%s300 + $0x10] sm:$0xff] %v3372
        %4979 = vst [vmem:[%s300 + $0x18] sm:$0xff] %v3374
        %4980 = vst [vmem:[%s300 + $0x20] sm:$0xff] %v3413
        %4981 = vst [vmem:[%s300 + $0x28] sm:$0xff] %v3415
        %4982 = vst [vmem:[%s300 + $0x30] sm:$0xff] %v3454
        %4983 = vst [vmem:[%s300 + $0x38] sm:$0xff] %v3456
        %4984 = vst [vmem:[%s300 + $0x40] sm:$0xff] %v3495
        %4985 = vst [vmem:[%s300 + $0x48] sm:$0xff] %v3497
        %4986 = vst [vmem:[%s300 + $0x50] sm:$0xff] %v3536
        %4987 = vst [vmem:[%s300 + $0x58] sm:$0xff] %v3538
        %4988 = vst [vmem:[%s300 + $0x60] sm:$0xff] %v3577
        %4989 = vst [vmem:[%s300 + $0x68] sm:$0xff] %v3579
        %4990 = vst [vmem:[%s300 + $0x70] sm:$0xff] %v3618
        %4991 = vst [vmem:[%s300 + $0x78] sm:$0xff] %v3620
        %4992 = vst [vmem:[%s300 + $0x80] sm:$0xff] %v3659
        %4993 = vst [vmem:[%s300 + $0x88] sm:$0xff] %v3661
        %4994 = vst [vmem:[%s300 + $0x90] sm:$0xff] %v3700
        %4995 = vst [vmem:[%s300 + $0x98] sm:$0xff] %v3702
        %4996 = vst [vmem:[%s300 + $0xa0] sm:$0xff] %v3741
        %4997 = vst [vmem:[%s300 + $0xa8] sm:$0xff] %v3743
        %4998 = vst [vmem:[%s300 + $0xb0] sm:$0xff] %v3782
        %4999 = vst [vmem:[%s300 + $0xb8] sm:$0xff] %v3784
        %5000 = vst [vmem:[%s300 + $0xc0] sm:$0xff] %v3823
        %5001 = vst [vmem:[%s300 + $0xc8] sm:$0xff] %v3825
        %5002 = vst [vmem:[%s300 + $0xd0] sm:$0xff] %v3864
        %5003 = vst [vmem:[%s300 + $0xd8] sm:$0xff] %v3866
        %5004 = vst [vmem:[%s300 + $0xe0] sm:$0xff] %v3905
        %5005 = vst [vmem:[%s300 + $0xe8] sm:$0xff] %v3907
        %5006 = vst [vmem:[%s300 + $0xf0] sm:$0xff] %v3946
        %5007 = vst [vmem:[%s300 + $0xf8] sm:$0xff] %v3948
        %5008 = vst [vmem:[%s300 + $0x100] sm:$0xff] %v3987
        %5009 = vst [vmem:[%s300 + $0x108] sm:$0xff] %v3989
        %5010 = vst [vmem:[%s300 + $0x110] sm:$0xff] %v4028
        %5011 = vst [vmem:[%s300 + $0x118] sm:$0xff] %v4030
        %5012 = vst [vmem:[%s300 + $0x120] sm:$0xff] %v4069
        %5013 = vst [vmem:[%s300 + $0x128] sm:$0xff] %v4071
        %5014 = vst [vmem:[%s300 + $0x130] sm:$0xff] %v4110
        %5015 = vst [vmem:[%s300 + $0x138] sm:$0xff] %v4112
        %5016 = vst [vmem:[%s300 + $0x140] sm:$0xff] %v4151
        %5017 = vst [vmem:[%s300 + $0x148] sm:$0xff] %v4153
        %5018 = vst [vmem:[%s300 + $0x150] sm:$0xff] %v4192
        %5019 = vst [vmem:[%s300 + $0x158] sm:$0xff] %v4194
        %5020 = vst [vmem:[%s300 + $0x160] sm:$0xff] %v4233
        %5021 = vst [vmem:[%s300 + $0x168] sm:$0xff] %v4235
        %5022 = vst [vmem:[%s300 + $0x170] sm:$0xff] %v4274
        %5023 = vst [vmem:[%s300 + $0x178] sm:$0xff] %v4276
        %5024 = vst [vmem:[%s300 + $0x180] sm:$0xff] %v4315
        %5025 = vst [vmem:[%s300 + $0x188] sm:$0xff] %v4317
        %5026 = vst [vmem:[%s300 + $0x190] sm:$0xff] %v4356
        %5027 = vst [vmem:[%s300 + $0x198] sm:$0xff] %v4358
        %5028 = vst [vmem:[%s300 + $0x1a0] sm:$0xff] %v4397
        %5029 = vst [vmem:[%s300 + $0x1a8] sm:$0xff] %v4399
        %5030 = vst [vmem:[%s300 + $0x1b0] sm:$0xff] %v4438
        %5031 = vst [vmem:[%s300 + $0x1b8] sm:$0xff] %v4440
        %5032 = vst [vmem:[%s300 + $0x1c0] sm:$0xff] %v4479
        %5033 = vst [vmem:[%s300 + $0x1c8] sm:$0xff] %v4481
        %5034 = vst [vmem:[%s300 + $0x1d0] sm:$0xff] %v4520
        %5035 = vst [vmem:[%s300 + $0x1d8] sm:$0xff] %v4522
        %5036 = vst [vmem:[%s300 + $0x1e0] sm:$0xff] %v4561
        %5037 = vst [vmem:[%s300 + $0x1e8] sm:$0xff] %v4563
        %5038 = vst [vmem:[%s300 + $0x1f0] sm:$0xff] %v4602
        %5039 = vst [vmem:[%s300 + $0x1f8] sm:$0xff] %v4604
        %5040 = vst [vmem:[%s300 + $0x200] sm:$0xff] %v4643
        %5041 = vst [vmem:[%s300 + $0x208] sm:$0xff] %v4645
        %5042 = vst [vmem:[%s300 + $0x210] sm:$0xff] %v4684
        %5043 = vst [vmem:[%s300 + $0x218] sm:$0xff] %v4686
        %5044 = vst [vmem:[%s300 + $0x220] sm:$0xff] %v4725
        %5045 = vst [vmem:[%s300 + $0x228] sm:$0xff] %v4727
        %5046 = vst [vmem:[%s300 + $0x230] sm:$0xff] %v4766
        %5047 = vst [vmem:[%s300 + $0x238] sm:$0xff] %v4768
        %5048 = vst [vmem:[%s300 + $0x240] sm:$0xff] %v4807
        %5049 = vst [vmem:[%s300 + $0x248] sm:$0xff] %v4809
        %5050 = vst [vmem:[%s300 + $0x250] sm:$0xff] %v4848
        %5051 = vst [vmem:[%s300 + $0x258] sm:$0xff] %v4850
        %5052 = vst [vmem:[%s300 + $0x260] sm:$0xff] %v4889
        %5053 = vst [vmem:[%s300 + $0x268] sm:$0xff] %v4891
        %5054 = vst [vmem:[%s300 + $0x270] sm:$0xff] %v4930
        %5055 = vst [vmem:[%s300 + $0x278] sm:$0xff] %v4932
        %5056 = vst [vmem:[%s300 + $0x280] sm:$0xff] %v4971
        %s5057 = sand.u32 %s144, 1
        %s5058 = scalar_lea.sflag [#allocation4], %s5057
        %s5059 = sand.u32 %s144, 1
        %s5060 = smul.addr %s5059, 648
        %s5061 = scalar_lea.vmem [#allocation9], %s5060
        // Predicated region
        $region57: #{neural_posedirs_forward.1} parent=39 // pred_check
          %p5062 = pneg %p154
        $region58: #{neural_posedirs_forward.1} parent=39 // pred_check_branch
          %5064 = sbr.rel (%p5062) target = $region60
        $region59: #{neural_posedirs_forward.1} parent=39 // pred_region
          %s5065 = smul.u32 81, %s21
          %s5067 = ssub.s32 10368, 10368
          %5068 = vsyncadd %s5058, %s5067
          %s5069 = smul.addr %s5065, 128
          %s5070 = scalar_lea.hbm %s5, %s5069
          %s5072 = sshll.u32 %s5061, 4
          %s5073 = int_to_ptr.vmem [resolvable:$true] %s5072
          %5075 = dma.vmem_to_hbm [thread:$0]  %s5073, 10368, %s5070, %s5058
        $region60: #{neural_posedirs_forward.1} parent=39 // pred_fallthru
          _
      $region40: #{neural_posedirs_forward.1} parent=5 // pred_fallthru
        _
      %p5076 = scmp.le.s32.totalorder 2, %s16
      // Predicated region
      $region61: #{neural_posedirs_forward.1} parent=5 // pred_check
        %p5077 = pneg %p5076
      $region62: #{neural_posedirs_forward.1} parent=5 // pred_check_branch
        %5079 = sbr.rel (%p5077) target = $region64
      $region63: #{neural_posedirs_forward.1} parent=5 // pred_region
        %s5080 = ssub.s32 %s16, 2
        // Predicated region
        $region65: #{neural_posedirs_forward.1} parent=63 // pred_check
          %p5081 = pneg %p160
        $region66: #{neural_posedirs_forward.1} parent=63 // pred_check_branch
          %5083 = sbr.rel (%p5081) target = $region68
        $region67: #{neural_posedirs_forward.1} parent=63 // pred_region
          %s5084 = sand.u32 %s145, 1
          %s5085 = scalar_lea.sflag [#allocation4], %s5084
          %s5086 = sand.u32 %s145, 1
          %s5087 = smul.addr %s5086, 648
          %s5088 = scalar_lea.vmem [#allocation9], %s5087
          %5089 = dma.done %s5085, 10368
        $region68: #{neural_posedirs_forward.1} parent=63 // pred_fallthru
          _
      $region64: #{neural_posedirs_forward.1} parent=5 // pred_fallthru
        _
    $region6: #{neural_posedirs_forward.1} parent=1 // loop_footer
      %s20 = sadd.s32 1, %s16
    $region7: #{neural_posedirs_forward.1} parent=1 // loop_footer_branch
      %15 = sbr.rel target = $region3
    $region8: #{neural_posedirs_forward.1} parent=1 // loop_exit
      _
    %5090 = vsyncpa [#allocation3], 1
    %s5091 = scalar_lea.sflag [#allocation3], 1
    %5092 = vsyncpa %s5091, 1
    %5093 = vsyncpa [#allocation6], 1
    %5094 = vsyncpa [#allocation4], 1
    %s5095 = scalar_lea.sflag [#allocation4], 1
    %5096 = vsyncpa %s5095, 1

</llo_original>
